<compile_context>
chip_gen: v7x
topology: tpu7x:2x2x1
jax: 0.10.0
libtpu: 0.0.40
codegen_flags: <defaults>
</compile_context>

<pallas_src>
import functools
import math

import jax
import jax.numpy as jnp
from jax.experimental import pallas as pl
from jax.experimental.pallas import tpu as pltpu


# ----------------------------------------------------------------------------
# helpers
# ----------------------------------------------------------------------------
def _pick_tile(n, target, quantum):
    """Largest t <= target with n % t == 0 and t % quantum == 0, else n.

    NOTE: falls back to the full dimension when no aligned divisor exists
    (fine for the shapes used here; large awkward dims would need padding).
    """
    if n <= target:
        return n
    t = (target // quantum) * quantum
    while t >= quantum:
        if n % t == 0:
            return t
        t -= quantum
    return n


def _vmem_limit(block_bytes):
    """Scoped-VMEM limit: double-buffered blocks + headroom, clamped so the
    same setting is safe on v5e/v6e (128 MiB) and v7x (64 MiB)."""
    return int(min(max(2 * block_bytes + (8 << 20), 32 << 20), 64 << 20))


# ----------------------------------------------------------------------------
# Kernels
# ----------------------------------------------------------------------------
def _mha_fused_kernel(q_ref, kv_ref, mask_ref,
                      wq_ref, bq_ref, wkv_ref, bkv_ref,
                      wo_ref, bo_ref, g_ref, beta_ref,
                      out_ref, *maybe_attn,
                      n_heads, eps, return_attn):
    """One (batch, Tq-tile) grid step; all heads processed inside.

    Weights arrive as bf16 (scale folded into wq/bq); biases / LN params f32.
    """
    x_q = q_ref[...]                         # [tq, H] f32 (residual)
    x_kv = kv_ref[...]                       # [Tk, H] f32
    tq, H = x_q.shape
    Tk = x_kv.shape[0]
    d = H // n_heads

    # fused projections on the MXU (bf16 operands, f32 accumulation)
    q = (jnp.dot(x_q.astype(jnp.bfloat16), wq_ref[...],
                 preferred_element_type=jnp.float32) + bq_ref[...])
    kv = (jnp.dot(x_kv.astype(jnp.bfloat16), wkv_ref[...],
                  preferred_element_type=jnp.float32) + bkv_ref[...])
    k = kv[:, :H]
    v = kv[:, H:]

    # mask compare + broadcast hoisted out of the head loop
    mask_zero = jnp.broadcast_to(mask_ref[...] == 0, (tq, Tk))

    q_b = q.astype(jnp.bfloat16)
    k_b = k.astype(jnp.bfloat16)
    v_b = v.astype(jnp.bfloat16)

    # per-head attention; contexts written into one [tq, H] tile, so the
    # output projection is a single K=H matmul after the loop.
    ctx_parts = []
    for h in range(n_heads):
        qh = q_b[:, h * d:(h + 1) * d]                       # [tq, d]
        kh = k_b[:, h * d:(h + 1) * d]                       # [Tk, d]
        vh = v_b[:, h * d:(h + 1) * d]                       # [Tk, d]
        # contract last dims directly (no explicit kh.T / XLU transpose)
        e = jax.lax.dot_general(qh, kh, (((1,), (1,)), ((), ())),
                                preferred_element_type=jnp.float32)
        e = jnp.where(mask_zero, jnp.float32(-1e10), e)
        e = e - jnp.max(e, axis=-1, keepdims=True)
        p = jnp.exp(e)
        p = p * pl.reciprocal(jnp.sum(p, axis=-1, keepdims=True), approx=True)
        if return_attn:
            maybe_attn[0][h, :, :] = p
        ctx_parts.append(jnp.dot(p.astype(jnp.bfloat16), vh,
                                 preferred_element_type=jnp.float32))
    ctx = jnp.concatenate(ctx_parts, axis=-1)                # [tq, H]
    y = (jnp.dot(ctx.astype(jnp.bfloat16), wo_ref[...],
                 preferred_element_type=jnp.float32) + bo_ref[...])

    # residual add + LayerNorm epilogue (fused, f32)
    z = x_q + y
    mean = jnp.mean(z, axis=-1, keepdims=True)
    var = jnp.mean((z - mean) * (z - mean), axis=-1, keepdims=True)
    out_ref[...] = (z - mean) * jax.lax.rsqrt(var + eps) * g_ref[...] + beta_ref[...]


def _ffn_fused_kernel(x_ref, w1_ref, b1_ref, w2_ref, b2_ref, g_ref, beta_ref,
                      o_ref, acc_ref, *, eps):
    """Row-tile x pf-tile grid; accumulates fc2 output over the pf axis."""
    j = pl.program_id(1)

    @pl.when(j == 0)
    def _():
        acc_ref[...] = jnp.zeros_like(acc_ref)

    x = x_ref[...]                                                   # [tm, H] f32
    h = (jnp.dot(x.astype(jnp.bfloat16), w1_ref[...],
                 preferred_element_type=jnp.float32) + b1_ref[...])
    h = jnp.maximum(h, 0.0)                                          # [tm, tp]
    acc_ref[...] += jnp.dot(h.astype(jnp.bfloat16), w2_ref[...],
                            preferred_element_type=jnp.float32)

    @pl.when(j == pl.num_programs(1) - 1)
    def _():
        z = x + acc_ref[...] + b2_ref[...]          # residual + fc2 bias
        mean = jnp.mean(z, axis=-1, keepdims=True)
        var = jnp.mean((z - mean) * (z - mean), axis=-1, keepdims=True)
        o_ref[...] = (z - mean) * jax.lax.rsqrt(var + eps) * g_ref[...] + beta_ref[...]


# ----------------------------------------------------------------------------
# Pallas wrappers
# ----------------------------------------------------------------------------
def mha_block(q_in, kv_in, mask, p, ln_g, ln_b, n_heads, *, return_attn, eps=1e-5):
    """Fused MHA + residual + LayerNorm.  mask: [B, 1, Mq, Tk], Mq in {1, Tq}."""
    B, Tq, H = q_in.shape
    Tk = kv_in.shape[1]
    d = H // n_heads
    Mq = mask.shape[2]

    # fold 1/sqrt(d) into the Q projection; cast weights to bf16 once here
    scale_inv = 1.0 / math.sqrt(float(d))
    wq = (p["wq"] * scale_inv).astype(jnp.bfloat16)
    bq = (p["bq"] * scale_inv).reshape(1, H)
    wkv = p["wkv"].astype(jnp.bfloat16)
    bkv = p["bkv"].reshape(1, 2 * H)
    wo = p["wo"].astype(jnp.bfloat16)
    bo = p["bo"].reshape(1, H)

    tq = _pick_tile(Tq, target=256, quantum=8)
    n_tq = Tq // tq

    kernel = functools.partial(_mha_fused_kernel, n_heads=n_heads, eps=eps,
                               return_attn=return_attn)

    # mask block: either row-tiled (Mq == Tq) or broadcast row (Mq == 1)
    if Mq == Tq:
        mask_spec = pl.BlockSpec((None, None, tq, Tk), lambda b, i: (b, 0, i, 0))
        mq_blk = tq
    else:
        mask_spec = pl.BlockSpec((None, None, 1, Tk), lambda b, i: (b, 0, 0, 0))
        mq_blk = 1

    in_specs = [
        pl.BlockSpec((None, tq, H), lambda b, i: (b, i, 0)),      # q_in
        pl.BlockSpec((None, Tk, H), lambda b, i: (b, 0, 0)),      # kv_in
        mask_spec,                                                # mask
        pl.BlockSpec((H, H), lambda b, i: (0, 0)),                # wq (bf16)
        pl.BlockSpec((1, H), lambda b, i: (0, 0)),                # bq
        pl.BlockSpec((H, 2 * H), lambda b, i: (0, 0)),            # wkv (bf16)
        pl.BlockSpec((1, 2 * H), lambda b, i: (0, 0)),            # bkv
        pl.BlockSpec((H, H), lambda b, i: (0, 0)),                # wo (bf16)
        pl.BlockSpec((1, H), lambda b, i: (0, 0)),                # bo
        pl.BlockSpec((1, H), lambda b, i: (0, 0)),                # ln gamma
        pl.BlockSpec((1, H), lambda b, i: (0, 0)),                # ln beta
    ]

    if return_attn:
        out_shape = (jax.ShapeDtypeStruct((B, Tq, H), jnp.float32),
                     jax.ShapeDtypeStruct((B, n_heads, Tq, Tk), jnp.float32))
        out_specs = (pl.BlockSpec((None, tq, H), lambda b, i: (b, i, 0)),
                     pl.BlockSpec((None, n_heads, tq, Tk),
                                  lambda b, i: (b, 0, i, 0)))
    else:
        out_shape = jax.ShapeDtypeStruct((B, Tq, H), jnp.float32)
        out_specs = pl.BlockSpec((None, tq, H), lambda b, i: (b, i, 0))

    # rough per-step VMEM block budget (for the explicit scoped-vmem limit)
    blk_bytes = (tq * H * 4 + Tk * H * 4 + mq_blk * Tk * 4        # activations/mask
                 + 4 * H * H * 2 + 6 * H * 4                      # weights/biases/LN
                 + tq * H * 4                                     # output
                 + n_heads * tq * Tk * 4                          # scores/probs
                 + (n_heads * tq * Tk * 4 if return_attn else 0))

    res = pl.pallas_call(
        kernel,
        out_shape=out_shape,
        grid=(B, n_tq),
        in_specs=in_specs,
        out_specs=out_specs,
        compiler_params=pltpu.CompilerParams(
            dimension_semantics=("parallel", "parallel"),
            vmem_limit_bytes=_vmem_limit(blk_bytes)),
    )(q_in, kv_in, mask, wq, bq, wkv, bkv, wo, bo,
      ln_g.reshape(1, H), ln_b.reshape(1, H))

    if return_attn:
        return res[0], res[1]
    return res


def ffn_block(x, p, ln_g, ln_b, eps=1e-5):
    """Fused positionwise FFN + residual + LayerNorm, tiled over rows and pf_dim."""
    B, T, H = x.shape
    M = B * T
    P = p["w1"].shape[1]
    tm = _pick_tile(M, target=512, quantum=8)      # row tile (parallel axis)
    tp = _pick_tile(P, target=1024, quantum=128)   # pf tile  (reduction axis)
    x2d = x.reshape(M, H)

    w1 = p["w1"].astype(jnp.bfloat16)
    w2 = p["w2"].astype(jnp.bfloat16)

    blk_bytes = (tm * H * 4                 # x
                 + H * tp * 2 + tp * 4      # w1 tile + b1 tile
                 + tp * H * 2 + H * 4       # w2 tile + b2
                 + 2 * H * 4                # LN params
                 + tm * H * 4               # output tile
                 + tm * H * 4               # f32 accumulator
                 + tm * tp * 4)             # ReLU intermediate

    out = pl.pallas_call(
        functools.partial(_ffn_fused_kernel, eps=eps),
        out_shape=jax.ShapeDtypeStruct((M, H), jnp.float32),
        grid=(M // tm, P // tp),
        in_specs=[
            pl.BlockSpec((tm, H), lambda i, j: (i, 0)),   # x (also residual)
            pl.BlockSpec((H, tp), lambda i, j: (0, j)),   # w1 tile (bf16)
            pl.BlockSpec((1, tp), lambda i, j: (0, j)),   # b1 tile
            pl.BlockSpec((tp, H), lambda i, j: (j, 0)),   # w2 tile (bf16)
            pl.BlockSpec((1, H), lambda i, j: (0, 0)),    # b2
            pl.BlockSpec((1, H), lambda i, j: (0, 0)),    # ln gamma
            pl.BlockSpec((1, H), lambda i, j: (0, 0)),    # ln beta
        ],
        out_specs=pl.BlockSpec((tm, H), lambda i, j: (i, 0)),
        scratch_shapes=[pltpu.VMEM((tm, H), jnp.float32)],
        compiler_params=pltpu.CompilerParams(
            dimension_semantics=("parallel", "arbitrary"),
            vmem_limit_bytes=_vmem_limit(blk_bytes)),
    )(x2d, w1, p["b1"].reshape(1, P), w2, p["b2"].reshape(1, H),
      ln_g.reshape(1, H), ln_b.reshape(1, H))
    return out.reshape(B, T, H)


# ----------------------------------------------------------------------------
# DecoderLayer forward (dropout == identity at inference)
# ----------------------------------------------------------------------------
def decoder_layer(trg, enc_src, trg_mask, src_mask, params, n_heads):
    # self attention + residual + LN (attention probs not materialized)
    trg = mha_block(trg, trg, trg_mask, params["self_attn"],
                    params["ln1_g"], params["ln1_b"], n_heads, return_attn=False)
    # encoder attention + residual + LN (returns attention probs)
    trg, attention = mha_block(trg, enc_src, src_mask, params["enc_attn"],
                               params["ln2_g"], params["ln2_b"], n_heads,
                               return_attn=True)
    # positionwise feedforward + residual + LN
    trg = ffn_block(trg, params["ffn"], params["ln3_g"], params["ln3_b"])
    return trg, attention


# ----------------------------------------------------------------------------
# Pure-JAX reference (for a sanity check in __main__)
# ----------------------------------------------------------------------------
def _ref_mha(q_in, kv_in, mask, p, n_heads):
    B, Tq, H = q_in.shape
    Tk = kv_in.shape[1]
    d = H // n_heads
    q = q_in @ p["wq"] + p["bq"]
    kv = kv_in @ p["wkv"] + p["bkv"]
    k, v = kv[..., :H], kv[..., H:]
    q = q.reshape(B, Tq, n_heads, d).transpose(0, 2, 1, 3)
    k = k.reshape(B, Tk, n_heads, d).transpose(0, 2, 1, 3)
    v = v.reshape(B, Tk, n_heads, d).transpose(0, 2, 1, 3)
    e = jnp.einsum("bhqd,bhkd->bhqk", q, k) / math.sqrt(float(d))
    e = jnp.where(mask == 0, -1e10, e)
    a = jax.nn.softmax(e, axis=-1)
    ctx = jnp.einsum("bhqk,bhkd->bhqd", a, v)
    x = ctx.transpose(0, 2, 1, 3).reshape(B, Tq, H)
    return x @ p["wo"] + p["bo"], a


def _ref_ln(x, g, b, eps=1e-5):
    m = x.mean(-1, keepdims=True)
    v = ((x - m) ** 2).mean(-1, keepdims=True)
    return (x - m) * jax.lax.rsqrt(v + eps) * g + b


def _ref_decoder_layer(trg, enc_src, trg_mask, src_mask, params, n_heads):
    y, _ = _ref_mha(trg, trg, trg_mask, params["self_attn"], n_heads)
    trg = _ref_ln(trg + y, params["ln1_g"], params["ln1_b"])
    y, attn = _ref_mha(trg, enc_src, src_mask, params["enc_attn"], n_heads)
    trg = _ref_ln(trg + y, params["ln2_g"], params["ln2_b"])
    f = params["ffn"]
    y = jnp.maximum(trg @ f["w1"] + f["b1"], 0.0) @ f["w2"] + f["b2"]
    trg = _ref_ln(trg + y, params["ln3_g"], params["ln3_b"])
    return trg, attn


# ----------------------------------------------------------------------------
# Deterministic parameter init
# ----------------------------------------------------------------------------
def init_mha_params(key, hid_dim):
    ks = jax.random.split(key, 8)
    s = 1.0 / math.sqrt(hid_dim)
    u = lambda k, shape: jax.random.uniform(k, shape, jnp.float32, -s, s)
    wq, bq = u(ks[0], (hid_dim, hid_dim)), u(ks[1], (hid_dim,))
    wk, bk = u(ks[2], (hid_dim, hid_dim)), u(ks[3], (hid_dim,))
    wv, bv = u(ks[4], (hid_dim, hid_dim)), u(ks[5], (hid_dim,))
    wo, bo = u(ks[6], (hid_dim, hid_dim)), u(ks[7], (hid_dim,))
    return {
        "wq": wq, "bq": bq,
        "wkv": jnp.concatenate([wk, wv], axis=1),      # fused K|V projection
        "bkv": jnp.concatenate([bk, bv]),
        "wo": wo, "bo": bo,
    }


def init_params(key, hid_dim, pf_dim):
    k1, k2, k3, k4, k5, k6 = jax.random.split(key, 6)
    s1 = 1.0 / math.sqrt(hid_dim)
    s2 = 1.0 / math.sqrt(pf_dim)
    return {
        "self_attn": init_mha_params(k1, hid_dim),
        "enc_attn": init_mha_params(k2, hid_dim),
        "ffn": {
            "w1": jax.random.uniform(k3, (hid_dim, pf_dim), jnp.float32, -s1, s1),
            "b1": jax.random.uniform(k4, (pf_dim,), jnp.float32, -s1, s1),
            "w2": jax.random.uniform(k5, (pf_dim, hid_dim), jnp.float32, -s2, s2),
            "b2": jax.random.uniform(k6, (hid_dim,), jnp.float32, -s2, s2),
        },
        "ln1_g": jnp.ones((hid_dim,), jnp.float32),
        "ln1_b": jnp.zeros((hid_dim,), jnp.float32),
        "ln2_g": jnp.ones((hid_dim,), jnp.float32),
        "ln2_b": jnp.zeros((hid_dim,), jnp.float32),
        "ln3_g": jnp.ones((hid_dim,), jnp.float32),
        "ln3_b": jnp.zeros((hid_dim,), jnp.float32),
    }


if __name__ == "__main__":
    B, T, S = 2, 8, 8
    hid_dim, n_heads, pf_dim = 32, 4, 64

    key = jax.random.PRNGKey(0)
    kp, kt, ke = jax.random.split(key, 3)

    params = init_params(kp, hid_dim, pf_dim)
    trg = jax.random.normal(kt, (B, T, hid_dim), jnp.float32)
    enc_src = jax.random.normal(ke, (B, S, hid_dim), jnp.float32)

    # causal target mask [B, 1, T, T]; full source mask [B, 1, 1, S]
    trg_mask = jnp.tril(jnp.ones((T, T), jnp.float32))[None, None, :, :]
    trg_mask = jnp.broadcast_to(trg_mask, (B, 1, T, T))
    src_mask = jnp.ones((B, 1, 1, S), jnp.float32)

    fwd = jax.jit(functools.partial(decoder_layer, n_heads=n_heads))
    out, attention = fwd(trg, enc_src, trg_mask, src_mask, params)
    jax.block_until_ready((out, attention))

    assert out.shape == (B, T, hid_dim)
    assert attention.shape == (B, n_heads, T, S)

    ref_out, ref_attn = _ref_decoder_layer(trg, enc_src, trg_mask, src_mask,
                                           params, n_heads)
    assert jnp.allclose(out, ref_out, atol=5e-2, rtol=5e-2)
    assert jnp.allclose(attention, ref_attn, atol=5e-2, rtol=5e-2)

    print("KERNEL_OK")
</pallas_src>

<mosaic_0001>
module attributes {stable_mosaic.version = 11 : i64} {
  func.func @_ffn_fused_kernel(%arg0: i32, %arg1: i32, %arg2: memref<16x32xf32, #tpu.memory_space<vmem>>, %arg3: memref<32x64xbf16, #tpu.memory_space<vmem>>, %arg4: memref<1x64xf32, #tpu.memory_space<vmem>>, %arg5: memref<64x32xbf16, #tpu.memory_space<vmem>>, %arg6: memref<1x32xf32, #tpu.memory_space<vmem>>, %arg7: memref<1x32xf32, #tpu.memory_space<vmem>>, %arg8: memref<1x32xf32, #tpu.memory_space<vmem>>, %arg9: memref<16x32xf32, #tpu.memory_space<vmem>>, %arg10: memref<16x32xf32, #tpu.memory_space<vmem>>) attributes {dimension_semantics = [#tpu.dimension_semantics<parallel>, #tpu.dimension_semantics<arbitrary>], iteration_bounds = array<i64: 1, 1>, scalar_prefetch = 0 : i64, scratch_operands = 1 : i64, tpu.core_type = #tpu.core_type<tc>, window_params = [{transform_indices = @transform_0, window_bounds = array<i64: 16, 32>}, {transform_indices = @transform_1, window_bounds = array<i64: 32, 64>}, {transform_indices = @transform_2, window_bounds = array<i64: 1, 64>}, {transform_indices = @transform_3, window_bounds = array<i64: 64, 32>}, {pipeline_mode = #tpu.pipeline_mode<synchronous>, transform_indices = @transform_4, window_bounds = array<i64: 1, 32>}, {pipeline_mode = #tpu.pipeline_mode<synchronous>, transform_indices = @transform_5, window_bounds = array<i64: 1, 32>}, {pipeline_mode = #tpu.pipeline_mode<synchronous>, transform_indices = @transform_6, window_bounds = array<i64: 1, 32>}, {transform_indices = @transform_7, window_bounds = array<i64: 16, 32>}]} {
    %c0_i32 = arith.constant 0 : i32
    %0 = arith.cmpi eq, %arg1, %c0_i32 : i32
    %1 = arith.extui %0 : i1 to i32
    %c0_i32_0 = arith.constant 0 : i32
    %2 = arith.cmpi ne, %1, %c0_i32_0 : i32
    scf.if %2 {
      %cst_16 = arith.constant 0.000000e+00 : f32
      %21 = vector.broadcast %cst_16 : f32 to vector<16x32xf32>
      %c0_17 = arith.constant 0 : index
      %c0_18 = arith.constant 0 : index
      %22 = vector.load %arg10[%c0_17, %c0_18] : memref<16x32xf32, #tpu.memory_space<vmem>>, vector<16x32xf32>
      tpu.vector_store %arg10[%c0_17, %c0_18], %21 {strides = array<i32>} : memref<16x32xf32, #tpu.memory_space<vmem>>, vector<16x32xf32>,
    } else {
    }
    %c0 = arith.constant 0 : index
    %c0_1 = arith.constant 0 : index
    %3 = vector.load %arg2[%c0, %c0_1] : memref<16x32xf32, #tpu.memory_space<vmem>>, vector<16x32xf32>
    %4 = arith.truncf %3 : vector<16x32xf32> to vector<16x32xbf16>
    %c0_2 = arith.constant 0 : index
    %c0_3 = arith.constant 0 : index
    %5 = vector.load %arg3[%c0_2, %c0_3] : memref<32x64xbf16, #tpu.memory_space<vmem>>, vector<32x64xbf16>
    %cst = arith.constant dense<0.000000e+00> : vector<16x64xf32>
    %6 = tpu.matmul %4, %5, %cst {dimension_numbers = #tpu.dot_dimension_numbers<[1], [0], [0], [1], [0, 0, 1, 1], [], []>} : vector<16x32xbf16>, vector<32x64xbf16>, vector<16x64xf32> -> vector<16x64xf32>
    %c0_4 = arith.constant 0 : index
    %c0_5 = arith.constant 0 : index
    %7 = vector.load %arg4[%c0_4, %c0_5] : memref<1x64xf32, #tpu.memory_space<vmem>>, vector<1x64xf32>
    %8 = vector.broadcast %7 : vector<1x64xf32> to vector<16x64xf32>
    %9 = arith.addf %6, %8 : vector<16x64xf32>
    %cst_6 = arith.constant 0.000000e+00 : f32
    %10 = vector.broadcast %cst_6 : f32 to vector<16x64xf32>
    %11 = arith.maximumf %9, %10 : vector<16x64xf32>
    %c0_7 = arith.constant 0 : index
    %c0_8 = arith.constant 0 : index
    %12 = vector.load %arg10[%c0_7, %c0_8] : memref<16x32xf32, #tpu.memory_space<vmem>>, vector<16x32xf32>
    %13 = arith.truncf %11 : vector<16x64xf32> to vector<16x64xbf16>
    %c0_9 = arith.constant 0 : index
    %c0_10 = arith.constant 0 : index
    %14 = vector.load %arg5[%c0_9, %c0_10] : memref<64x32xbf16, #tpu.memory_space<vmem>>, vector<64x32xbf16>
    %cst_11 = arith.constant dense<0.000000e+00> : vector<16x32xf32>
    %15 = tpu.matmul %13, %14, %cst_11 {dimension_numbers = #tpu.dot_dimension_numbers<[1], [0], [0], [1], [0, 0, 1, 1], [], []>} : vector<16x64xbf16>, vector<64x32xbf16>, vector<16x32xf32> -> vector<16x32xf32>
    %16 = arith.addf %12, %15 : vector<16x32xf32>
    %c0_12 = arith.constant 0 : index
    %c0_13 = arith.constant 0 : index
    %17 = vector.load %arg10[%c0_12, %c0_13] : memref<16x32xf32, #tpu.memory_space<vmem>>, vector<16x32xf32>
    tpu.vector_store %arg10[%c0_12, %c0_13], %16 {strides = array<i32>} : memref<16x32xf32, #tpu.memory_space<vmem>>, vector<16x32xf32>,
    %c0_i32_14 = arith.constant 0 : i32
    %18 = arith.cmpi eq, %arg1, %c0_i32_14 : i32
    %19 = arith.extui %18 : i1 to i32
    %c0_i32_15 = arith.constant 0 : i32
    %20 = arith.cmpi ne, %19, %c0_i32_15 : i32
    scf.if %20 {
      %c0_16 = arith.constant 0 : index
      %c0_17 = arith.constant 0 : index
      %21 = vector.load %arg10[%c0_16, %c0_17] : memref<16x32xf32, #tpu.memory_space<vmem>>, vector<16x32xf32>
      %22 = arith.addf %3, %21 : vector<16x32xf32>
      %c0_18 = arith.constant 0 : index
      %c0_19 = arith.constant 0 : index
      %23 = vector.load %arg6[%c0_18, %c0_19] : memref<1x32xf32, #tpu.memory_space<vmem>>, vector<1x32xf32>
      %24 = vector.broadcast %23 : vector<1x32xf32> to vector<16x32xf32>
      %25 = arith.addf %22, %24 : vector<16x32xf32>
      %cst_20 = arith.constant dense<0.000000e+00> : vector<16xf32>
      %26 = vector.multi_reduction <add>, %25, %cst_20 [1] : vector<16x32xf32> to vector<16xf32>
      %27 = vector.shape_cast %26 : vector<16xf32> to vector<16x1xf32>
      %cst_21 = arith.constant 3.200000e+01 : f32
      %28 = vector.broadcast %cst_21 : f32 to vector<16x1xf32>
      %29 = arith.divf %27, %28 : vector<16x1xf32>
      %30 = vector.broadcast %29 : vector<16x1xf32> to vector<16x32xf32>
      %31 = arith.subf %25, %30 : vector<16x32xf32>
      %32 = vector.broadcast %29 : vector<16x1xf32> to vector<16x32xf32>
      %33 = arith.subf %25, %32 : vector<16x32xf32>
      %34 = arith.mulf %31, %33 : vector<16x32xf32>
      %cst_22 = arith.constant dense<0.000000e+00> : vector<16xf32>
      %35 = vector.multi_reduction <add>, %34, %cst_22 [1] : vector<16x32xf32> to vector<16xf32>
      %36 = vector.shape_cast %35 : vector<16xf32> to vector<16x1xf32>
      %cst_23 = arith.constant 3.200000e+01 : f32
      %37 = vector.broadcast %cst_23 : f32 to vector<16x1xf32>
      %38 = arith.divf %36, %37 : vector<16x1xf32>
      %39 = vector.broadcast %29 : vector<16x1xf32> to vector<16x32xf32>
      %40 = arith.subf %25, %39 : vector<16x32xf32>
      %cst_24 = arith.constant 9.99999974E-6 : f32
      %41 = vector.broadcast %cst_24 : f32 to vector<16x1xf32>
      %42 = arith.addf %38, %41 : vector<16x1xf32>
      %43 = math.rsqrt %42 : vector<16x1xf32>
      %44 = vector.broadcast %43 : vector<16x1xf32> to vector<16x32xf32>
      %45 = arith.mulf %40, %44 : vector<16x32xf32>
      %c0_25 = arith.constant 0 : index
      %c0_26 = arith.constant 0 : index
      %46 = vector.load %arg7[%c0_25, %c0_26] : memref<1x32xf32, #tpu.memory_space<vmem>>, vector<1x32xf32>
      %47 = vector.broadcast %46 : vector<1x32xf32> to vector<16x32xf32>
      %48 = arith.mulf %45, %47 : vector<16x32xf32>
      %c0_27 = arith.constant 0 : index
      %c0_28 = arith.constant 0 : index
      %49 = vector.load %arg8[%c0_27, %c0_28] : memref<1x32xf32, #tpu.memory_space<vmem>>, vector<1x32xf32>
      %50 = vector.broadcast %49 : vector<1x32xf32> to vector<16x32xf32>
      %51 = arith.addf %48, %50 : vector<16x32xf32>
      %c0_29 = arith.constant 0 : index
      %c0_30 = arith.constant 0 : index
      %52 = vector.load %arg9[%c0_29, %c0_30] : memref<16x32xf32, #tpu.memory_space<vmem>>, vector<16x32xf32>
      tpu.vector_store %arg9[%c0_29, %c0_30], %51 {strides = array<i32>} : memref<16x32xf32, #tpu.memory_space<vmem>>, vector<16x32xf32>,
    } else {
    }
    return
  }
  func.func @transform_0(%arg0: i32, %arg1: i32) -> (i32, i32) {
    %c0_i32 = arith.constant 0 : i32
    %c0_i32_0 = arith.constant 0 : i32
    return %arg0, %c0_i32 : i32, i32
  }
  func.func @transform_1(%arg0: i32, %arg1: i32) -> (i32, i32) {
    %c0_i32 = arith.constant 0 : i32
    %c0_i32_0 = arith.constant 0 : i32
    return %c0_i32, %arg1 : i32, i32
  }
  func.func @transform_2(%arg0: i32, %arg1: i32) -> (i32, i32) {
    %c0_i32 = arith.constant 0 : i32
    %c0_i32_0 = arith.constant 0 : i32
    return %c0_i32, %arg1 : i32, i32
  }
  func.func @transform_3(%arg0: i32, %arg1: i32) -> (i32, i32) {
    %c0_i32 = arith.constant 0 : i32
    %c0_i32_0 = arith.constant 0 : i32
    return %arg1, %c0_i32 : i32, i32
  }
  func.func @transform_4(%arg0: i32, %arg1: i32) -> (i32, i32) {
    %c0_i32 = arith.constant 0 : i32
    %c0_i32_0 = arith.constant 0 : i32
    %c0_i32_1 = arith.constant 0 : i32
    return %c0_i32, %c0_i32_0 : i32, i32
  }
  func.func @transform_5(%arg0: i32, %arg1: i32) -> (i32, i32) {
    %c0_i32 = arith.constant 0 : i32
    %c0_i32_0 = arith.constant 0 : i32
    %c0_i32_1 = arith.constant 0 : i32
    return %c0_i32, %c0_i32_0 : i32, i32
  }
  func.func @transform_6(%arg0: i32, %arg1: i32) -> (i32, i32) {
    %c0_i32 = arith.constant 0 : i32
    %c0_i32_0 = arith.constant 0 : i32
    %c0_i32_1 = arith.constant 0 : i32
    return %c0_i32, %c0_i32_0 : i32, i32
  }
  func.func @transform_7(%arg0: i32, %arg1: i32) -> (i32, i32) {
    %c0_i32 = arith.constant 0 : i32
    %c0_i32_0 = arith.constant 0 : i32
    return %arg0, %c0_i32 : i32, i32
  }
}

module attributes {stable_mosaic.version = 11 : i64} {
  func.func @_mha_fused_kernel(%arg0: i32, %arg1: i32, %arg2: memref<1x8x32xf32, #tpu.memory_space<vmem>>, %arg3: memref<1x8x32xf32, #tpu.memory_space<vmem>>, %arg4: memref<1x1x8x8xf32, #tpu.memory_space<vmem>>, %arg5: memref<32x32xbf16, #tpu.memory_space<vmem>>, %arg6: memref<1x32xf32, #tpu.memory_space<vmem>>, %arg7: memref<32x64xbf16, #tpu.memory_space<vmem>>, %arg8: memref<1x64xf32, #tpu.memory_space<vmem>>, %arg9: memref<32x32xbf16, #tpu.memory_space<vmem>>, %arg10: memref<1x32xf32, #tpu.memory_space<vmem>>, %arg11: memref<1x32xf32, #tpu.memory_space<vmem>>, %arg12: memref<1x32xf32, #tpu.memory_space<vmem>>, %arg13: memref<1x8x32xf32, #tpu.memory_space<vmem>>) attributes {dimension_semantics = [#tpu.dimension_semantics<parallel>, #tpu.dimension_semantics<parallel>], iteration_bounds = array<i64: 2, 1>, scalar_prefetch = 0 : i64, scratch_operands = 0 : i64, tpu.core_type = #tpu.core_type<tc>, window_params = [{transform_indices = @transform_0, window_bounds = array<i64: 1, 8, 32>}, {transform_indices = @transform_1, window_bounds = array<i64: 1, 8, 32>}, {transform_indices = @transform_2, window_bounds = array<i64: 1, 1, 8, 8>}, {pipeline_mode = #tpu.pipeline_mode<synchronous>, transform_indices = @transform_3, window_bounds = array<i64: 32, 32>}, {pipeline_mode = #tpu.pipeline_mode<synchronous>, transform_indices = @transform_4, window_bounds = array<i64: 1, 32>}, {pipeline_mode = #tpu.pipeline_mode<synchronous>, transform_indices = @transform_5, window_bounds = array<i64: 32, 64>}, {pipeline_mode = #tpu.pipeline_mode<synchronous>, transform_indices = @transform_6, window_bounds = array<i64: 1, 64>}, {pipeline_mode = #tpu.pipeline_mode<synchronous>, transform_indices = @transform_7, window_bounds = array<i64: 32, 32>}, {pipeline_mode = #tpu.pipeline_mode<synchronous>, transform_indices = @transform_8, window_bounds = array<i64: 1, 32>}, {pipeline_mode = #tpu.pipeline_mode<synchronous>, transform_indices = @transform_9, window_bounds = array<i64: 1, 32>}, {pipeline_mode = #tpu.pipeline_mode<synchronous>, transform_indices = @transform_10, window_bounds = array<i64: 1, 32>}, {transform_indices = @transform_11, window_bounds = array<i64: 1, 8, 32>}]} {
    %c0 = arith.constant 0 : index
    %c0_0 = arith.constant 0 : index
    %c0_1 = arith.constant 0 : index
    %0 = vector.load %arg2[%c0, %c0_0, %c0_1] : memref<1x8x32xf32, #tpu.memory_space<vmem>>, vector<1x8x32xf32>
    %1 = vector.shape_cast %0 : vector<1x8x32xf32> to vector<8x32xf32>
    %c0_2 = arith.constant 0 : index
    %c0_3 = arith.constant 0 : index
    %c0_4 = arith.constant 0 : index
    %2 = vector.load %arg3[%c0_2, %c0_3, %c0_4] : memref<1x8x32xf32, #tpu.memory_space<vmem>>, vector<1x8x32xf32>
    %3 = vector.shape_cast %2 : vector<1x8x32xf32> to vector<8x32xf32>
    %4 = arith.truncf %1 : vector<8x32xf32> to vector<8x32xbf16>
    %c0_5 = arith.constant 0 : index
    %c0_6 = arith.constant 0 : index
    %5 = vector.load %arg5[%c0_5, %c0_6] : memref<32x32xbf16, #tpu.memory_space<vmem>>, vector<32x32xbf16>
    %cst = arith.constant dense<0.000000e+00> : vector<8x32xf32>
    %6 = tpu.matmul %4, %5, %cst {dimension_numbers = #tpu.dot_dimension_numbers<[1], [0], [0], [1], [0, 0, 1, 1], [], []>} : vector<8x32xbf16>, vector<32x32xbf16>, vector<8x32xf32> -> vector<8x32xf32>
    %c0_7 = arith.constant 0 : index
    %c0_8 = arith.constant 0 : index
    %7 = vector.load %arg6[%c0_7, %c0_8] : memref<1x32xf32, #tpu.memory_space<vmem>>, vector<1x32xf32>
    %8 = vector.broadcast %7 : vector<1x32xf32> to vector<8x32xf32>
    %9 = arith.addf %6, %8 : vector<8x32xf32>
    %10 = arith.truncf %3 : vector<8x32xf32> to vector<8x32xbf16>
    %c0_9 = arith.constant 0 : index
    %c0_10 = arith.constant 0 : index
    %11 = vector.load %arg7[%c0_9, %c0_10] : memref<32x64xbf16, #tpu.memory_space<vmem>>, vector<32x64xbf16>
    %cst_11 = arith.constant dense<0.000000e+00> : vector<8x64xf32>
    %12 = tpu.matmul %10, %11, %cst_11 {dimension_numbers = #tpu.dot_dimension_numbers<[1], [0], [0], [1], [0, 0, 1, 1], [], []>} : vector<8x32xbf16>, vector<32x64xbf16>, vector<8x64xf32> -> vector<8x64xf32>
    %c0_12 = arith.constant 0 : index
    %c0_13 = arith.constant 0 : index
    %13 = vector.load %arg8[%c0_12, %c0_13] : memref<1x64xf32, #tpu.memory_space<vmem>>, vector<1x64xf32>
    %14 = vector.broadcast %13 : vector<1x64xf32> to vector<8x64xf32>
    %15 = arith.addf %12, %14 : vector<8x64xf32>
    %16 = vector.extract_strided_slice %15 {offsets = [0, 0], sizes = [8, 32], strides = [1, 1]} : vector<8x64xf32> to vector<8x32xf32>
    %17 = vector.extract_strided_slice %15 {offsets = [0, 32], sizes = [8, 32], strides = [1, 1]} : vector<8x64xf32> to vector<8x32xf32>
    %c0_14 = arith.constant 0 : index
    %c0_15 = arith.constant 0 : index
    %c0_16 = arith.constant 0 : index
    %c0_17 = arith.constant 0 : index
    %18 = vector.load %arg4[%c0_14, %c0_15, %c0_16, %c0_17] : memref<1x1x8x8xf32, #tpu.memory_space<vmem>>, vector<1x1x8x8xf32>
    %19 = vector.shape_cast %18 : vector<1x1x8x8xf32> to vector<8x8xf32>
    %cst_18 = arith.constant 0.000000e+00 : f32
    %20 = vector.broadcast %cst_18 : f32 to vector<8x8xf32>
    %21 = arith.cmpf oeq, %19, %20 : vector<8x8xf32>
    %22 = arith.truncf %9 : vector<8x32xf32> to vector<8x32xbf16>
    %23 = arith.truncf %16 : vector<8x32xf32> to vector<8x32xbf16>
    %24 = arith.truncf %17 : vector<8x32xf32> to vector<8x32xbf16>
    %25 = vector.extract_strided_slice %22 {offsets = [0, 0], sizes = [8, 8], strides = [1, 1]} : vector<8x32xbf16> to vector<8x8xbf16>
    %26 = vector.extract_strided_slice %23 {offsets = [0, 0], sizes = [8, 8], strides = [1, 1]} : vector<8x32xbf16> to vector<8x8xbf16>
    %27 = vector.extract_strided_slice %24 {offsets = [0, 0], sizes = [8, 8], strides = [1, 1]} : vector<8x32xbf16> to vector<8x8xbf16>
    %cst_19 = arith.constant dense<0.000000e+00> : vector<8x8xf32>
    %28 = tpu.matmul %25, %26, %cst_19 {dimension_numbers = #tpu.dot_dimension_numbers<[1], [1], [0], [0], [0, 0, 1, 0], [], []>} : vector<8x8xbf16>, vector<8x8xbf16>, vector<8x8xf32> -> vector<8x8xf32>
    %cst_20 = arith.constant -1.000000e+10 : f32
    %29 = vector.broadcast %cst_20 : f32 to vector<8x8xf32>
    %30 = arith.select %21, %29, %28 : vector<8x8xi1>, vector<8x8xf32>
    %cst_21 = arith.constant dense<0xFF800000> : vector<8xf32>
    %31 = vector.multi_reduction <maximumf>, %30, %cst_21 [1] : vector<8x8xf32> to vector<8xf32>
    %32 = vector.shape_cast %31 : vector<8xf32> to vector<8x1xf32>
    %33 = vector.broadcast %32 : vector<8x1xf32> to vector<8x8xf32>
    %34 = arith.subf %30, %33 : vector<8x8xf32>
    %35 = math.exp %34 : vector<8x8xf32>
    %cst_22 = arith.constant dense<0.000000e+00> : vector<8xf32>
    %36 = vector.multi_reduction <add>, %35, %cst_22 [1] : vector<8x8xf32> to vector<8xf32>
    %37 = vector.shape_cast %36 : vector<8xf32> to vector<8x1xf32>
    %38 = tpu.reciprocal %37 {approx = true} : vector<8x1xf32> -> vector<8x1xf32>
    %39 = vector.broadcast %38 : vector<8x1xf32> to vector<8x8xf32>
    %40 = arith.mulf %35, %39 : vector<8x8xf32>
    %41 = arith.truncf %40 : vector<8x8xf32> to vector<8x8xbf16>
    %cst_23 = arith.constant dense<0.000000e+00> : vector<8x8xf32>
    %42 = tpu.matmul %41, %27, %cst_23 {dimension_numbers = #tpu.dot_dimension_numbers<[1], [0], [0], [1], [0, 0, 1, 1], [], []>} : vector<8x8xbf16>, vector<8x8xbf16>, vector<8x8xf32> -> vector<8x8xf32>
    %43 = vector.extract_strided_slice %22 {offsets = [0, 8], sizes = [8, 8], strides = [1, 1]} : vector<8x32xbf16> to vector<8x8xbf16>
    %44 = vector.extract_strided_slice %23 {offsets = [0, 8], sizes = [8, 8], strides = [1, 1]} : vector<8x32xbf16> to vector<8x8xbf16>
    %45 = vector.extract_strided_slice %24 {offsets = [0, 8], sizes = [8, 8], strides = [1, 1]} : vector<8x32xbf16> to vector<8x8xbf16>
    %cst_24 = arith.constant dense<0.000000e+00> : vector<8x8xf32>
    %46 = tpu.matmul %43, %44, %cst_24 {dimension_numbers = #tpu.dot_dimension_numbers<[1], [1], [0], [0], [0, 0, 1, 0], [], []>} : vector<8x8xbf16>, vector<8x8xbf16>, vector<8x8xf32> -> vector<8x8xf32>
    %cst_25 = arith.constant -1.000000e+10 : f32
    %47 = vector.broadcast %cst_25 : f32 to vector<8x8xf32>
    %48 = arith.select %21, %47, %46 : vector<8x8xi1>, vector<8x8xf32>
    %cst_26 = arith.constant dense<0xFF800000> : vector<8xf32>
    %49 = vector.multi_reduction <maximumf>, %48, %cst_26 [1] : vector<8x8xf32> to vector<8xf32>
    %50 = vector.shape_cast %49 : vector<8xf32> to vector<8x1xf32>
    %51 = vector.broadcast %50 : vector<8x1xf32> to vector<8x8xf32>
    %52 = arith.subf %48, %51 : vector<8x8xf32>
    %53 = math.exp %52 : vector<8x8xf32>
    %cst_27 = arith.constant dense<0.000000e+00> : vector<8xf32>
    %54 = vector.multi_reduction <add>, %53, %cst_27 [1] : vector<8x8xf32> to vector<8xf32>
    %55 = vector.shape_cast %54 : vector<8xf32> to vector<8x1xf32>
    %56 = tpu.reciprocal %55 {approx = true} : vector<8x1xf32> -> vector<8x1xf32>
    %57 = vector.broadcast %56 : vector<8x1xf32> to vector<8x8xf32>
    %58 = arith.mulf %53, %57 : vector<8x8xf32>
    %59 = arith.truncf %58 : vector<8x8xf32> to vector<8x8xbf16>
    %cst_28 = arith.constant dense<0.000000e+00> : vector<8x8xf32>
    %60 = tpu.matmul %59, %45, %cst_28 {dimension_numbers = #tpu.dot_dimension_numbers<[1], [0], [0], [1], [0, 0, 1, 1], [], []>} : vector<8x8xbf16>, vector<8x8xbf16>, vector<8x8xf32> -> vector<8x8xf32>
    %61 = vector.extract_strided_slice %22 {offsets = [0, 16], sizes = [8, 8], strides = [1, 1]} : vector<8x32xbf16> to vector<8x8xbf16>
    %62 = vector.extract_strided_slice %23 {offsets = [0, 16], sizes = [8, 8], strides = [1, 1]} : vector<8x32xbf16> to vector<8x8xbf16>
    %63 = vector.extract_strided_slice %24 {offsets = [0, 16], sizes = [8, 8], strides = [1, 1]} : vector<8x32xbf16> to vector<8x8xbf16>
    %cst_29 = arith.constant dense<0.000000e+00> : vector<8x8xf32>
    %64 = tpu.matmul %61, %62, %cst_29 {dimension_numbers = #tpu.dot_dimension_numbers<[1], [1], [0], [0], [0, 0, 1, 0], [], []>} : vector<8x8xbf16>, vector<8x8xbf16>, vector<8x8xf32> -> vector<8x8xf32>
    %cst_30 = arith.constant -1.000000e+10 : f32
    %65 = vector.broadcast %cst_30 : f32 to vector<8x8xf32>
    %66 = arith.select %21, %65, %64 : vector<8x8xi1>, vector<8x8xf32>
    %cst_31 = arith.constant dense<0xFF800000> : vector<8xf32>
    %67 = vector.multi_reduction <maximumf>, %66, %cst_31 [1] : vector<8x8xf32> to vector<8xf32>
    %68 = vector.shape_cast %67 : vector<8xf32> to vector<8x1xf32>
    %69 = vector.broadcast %68 : vector<8x1xf32> to vector<8x8xf32>
    %70 = arith.subf %66, %69 : vector<8x8xf32>
    %71 = math.exp %70 : vector<8x8xf32>
    %cst_32 = arith.constant dense<0.000000e+00> : vector<8xf32>
    %72 = vector.multi_reduction <add>, %71, %cst_32 [1] : vector<8x8xf32> to vector<8xf32>
    %73 = vector.shape_cast %72 : vector<8xf32> to vector<8x1xf32>
    %74 = tpu.reciprocal %73 {approx = true} : vector<8x1xf32> -> vector<8x1xf32>
    %75 = vector.broadcast %74 : vector<8x1xf32> to vector<8x8xf32>
    %76 = arith.mulf %71, %75 : vector<8x8xf32>
    %77 = arith.truncf %76 : vector<8x8xf32> to vector<8x8xbf16>
    %cst_33 = arith.constant dense<0.000000e+00> : vector<8x8xf32>
    %78 = tpu.matmul %77, %63, %cst_33 {dimension_numbers = #tpu.dot_dimension_numbers<[1], [0], [0], [1], [0, 0, 1, 1], [], []>} : vector<8x8xbf16>, vector<8x8xbf16>, vector<8x8xf32> -> vector<8x8xf32>
    %79 = vector.extract_strided_slice %22 {offsets = [0, 24], sizes = [8, 8], strides = [1, 1]} : vector<8x32xbf16> to vector<8x8xbf16>
    %80 = vector.extract_strided_slice %23 {offsets = [0, 24], sizes = [8, 8], strides = [1, 1]} : vector<8x32xbf16> to vector<8x8xbf16>
    %81 = vector.extract_strided_slice %24 {offsets = [0, 24], sizes = [8, 8], strides = [1, 1]} : vector<8x32xbf16> to vector<8x8xbf16>
    %cst_34 = arith.constant dense<0.000000e+00> : vector<8x8xf32>
    %82 = tpu.matmul %79, %80, %cst_34 {dimension_numbers = #tpu.dot_dimension_numbers<[1], [1], [0], [0], [0, 0, 1, 0], [], []>} : vector<8x8xbf16>, vector<8x8xbf16>, vector<8x8xf32> -> vector<8x8xf32>
    %cst_35 = arith.constant -1.000000e+10 : f32
    %83 = vector.broadcast %cst_35 : f32 to vector<8x8xf32>
    %84 = arith.select %21, %83, %82 : vector<8x8xi1>, vector<8x8xf32>
    %cst_36 = arith.constant dense<0xFF800000> : vector<8xf32>
    %85 = vector.multi_reduction <maximumf>, %84, %cst_36 [1] : vector<8x8xf32> to vector<8xf32>
    %86 = vector.shape_cast %85 : vector<8xf32> to vector<8x1xf32>
    %87 = vector.broadcast %86 : vector<8x1xf32> to vector<8x8xf32>
    %88 = arith.subf %84, %87 : vector<8x8xf32>
    %89 = math.exp %88 : vector<8x8xf32>
    %cst_37 = arith.constant dense<0.000000e+00> : vector<8xf32>
    %90 = vector.multi_reduction <add>, %89, %cst_37 [1] : vector<8x8xf32> to vector<8xf32>
    %91 = vector.shape_cast %90 : vector<8xf32> to vector<8x1xf32>
    %92 = tpu.reciprocal %91 {approx = true} : vector<8x1xf32> -> vector<8x1xf32>
    %93 = vector.broadcast %92 : vector<8x1xf32> to vector<8x8xf32>
    %94 = arith.mulf %89, %93 : vector<8x8xf32>
    %95 = arith.truncf %94 : vector<8x8xf32> to vector<8x8xbf16>
    %cst_38 = arith.constant dense<0.000000e+00> : vector<8x8xf32>
    %96 = tpu.matmul %95, %81, %cst_38 {dimension_numbers = #tpu.dot_dimension_numbers<[1], [0], [0], [1], [0, 0, 1, 1], [], []>} : vector<8x8xbf16>, vector<8x8xbf16>, vector<8x8xf32> -> vector<8x8xf32>
    %97 = tpu.concatenate %42, %60, %78, %96 in 1 : vector<8x8xf32>, vector<8x8xf32>, vector<8x8xf32>, vector<8x8xf32> -> vector<8x32xf32>
    %98 = arith.truncf %97 : vector<8x32xf32> to vector<8x32xbf16>
    %c0_39 = arith.constant 0 : index
    %c0_40 = arith.constant 0 : index
    %99 = vector.load %arg9[%c0_39, %c0_40] : memref<32x32xbf16, #tpu.memory_space<vmem>>, vector<32x32xbf16>
    %cst_41 = arith.constant dense<0.000000e+00> : vector<8x32xf32>
    %100 = tpu.matmul %98, %99, %cst_41 {dimension_numbers = #tpu.dot_dimension_numbers<[1], [0], [0], [1], [0, 0, 1, 1], [], []>} : vector<8x32xbf16>, vector<32x32xbf16>, vector<8x32xf32> -> vector<8x32xf32>
    %c0_42 = arith.constant 0 : index
    %c0_43 = arith.constant 0 : index
    %101 = vector.load %arg10[%c0_42, %c0_43] : memref<1x32xf32, #tpu.memory_space<vmem>>, vector<1x32xf32>
    %102 = vector.broadcast %101 : vector<1x32xf32> to vector<8x32xf32>
    %103 = arith.addf %100, %102 : vector<8x32xf32>
    %104 = arith.addf %1, %103 : vector<8x32xf32>
    %cst_44 = arith.constant dense<0.000000e+00> : vector<8xf32>
    %105 = vector.multi_reduction <add>, %104, %cst_44 [1] : vector<8x32xf32> to vector<8xf32>
    %106 = vector.shape_cast %105 : vector<8xf32> to vector<8x1xf32>
    %cst_45 = arith.constant 3.200000e+01 : f32
    %107 = vector.broadcast %cst_45 : f32 to vector<8x1xf32>
    %108 = arith.divf %106, %107 : vector<8x1xf32>
    %109 = vector.broadcast %108 : vector<8x1xf32> to vector<8x32xf32>
    %110 = arith.subf %104, %109 : vector<8x32xf32>
    %111 = vector.broadcast %108 : vector<8x1xf32> to vector<8x32xf32>
    %112 = arith.subf %104, %111 : vector<8x32xf32>
    %113 = arith.mulf %110, %112 : vector<8x32xf32>
    %cst_46 = arith.constant dense<0.000000e+00> : vector<8xf32>
    %114 = vector.multi_reduction <add>, %113, %cst_46 [1] : vector<8x32xf32> to vector<8xf32>
    %115 = vector.shape_cast %114 : vector<8xf32> to vector<8x1xf32>
    %cst_47 = arith.constant 3.200000e+01 : f32
    %116 = vector.broadcast %cst_47 : f32 to vector<8x1xf32>
    %117 = arith.divf %115, %116 : vector<8x1xf32>
    %118 = vector.broadcast %108 : vector<8x1xf32> to vector<8x32xf32>
    %119 = arith.subf %104, %118 : vector<8x32xf32>
    %cst_48 = arith.constant 9.99999974E-6 : f32
    %120 = vector.broadcast %cst_48 : f32 to vector<8x1xf32>
    %121 = arith.addf %117, %120 : vector<8x1xf32>
    %122 = math.rsqrt %121 : vector<8x1xf32>
    %123 = vector.broadcast %122 : vector<8x1xf32> to vector<8x32xf32>
    %124 = arith.mulf %119, %123 : vector<8x32xf32>
    %c0_49 = arith.constant 0 : index
    %c0_50 = arith.constant 0 : index
    %125 = vector.load %arg11[%c0_49, %c0_50] : memref<1x32xf32, #tpu.memory_space<vmem>>, vector<1x32xf32>
    %126 = vector.broadcast %125 : vector<1x32xf32> to vector<8x32xf32>
    %127 = arith.mulf %124, %126 : vector<8x32xf32>
    %c0_51 = arith.constant 0 : index
    %c0_52 = arith.constant 0 : index
    %128 = vector.load %arg12[%c0_51, %c0_52] : memref<1x32xf32, #tpu.memory_space<vmem>>, vector<1x32xf32>
    %129 = vector.broadcast %128 : vector<1x32xf32> to vector<8x32xf32>
    %130 = arith.addf %127, %129 : vector<8x32xf32>
    %c0_53 = arith.constant 0 : index
    %c0_54 = arith.constant 0 : index
    %c0_55 = arith.constant 0 : index
    %131 = vector.load %arg13[%c0_53, %c0_54, %c0_55] : memref<1x8x32xf32, #tpu.memory_space<vmem>>, vector<1x8x32xf32>
    %132 = vector.shape_cast %131 : vector<1x8x32xf32> to vector<8x32xf32>
    %133 = vector.shape_cast %130 : vector<8x32xf32> to vector<1x8x32xf32>
    tpu.vector_store %arg13[%c0_53, %c0_54, %c0_55], %133 {strides = array<i32>} : memref<1x8x32xf32, #tpu.memory_space<vmem>>, vector<1x8x32xf32>,
    return
  }
  func.func @transform_0(%arg0: i32, %arg1: i32) -> (i32, i32, i32) {
    %c0_i32 = arith.constant 0 : i32
    %c0_i32_0 = arith.constant 0 : i32
    return %arg0, %arg1, %c0_i32 : i32, i32, i32
  }
  func.func @transform_1(%arg0: i32, %arg1: i32) -> (i32, i32, i32) {
    %c0_i32 = arith.constant 0 : i32
    %c0_i32_0 = arith.constant 0 : i32
    %c0_i32_1 = arith.constant 0 : i32
    return %arg0, %c0_i32, %c0_i32_0 : i32, i32, i32
  }
  func.func @transform_2(%arg0: i32, %arg1: i32) -> (i32, i32, i32, i32) {
    %c0_i32 = arith.constant 0 : i32
    %c0_i32_0 = arith.constant 0 : i32
    %c0_i32_1 = arith.constant 0 : i32
    return %arg0, %c0_i32, %arg1, %c0_i32_0 : i32, i32, i32, i32
  }
  func.func @transform_3(%arg0: i32, %arg1: i32) -> (i32, i32) {
    %c0_i32 = arith.constant 0 : i32
    %c0_i32_0 = arith.constant 0 : i32
    %c0_i32_1 = arith.constant 0 : i32
    return %c0_i32, %c0_i32_0 : i32, i32
  }
  func.func @transform_4(%arg0: i32, %arg1: i32) -> (i32, i32) {
    %c0_i32 = arith.constant 0 : i32
    %c0_i32_0 = arith.constant 0 : i32
    %c0_i32_1 = arith.constant 0 : i32
    return %c0_i32, %c0_i32_0 : i32, i32
  }
  func.func @transform_5(%arg0: i32, %arg1: i32) -> (i32, i32) {
    %c0_i32 = arith.constant 0 : i32
    %c0_i32_0 = arith.constant 0 : i32
    %c0_i32_1 = arith.constant 0 : i32
    return %c0_i32, %c0_i32_0 : i32, i32
  }
  func.func @transform_6(%arg0: i32, %arg1: i32) -> (i32, i32) {
    %c0_i32 = arith.constant 0 : i32
    %c0_i32_0 = arith.constant 0 : i32
    %c0_i32_1 = arith.constant 0 : i32
    return %c0_i32, %c0_i32_0 : i32, i32
  }
  func.func @transform_7(%arg0: i32, %arg1: i32) -> (i32, i32) {
    %c0_i32 = arith.constant 0 : i32
    %c0_i32_0 = arith.constant 0 : i32
    %c0_i32_1 = arith.constant 0 : i32
    return %c0_i32, %c0_i32_0 : i32, i32
  }
  func.func @transform_8(%arg0: i32, %arg1: i32) -> (i32, i32) {
    %c0_i32 = arith.constant 0 : i32
    %c0_i32_0 = arith.constant 0 : i32
    %c0_i32_1 = arith.constant 0 : i32
    return %c0_i32, %c0_i32_0 : i32, i32
  }
  func.func @transform_9(%arg0: i32, %arg1: i32) -> (i32, i32) {
    %c0_i32 = arith.constant 0 : i32
    %c0_i32_0 = arith.constant 0 : i32
    %c0_i32_1 = arith.constant 0 : i32
    return %c0_i32, %c0_i32_0 : i32, i32
  }
  func.func @transform_10(%arg0: i32, %arg1: i32) -> (i32, i32) {
    %c0_i32 = arith.constant 0 : i32
    %c0_i32_0 = arith.constant 0 : i32
    %c0_i32_1 = arith.constant 0 : i32
    return %c0_i32, %c0_i32_0 : i32, i32
  }
  func.func @transform_11(%arg0: i32, %arg1: i32) -> (i32, i32, i32) {
    %c0_i32 = arith.constant 0 : i32
    %c0_i32_0 = arith.constant 0 : i32
    return %arg0, %arg1, %c0_i32 : i32, i32, i32
  }
}

module attributes {stable_mosaic.version = 11 : i64} {
  func.func @_mha_fused_kernel(%arg0: i32, %arg1: i32, %arg2: memref<1x8x32xf32, #tpu.memory_space<vmem>>, %arg3: memref<1x8x32xf32, #tpu.memory_space<vmem>>, %arg4: memref<1x1x1x8xf32, #tpu.memory_space<vmem>>, %arg5: memref<32x32xbf16, #tpu.memory_space<vmem>>, %arg6: memref<1x32xf32, #tpu.memory_space<vmem>>, %arg7: memref<32x64xbf16, #tpu.memory_space<vmem>>, %arg8: memref<1x64xf32, #tpu.memory_space<vmem>>, %arg9: memref<32x32xbf16, #tpu.memory_space<vmem>>, %arg10: memref<1x32xf32, #tpu.memory_space<vmem>>, %arg11: memref<1x32xf32, #tpu.memory_space<vmem>>, %arg12: memref<1x32xf32, #tpu.memory_space<vmem>>, %arg13: memref<1x8x32xf32, #tpu.memory_space<vmem>>, %arg14: memref<1x4x8x8xf32, #tpu.memory_space<vmem>>) attributes {dimension_semantics = [#tpu.dimension_semantics<parallel>, #tpu.dimension_semantics<parallel>], iteration_bounds = array<i64: 2, 1>, scalar_prefetch = 0 : i64, scratch_operands = 0 : i64, tpu.core_type = #tpu.core_type<tc>, window_params = [{transform_indices = @transform_0, window_bounds = array<i64: 1, 8, 32>}, {transform_indices = @transform_1, window_bounds = array<i64: 1, 8, 32>}, {transform_indices = @transform_2, window_bounds = array<i64: 1, 1, 1, 8>}, {pipeline_mode = #tpu.pipeline_mode<synchronous>, transform_indices = @transform_3, window_bounds = array<i64: 32, 32>}, {pipeline_mode = #tpu.pipeline_mode<synchronous>, transform_indices = @transform_4, window_bounds = array<i64: 1, 32>}, {pipeline_mode = #tpu.pipeline_mode<synchronous>, transform_indices = @transform_5, window_bounds = array<i64: 32, 64>}, {pipeline_mode = #tpu.pipeline_mode<synchronous>, transform_indices = @transform_6, window_bounds = array<i64: 1, 64>}, {pipeline_mode = #tpu.pipeline_mode<synchronous>, transform_indices = @transform_7, window_bounds = array<i64: 32, 32>}, {pipeline_mode = #tpu.pipeline_mode<synchronous>, transform_indices = @transform_8, window_bounds = array<i64: 1, 32>}, {pipeline_mode = #tpu.pipeline_mode<synchronous>, transform_indices = @transform_9, window_bounds = array<i64: 1, 32>}, {pipeline_mode = #tpu.pipeline_mode<synchronous>, transform_indices = @transform_10, window_bounds = array<i64: 1, 32>}, {transform_indices = @transform_11, window_bounds = array<i64: 1, 8, 32>}, {transform_indices = @transform_12, window_bounds = array<i64: 1, 4, 8, 8>}]} {
    %c0 = arith.constant 0 : index
    %c0_0 = arith.constant 0 : index
    %c0_1 = arith.constant 0 : index
    %0 = vector.load %arg2[%c0, %c0_0, %c0_1] : memref<1x8x32xf32, #tpu.memory_space<vmem>>, vector<1x8x32xf32>
    %1 = vector.shape_cast %0 : vector<1x8x32xf32> to vector<8x32xf32>
    %c0_2 = arith.constant 0 : index
    %c0_3 = arith.constant 0 : index
    %c0_4 = arith.constant 0 : index
    %2 = vector.load %arg3[%c0_2, %c0_3, %c0_4] : memref<1x8x32xf32, #tpu.memory_space<vmem>>, vector<1x8x32xf32>
    %3 = vector.shape_cast %2 : vector<1x8x32xf32> to vector<8x32xf32>
    %4 = arith.truncf %1 : vector<8x32xf32> to vector<8x32xbf16>
    %c0_5 = arith.constant 0 : index
    %c0_6 = arith.constant 0 : index
    %5 = vector.load %arg5[%c0_5, %c0_6] : memref<32x32xbf16, #tpu.memory_space<vmem>>, vector<32x32xbf16>
    %cst = arith.constant dense<0.000000e+00> : vector<8x32xf32>
    %6 = tpu.matmul %4, %5, %cst {dimension_numbers = #tpu.dot_dimension_numbers<[1], [0], [0], [1], [0, 0, 1, 1], [], []>} : vector<8x32xbf16>, vector<32x32xbf16>, vector<8x32xf32> -> vector<8x32xf32>
    %c0_7 = arith.constant 0 : index
    %c0_8 = arith.constant 0 : index
    %7 = vector.load %arg6[%c0_7, %c0_8] : memref<1x32xf32, #tpu.memory_space<vmem>>, vector<1x32xf32>
    %8 = vector.broadcast %7 : vector<1x32xf32> to vector<8x32xf32>
    %9 = arith.addf %6, %8 : vector<8x32xf32>
    %10 = arith.truncf %3 : vector<8x32xf32> to vector<8x32xbf16>
    %c0_9 = arith.constant 0 : index
    %c0_10 = arith.constant 0 : index
    %11 = vector.load %arg7[%c0_9, %c0_10] : memref<32x64xbf16, #tpu.memory_space<vmem>>, vector<32x64xbf16>
    %cst_11 = arith.constant dense<0.000000e+00> : vector<8x64xf32>
    %12 = tpu.matmul %10, %11, %cst_11 {dimension_numbers = #tpu.dot_dimension_numbers<[1], [0], [0], [1], [0, 0, 1, 1], [], []>} : vector<8x32xbf16>, vector<32x64xbf16>, vector<8x64xf32> -> vector<8x64xf32>
    %c0_12 = arith.constant 0 : index
    %c0_13 = arith.constant 0 : index
    %13 = vector.load %arg8[%c0_12, %c0_13] : memref<1x64xf32, #tpu.memory_space<vmem>>, vector<1x64xf32>
    %14 = vector.broadcast %13 : vector<1x64xf32> to vector<8x64xf32>
    %15 = arith.addf %12, %14 : vector<8x64xf32>
    %16 = vector.extract_strided_slice %15 {offsets = [0, 0], sizes = [8, 32], strides = [1, 1]} : vector<8x64xf32> to vector<8x32xf32>
    %17 = vector.extract_strided_slice %15 {offsets = [0, 32], sizes = [8, 32], strides = [1, 1]} : vector<8x64xf32> to vector<8x32xf32>
    %c0_14 = arith.constant 0 : index
    %c0_15 = arith.constant 0 : index
    %c0_16 = arith.constant 0 : index
    %c0_17 = arith.constant 0 : index
    %18 = vector.load %arg4[%c0_14, %c0_15, %c0_16, %c0_17] : memref<1x1x1x8xf32, #tpu.memory_space<vmem>>, vector<1x1x1x8xf32>
    %19 = vector.shape_cast %18 : vector<1x1x1x8xf32> to vector<1x8xf32>
    %cst_18 = arith.constant 0.000000e+00 : f32
    %20 = vector.broadcast %cst_18 : f32 to vector<1x8xf32>
    %21 = arith.cmpf oeq, %19, %20 : vector<1x8xf32>
    %22 = vector.shape_cast %21 : vector<1x8xi1> to vector<1x8xi1>
    %23 = vector.broadcast %22 : vector<1x8xi1> to vector<8x8xi1>
    %24 = arith.truncf %9 : vector<8x32xf32> to vector<8x32xbf16>
    %25 = arith.truncf %16 : vector<8x32xf32> to vector<8x32xbf16>
    %26 = arith.truncf %17 : vector<8x32xf32> to vector<8x32xbf16>
    %27 = vector.extract_strided_slice %24 {offsets = [0, 0], sizes = [8, 8], strides = [1, 1]} : vector<8x32xbf16> to vector<8x8xbf16>
    %28 = vector.extract_strided_slice %25 {offsets = [0, 0], sizes = [8, 8], strides = [1, 1]} : vector<8x32xbf16> to vector<8x8xbf16>
    %29 = vector.extract_strided_slice %26 {offsets = [0, 0], sizes = [8, 8], strides = [1, 1]} : vector<8x32xbf16> to vector<8x8xbf16>
    %cst_19 = arith.constant dense<0.000000e+00> : vector<8x8xf32>
    %30 = tpu.matmul %27, %28, %cst_19 {dimension_numbers = #tpu.dot_dimension_numbers<[1], [1], [0], [0], [0, 0, 1, 0], [], []>} : vector<8x8xbf16>, vector<8x8xbf16>, vector<8x8xf32> -> vector<8x8xf32>
    %cst_20 = arith.constant -1.000000e+10 : f32
    %31 = vector.broadcast %cst_20 : f32 to vector<8x8xf32>
    %32 = arith.select %23, %31, %30 : vector<8x8xi1>, vector<8x8xf32>
    %cst_21 = arith.constant dense<0xFF800000> : vector<8xf32>
    %33 = vector.multi_reduction <maximumf>, %32, %cst_21 [1] : vector<8x8xf32> to vector<8xf32>
    %34 = vector.shape_cast %33 : vector<8xf32> to vector<8x1xf32>
    %35 = vector.broadcast %34 : vector<8x1xf32> to vector<8x8xf32>
    %36 = arith.subf %32, %35 : vector<8x8xf32>
    %37 = math.exp %36 : vector<8x8xf32>
    %cst_22 = arith.constant dense<0.000000e+00> : vector<8xf32>
    %38 = vector.multi_reduction <add>, %37, %cst_22 [1] : vector<8x8xf32> to vector<8xf32>
    %39 = vector.shape_cast %38 : vector<8xf32> to vector<8x1xf32>
    %40 = tpu.reciprocal %39 {approx = true} : vector<8x1xf32> -> vector<8x1xf32>
    %41 = vector.broadcast %40 : vector<8x1xf32> to vector<8x8xf32>
    %42 = arith.mulf %37, %41 : vector<8x8xf32>
    %c0_23 = arith.constant 0 : index
    %c0_24 = arith.constant 0 : index
    %c0_25 = arith.constant 0 : index
    %c0_26 = arith.constant 0 : index
    %43 = vector.load %arg14[%c0_23, %c0_24, %c0_25, %c0_26] : memref<1x4x8x8xf32, #tpu.memory_space<vmem>>, vector<1x1x8x8xf32>
    %44 = vector.shape_cast %43 : vector<1x1x8x8xf32> to vector<8x8xf32>
    %45 = vector.shape_cast %42 : vector<8x8xf32> to vector<1x1x8x8xf32>
    tpu.vector_store %arg14[%c0_23, %c0_24, %c0_25, %c0_26], %45 {strides = array<i32>} : memref<1x4x8x8xf32, #tpu.memory_space<vmem>>, vector<1x1x8x8xf32>,
    %46 = arith.truncf %42 : vector<8x8xf32> to vector<8x8xbf16>
    %cst_27 = arith.constant dense<0.000000e+00> : vector<8x8xf32>
    %47 = tpu.matmul %46, %29, %cst_27 {dimension_numbers = #tpu.dot_dimension_numbers<[1], [0], [0], [1], [0, 0, 1, 1], [], []>} : vector<8x8xbf16>, vector<8x8xbf16>, vector<8x8xf32> -> vector<8x8xf32>
    %48 = vector.extract_strided_slice %24 {offsets = [0, 8], sizes = [8, 8], strides = [1, 1]} : vector<8x32xbf16> to vector<8x8xbf16>
    %49 = vector.extract_strided_slice %25 {offsets = [0, 8], sizes = [8, 8], strides = [1, 1]} : vector<8x32xbf16> to vector<8x8xbf16>
    %50 = vector.extract_strided_slice %26 {offsets = [0, 8], sizes = [8, 8], strides = [1, 1]} : vector<8x32xbf16> to vector<8x8xbf16>
    %cst_28 = arith.constant dense<0.000000e+00> : vector<8x8xf32>
    %51 = tpu.matmul %48, %49, %cst_28 {dimension_numbers = #tpu.dot_dimension_numbers<[1], [1], [0], [0], [0, 0, 1, 0], [], []>} : vector<8x8xbf16>, vector<8x8xbf16>, vector<8x8xf32> -> vector<8x8xf32>
    %cst_29 = arith.constant -1.000000e+10 : f32
    %52 = vector.broadcast %cst_29 : f32 to vector<8x8xf32>
    %53 = arith.select %23, %52, %51 : vector<8x8xi1>, vector<8x8xf32>
    %cst_30 = arith.constant dense<0xFF800000> : vector<8xf32>
    %54 = vector.multi_reduction <maximumf>, %53, %cst_30 [1] : vector<8x8xf32> to vector<8xf32>
    %55 = vector.shape_cast %54 : vector<8xf32> to vector<8x1xf32>
    %56 = vector.broadcast %55 : vector<8x1xf32> to vector<8x8xf32>
    %57 = arith.subf %53, %56 : vector<8x8xf32>
    %58 = math.exp %57 : vector<8x8xf32>
    %cst_31 = arith.constant dense<0.000000e+00> : vector<8xf32>
    %59 = vector.multi_reduction <add>, %58, %cst_31 [1] : vector<8x8xf32> to vector<8xf32>
    %60 = vector.shape_cast %59 : vector<8xf32> to vector<8x1xf32>
    %61 = tpu.reciprocal %60 {approx = true} : vector<8x1xf32> -> vector<8x1xf32>
    %62 = vector.broadcast %61 : vector<8x1xf32> to vector<8x8xf32>
    %63 = arith.mulf %58, %62 : vector<8x8xf32>
    %c0_32 = arith.constant 0 : index
    %c1 = arith.constant 1 : index
    %c0_33 = arith.constant 0 : index
    %c0_34 = arith.constant 0 : index
    %64 = vector.load %arg14[%c0_32, %c1, %c0_33, %c0_34] : memref<1x4x8x8xf32, #tpu.memory_space<vmem>>, vector<1x1x8x8xf32>
    %65 = vector.shape_cast %64 : vector<1x1x8x8xf32> to vector<8x8xf32>
    %66 = vector.shape_cast %63 : vector<8x8xf32> to vector<1x1x8x8xf32>
    tpu.vector_store %arg14[%c0_32, %c1, %c0_33, %c0_34], %66 {strides = array<i32>} : memref<1x4x8x8xf32, #tpu.memory_space<vmem>>, vector<1x1x8x8xf32>,
    %67 = arith.truncf %63 : vector<8x8xf32> to vector<8x8xbf16>
    %cst_35 = arith.constant dense<0.000000e+00> : vector<8x8xf32>
    %68 = tpu.matmul %67, %50, %cst_35 {dimension_numbers = #tpu.dot_dimension_numbers<[1], [0], [0], [1], [0, 0, 1, 1], [], []>} : vector<8x8xbf16>, vector<8x8xbf16>, vector<8x8xf32> -> vector<8x8xf32>
    %69 = vector.extract_strided_slice %24 {offsets = [0, 16], sizes = [8, 8], strides = [1, 1]} : vector<8x32xbf16> to vector<8x8xbf16>
    %70 = vector.extract_strided_slice %25 {offsets = [0, 16], sizes = [8, 8], strides = [1, 1]} : vector<8x32xbf16> to vector<8x8xbf16>
    %71 = vector.extract_strided_slice %26 {offsets = [0, 16], sizes = [8, 8], strides = [1, 1]} : vector<8x32xbf16> to vector<8x8xbf16>
    %cst_36 = arith.constant dense<0.000000e+00> : vector<8x8xf32>
    %72 = tpu.matmul %69, %70, %cst_36 {dimension_numbers = #tpu.dot_dimension_numbers<[1], [1], [0], [0], [0, 0, 1, 0], [], []>} : vector<8x8xbf16>, vector<8x8xbf16>, vector<8x8xf32> -> vector<8x8xf32>
    %cst_37 = arith.constant -1.000000e+10 : f32
    %73 = vector.broadcast %cst_37 : f32 to vector<8x8xf32>
    %74 = arith.select %23, %73, %72 : vector<8x8xi1>, vector<8x8xf32>
    %cst_38 = arith.constant dense<0xFF800000> : vector<8xf32>
    %75 = vector.multi_reduction <maximumf>, %74, %cst_38 [1] : vector<8x8xf32> to vector<8xf32>
    %76 = vector.shape_cast %75 : vector<8xf32> to vector<8x1xf32>
    %77 = vector.broadcast %76 : vector<8x1xf32> to vector<8x8xf32>
    %78 = arith.subf %74, %77 : vector<8x8xf32>
    %79 = math.exp %78 : vector<8x8xf32>
    %cst_39 = arith.constant dense<0.000000e+00> : vector<8xf32>
    %80 = vector.multi_reduction <add>, %79, %cst_39 [1] : vector<8x8xf32> to vector<8xf32>
    %81 = vector.shape_cast %80 : vector<8xf32> to vector<8x1xf32>
    %82 = tpu.reciprocal %81 {approx = true} : vector<8x1xf32> -> vector<8x1xf32>
    %83 = vector.broadcast %82 : vector<8x1xf32> to vector<8x8xf32>
    %84 = arith.mulf %79, %83 : vector<8x8xf32>
    %c0_40 = arith.constant 0 : index
    %c2 = arith.constant 2 : index
    %c0_41 = arith.constant 0 : index
    %c0_42 = arith.constant 0 : index
    %85 = vector.load %arg14[%c0_40, %c2, %c0_41, %c0_42] : memref<1x4x8x8xf32, #tpu.memory_space<vmem>>, vector<1x1x8x8xf32>
    %86 = vector.shape_cast %85 : vector<1x1x8x8xf32> to vector<8x8xf32>
    %87 = vector.shape_cast %84 : vector<8x8xf32> to vector<1x1x8x8xf32>
    tpu.vector_store %arg14[%c0_40, %c2, %c0_41, %c0_42], %87 {strides = array<i32>} : memref<1x4x8x8xf32, #tpu.memory_space<vmem>>, vector<1x1x8x8xf32>,
    %88 = arith.truncf %84 : vector<8x8xf32> to vector<8x8xbf16>
    %cst_43 = arith.constant dense<0.000000e+00> : vector<8x8xf32>
    %89 = tpu.matmul %88, %71, %cst_43 {dimension_numbers = #tpu.dot_dimension_numbers<[1], [0], [0], [1], [0, 0, 1, 1], [], []>} : vector<8x8xbf16>, vector<8x8xbf16>, vector<8x8xf32> -> vector<8x8xf32>
    %90 = vector.extract_strided_slice %24 {offsets = [0, 24], sizes = [8, 8], strides = [1, 1]} : vector<8x32xbf16> to vector<8x8xbf16>
    %91 = vector.extract_strided_slice %25 {offsets = [0, 24], sizes = [8, 8], strides = [1, 1]} : vector<8x32xbf16> to vector<8x8xbf16>
    %92 = vector.extract_strided_slice %26 {offsets = [0, 24], sizes = [8, 8], strides = [1, 1]} : vector<8x32xbf16> to vector<8x8xbf16>
    %cst_44 = arith.constant dense<0.000000e+00> : vector<8x8xf32>
    %93 = tpu.matmul %90, %91, %cst_44 {dimension_numbers = #tpu.dot_dimension_numbers<[1], [1], [0], [0], [0, 0, 1, 0], [], []>} : vector<8x8xbf16>, vector<8x8xbf16>, vector<8x8xf32> -> vector<8x8xf32>
    %cst_45 = arith.constant -1.000000e+10 : f32
    %94 = vector.broadcast %cst_45 : f32 to vector<8x8xf32>
    %95 = arith.select %23, %94, %93 : vector<8x8xi1>, vector<8x8xf32>
    %cst_46 = arith.constant dense<0xFF800000> : vector<8xf32>
    %96 = vector.multi_reduction <maximumf>, %95, %cst_46 [1] : vector<8x8xf32> to vector<8xf32>
    %97 = vector.shape_cast %96 : vector<8xf32> to vector<8x1xf32>
    %98 = vector.broadcast %97 : vector<8x1xf32> to vector<8x8xf32>
    %99 = arith.subf %95, %98 : vector<8x8xf32>
    %100 = math.exp %99 : vector<8x8xf32>
    %cst_47 = arith.constant dense<0.000000e+00> : vector<8xf32>
    %101 = vector.multi_reduction <add>, %100, %cst_47 [1] : vector<8x8xf32> to vector<8xf32>
    %102 = vector.shape_cast %101 : vector<8xf32> to vector<8x1xf32>
    %103 = tpu.reciprocal %102 {approx = true} : vector<8x1xf32> -> vector<8x1xf32>
    %104 = vector.broadcast %103 : vector<8x1xf32> to vector<8x8xf32>
    %105 = arith.mulf %100, %104 : vector<8x8xf32>
    %c0_48 = arith.constant 0 : index
    %c3 = arith.constant 3 : index
    %c0_49 = arith.constant 0 : index
    %c0_50 = arith.constant 0 : index
    %106 = vector.load %arg14[%c0_48, %c3, %c0_49, %c0_50] : memref<1x4x8x8xf32, #tpu.memory_space<vmem>>, vector<1x1x8x8xf32>
    %107 = vector.shape_cast %106 : vector<1x1x8x8xf32> to vector<8x8xf32>
    %108 = vector.shape_cast %105 : vector<8x8xf32> to vector<1x1x8x8xf32>
    tpu.vector_store %arg14[%c0_48, %c3, %c0_49, %c0_50], %108 {strides = array<i32>} : memref<1x4x8x8xf32, #tpu.memory_space<vmem>>, vector<1x1x8x8xf32>,
    %109 = arith.truncf %105 : vector<8x8xf32> to vector<8x8xbf16>
    %cst_51 = arith.constant dense<0.000000e+00> : vector<8x8xf32>
    %110 = tpu.matmul %109, %92, %cst_51 {dimension_numbers = #tpu.dot_dimension_numbers<[1], [0], [0], [1], [0, 0, 1, 1], [], []>} : vector<8x8xbf16>, vector<8x8xbf16>, vector<8x8xf32> -> vector<8x8xf32>
    %111 = tpu.concatenate %47, %68, %89, %110 in 1 : vector<8x8xf32>, vector<8x8xf32>, vector<8x8xf32>, vector<8x8xf32> -> vector<8x32xf32>
    %112 = arith.truncf %111 : vector<8x32xf32> to vector<8x32xbf16>
    %c0_52 = arith.constant 0 : index
    %c0_53 = arith.constant 0 : index
    %113 = vector.load %arg9[%c0_52, %c0_53] : memref<32x32xbf16, #tpu.memory_space<vmem>>, vector<32x32xbf16>
    %cst_54 = arith.constant dense<0.000000e+00> : vector<8x32xf32>
    %114 = tpu.matmul %112, %113, %cst_54 {dimension_numbers = #tpu.dot_dimension_numbers<[1], [0], [0], [1], [0, 0, 1, 1], [], []>} : vector<8x32xbf16>, vector<32x32xbf16>, vector<8x32xf32> -> vector<8x32xf32>
    %c0_55 = arith.constant 0 : index
    %c0_56 = arith.constant 0 : index
    %115 = vector.load %arg10[%c0_55, %c0_56] : memref<1x32xf32, #tpu.memory_space<vmem>>, vector<1x32xf32>
    %116 = vector.broadcast %115 : vector<1x32xf32> to vector<8x32xf32>
    %117 = arith.addf %114, %116 : vector<8x32xf32>
    %118 = arith.addf %1, %117 : vector<8x32xf32>
    %cst_57 = arith.constant dense<0.000000e+00> : vector<8xf32>
    %119 = vector.multi_reduction <add>, %118, %cst_57 [1] : vector<8x32xf32> to vector<8xf32>
    %120 = vector.shape_cast %119 : vector<8xf32> to vector<8x1xf32>
    %cst_58 = arith.constant 3.200000e+01 : f32
    %121 = vector.broadcast %cst_58 : f32 to vector<8x1xf32>
    %122 = arith.divf %120, %121 : vector<8x1xf32>
    %123 = vector.broadcast %122 : vector<8x1xf32> to vector<8x32xf32>
    %124 = arith.subf %118, %123 : vector<8x32xf32>
    %125 = vector.broadcast %122 : vector<8x1xf32> to vector<8x32xf32>
    %126 = arith.subf %118, %125 : vector<8x32xf32>
    %127 = arith.mulf %124, %126 : vector<8x32xf32>
    %cst_59 = arith.constant dense<0.000000e+00> : vector<8xf32>
    %128 = vector.multi_reduction <add>, %127, %cst_59 [1] : vector<8x32xf32> to vector<8xf32>
    %129 = vector.shape_cast %128 : vector<8xf32> to vector<8x1xf32>
    %cst_60 = arith.constant 3.200000e+01 : f32
    %130 = vector.broadcast %cst_60 : f32 to vector<8x1xf32>
    %131 = arith.divf %129, %130 : vector<8x1xf32>
    %132 = vector.broadcast %122 : vector<8x1xf32> to vector<8x32xf32>
    %133 = arith.subf %118, %132 : vector<8x32xf32>
    %cst_61 = arith.constant 9.99999974E-6 : f32
    %134 = vector.broadcast %cst_61 : f32 to vector<8x1xf32>
    %135 = arith.addf %131, %134 : vector<8x1xf32>
    %136 = math.rsqrt %135 : vector<8x1xf32>
    %137 = vector.broadcast %136 : vector<8x1xf32> to vector<8x32xf32>
    %138 = arith.mulf %133, %137 : vector<8x32xf32>
    %c0_62 = arith.constant 0 : index
    %c0_63 = arith.constant 0 : index
    %139 = vector.load %arg11[%c0_62, %c0_63] : memref<1x32xf32, #tpu.memory_space<vmem>>, vector<1x32xf32>
    %140 = vector.broadcast %139 : vector<1x32xf32> to vector<8x32xf32>
    %141 = arith.mulf %138, %140 : vector<8x32xf32>
    %c0_64 = arith.constant 0 : index
    %c0_65 = arith.constant 0 : index
    %142 = vector.load %arg12[%c0_64, %c0_65] : memref<1x32xf32, #tpu.memory_space<vmem>>, vector<1x32xf32>
    %143 = vector.broadcast %142 : vector<1x32xf32> to vector<8x32xf32>
    %144 = arith.addf %141, %143 : vector<8x32xf32>
    %c0_66 = arith.constant 0 : index
    %c0_67 = arith.constant 0 : index
    %c0_68 = arith.constant 0 : index
    %145 = vector.load %arg13[%c0_66, %c0_67, %c0_68] : memref<1x8x32xf32, #tpu.memory_space<vmem>>, vector<1x8x32xf32>
    %146 = vector.shape_cast %145 : vector<1x8x32xf32> to vector<8x32xf32>
    %147 = vector.shape_cast %144 : vector<8x32xf32> to vector<1x8x32xf32>
    tpu.vector_store %arg13[%c0_66, %c0_67, %c0_68], %147 {strides = array<i32>} : memref<1x8x32xf32, #tpu.memory_space<vmem>>, vector<1x8x32xf32>,
    return
  }
  func.func @transform_0(%arg0: i32, %arg1: i32) -> (i32, i32, i32) {
    %c0_i32 = arith.constant 0 : i32
    %c0_i32_0 = arith.constant 0 : i32
    return %arg0, %arg1, %c0_i32 : i32, i32, i32
  }
  func.func @transform_1(%arg0: i32, %arg1: i32) -> (i32, i32, i32) {
    %c0_i32 = arith.constant 0 : i32
    %c0_i32_0 = arith.constant 0 : i32
    %c0_i32_1 = arith.constant 0 : i32
    return %arg0, %c0_i32, %c0_i32_0 : i32, i32, i32
  }
  func.func @transform_2(%arg0: i32, %arg1: i32) -> (i32, i32, i32, i32) {
    %c0_i32 = arith.constant 0 : i32
    %c0_i32_0 = arith.constant 0 : i32
    %c0_i32_1 = arith.constant 0 : i32
    %c0_i32_2 = arith.constant 0 : i32
    return %arg0, %c0_i32, %c0_i32_0, %c0_i32_1 : i32, i32, i32, i32
  }
  func.func @transform_3(%arg0: i32, %arg1: i32) -> (i32, i32) {
    %c0_i32 = arith.constant 0 : i32
    %c0_i32_0 = arith.constant 0 : i32
    %c0_i32_1 = arith.constant 0 : i32
    return %c0_i32, %c0_i32_0 : i32, i32
  }
  func.func @transform_4(%arg0: i32, %arg1: i32) -> (i32, i32) {
    %c0_i32 = arith.constant 0 : i32
    %c0_i32_0 = arith.constant 0 : i32
    %c0_i32_1 = arith.constant 0 : i32
    return %c0_i32, %c0_i32_0 : i32, i32
  }
  func.func @transform_5(%arg0: i32, %arg1: i32) -> (i32, i32) {
    %c0_i32 = arith.constant 0 : i32
    %c0_i32_0 = arith.constant 0 : i32
    %c0_i32_1 = arith.constant 0 : i32
    return %c0_i32, %c0_i32_0 : i32, i32
  }
  func.func @transform_6(%arg0: i32, %arg1: i32) -> (i32, i32) {
    %c0_i32 = arith.constant 0 : i32
    %c0_i32_0 = arith.constant 0 : i32
    %c0_i32_1 = arith.constant 0 : i32
    return %c0_i32, %c0_i32_0 : i32, i32
  }
  func.func @transform_7(%arg0: i32, %arg1: i32) -> (i32, i32) {
    %c0_i32 = arith.constant 0 : i32
    %c0_i32_0 = arith.constant 0 : i32
    %c0_i32_1 = arith.constant 0 : i32
    return %c0_i32, %c0_i32_0 : i32, i32
  }
  func.func @transform_8(%arg0: i32, %arg1: i32) -> (i32, i32) {
    %c0_i32 = arith.constant 0 : i32
    %c0_i32_0 = arith.constant 0 : i32
    %c0_i32_1 = arith.constant 0 : i32
    return %c0_i32, %c0_i32_0 : i32, i32
  }
  func.func @transform_9(%arg0: i32, %arg1: i32) -> (i32, i32) {
    %c0_i32 = arith.constant 0 : i32
    %c0_i32_0 = arith.constant 0 : i32
    %c0_i32_1 = arith.constant 0 : i32
    return %c0_i32, %c0_i32_0 : i32, i32
  }
  func.func @transform_10(%arg0: i32, %arg1: i32) -> (i32, i32) {
    %c0_i32 = arith.constant 0 : i32
    %c0_i32_0 = arith.constant 0 : i32
    %c0_i32_1 = arith.constant 0 : i32
    return %c0_i32, %c0_i32_0 : i32, i32
  }
  func.func @transform_11(%arg0: i32, %arg1: i32) -> (i32, i32, i32) {
    %c0_i32 = arith.constant 0 : i32
    %c0_i32_0 = arith.constant 0 : i32
    return %arg0, %arg1, %c0_i32 : i32, i32, i32
  }
  func.func @transform_12(%arg0: i32, %arg1: i32) -> (i32, i32, i32, i32) {
    %c0_i32 = arith.constant 0 : i32
    %c0_i32_0 = arith.constant 0 : i32
    %c0_i32_1 = arith.constant 0 : i32
    return %arg0, %c0_i32, %arg1, %c0_i32_0 : i32, i32, i32, i32
  }
}

</mosaic_0001>

<llo_original>
// kernel: decoder_layer.5
$region0: #{decoder_layer.5}
  #allocation0 [shape = 'u32[]', space=smem, size = 0x4, offset = 0x4, fixed_abs, tag = 'smem constant byte address 0x4 - core index']
  #allocation1 [shape = 'u32[144,128]{1,0:T(1,128)}', space=vmem, size = 0x12000, scoped, tag = 'internal scratch']
  #allocation2 [shape = 'f32[16,32]{1,0:T(8,128)}', space=vmem, size = 0x2000, scoped, tag = 'scratch operand']
  %s0 = inlined_call_operand.vmem [shape: f32[16,32], index: 0, kind: input, shape index: {}]
  %s1 = inlined_call_operand.vmem [shape: bf16[32,64], index: 1, kind: input, shape index: {}]
  %s2 = inlined_call_operand.vmem [shape: f32[1,64], index: 2, kind: input, shape index: {}]
  %s3 = inlined_call_operand.vmem [shape: bf16[64,32], index: 3, kind: input, shape index: {}]
  %s4 = inlined_call_operand.vmem [shape: f32[1,32], index: 4, kind: input, shape index: {}]
  %s5 = inlined_call_operand.vmem [shape: f32[1,32], index: 5, kind: input, shape index: {}]
  %s6 = inlined_call_operand.vmem [shape: f32[1,32], index: 6, kind: input, shape index: {}]
  %s7 = inlined_call_operand.hbm [shape: f32[16,32], index: 7, kind: output, shape index: {}]
  %s8 = sld [smem:[#allocation0]]
  $region46: #{decoder_layer.5} parent=0
    _
  %s10 = ssub.s32 1, %s8
  %s11 = scalar_select 0, %s10, %s8
  $region1: #{decoder_layer.5} parent=0
    #allocation3 [shape = 'u8[8192]{0}', space=vmem, size = 0x2000, scoped, tag = 'output window, operand 0, single buffered']
    #allocation4 [shape = 's32[1]{0}', space=sflag, size = 0x4, scoped, tag = 'scoped memory for decoder_layer.5']
    %12 = vsyncpa [#allocation4], 0
    // Predicated region
    $region2: #{decoder_layer.5} parent=1 // pred_check
      _
    $region3: #{decoder_layer.5} parent=1 // pred_check_branch
      %14 = sbr.rel (0) target = $region5
    $region4: #{decoder_layer.5} parent=1 // pred_region
      _
    $region5: #{decoder_layer.5} parent=1 // pred_fallthru
      _
    // Predicated region
    $region6: #{decoder_layer.5} parent=1 // pred_check
      _
    $region7: #{decoder_layer.5} parent=1 // pred_check_branch
      %16 = sbr.rel (0) target = $region9
    $region8: #{decoder_layer.5} parent=1 // pred_region
      _
    $region9: #{decoder_layer.5} parent=1 // pred_fallthru
      _
    // Predicated region
    $region10: #{decoder_layer.5} parent=1 // pred_check
      _
    $region11: #{decoder_layer.5} parent=1 // pred_check_branch
      %18 = sbr.rel (0) target = $region13
    $region12: #{decoder_layer.5} parent=1 // pred_region
      _
    $region13: #{decoder_layer.5} parent=1 // pred_fallthru
      _
    // Predicated region
    $region14: #{decoder_layer.5} parent=1 // pred_check
      _
    $region15: #{decoder_layer.5} parent=1 // pred_check_branch
      %20 = sbr.rel (0) target = $region17
    $region16: #{decoder_layer.5} parent=1 // pred_region
      _
    $region17: #{decoder_layer.5} parent=1 // pred_fallthru
      _
    // Predicated region
    $region18: #{decoder_layer.5} parent=1 // pred_check
      _
    $region19: #{decoder_layer.5} parent=1 // pred_check_branch
      %22 = sbr.rel (0) target = $region21
    $region20: #{decoder_layer.5} parent=1 // pred_region
      _
    $region21: #{decoder_layer.5} parent=1 // pred_fallthru
      _
    // Predicated region
    $region22: #{decoder_layer.5} parent=1 // pred_check
      _
    $region23: #{decoder_layer.5} parent=1 // pred_check_branch
      %24 = sbr.rel (0) target = $region25
    $region24: #{decoder_layer.5} parent=1 // pred_region
      _
    $region25: #{decoder_layer.5} parent=1 // pred_fallthru
      _
    // Predicated region
    $region26: #{decoder_layer.5} parent=1 // pred_check
      _
    $region27: #{decoder_layer.5} parent=1 // pred_check_branch
      %26 = sbr.rel (0) target = $region29
    $region28: #{decoder_layer.5} parent=1 // pred_region
      _
    $region29: #{decoder_layer.5} parent=1 // pred_fallthru
      _
    %p28 = scmp.eq.s32.totalorder 0, 0
    // Predicated region
    $region30: #{decoder_layer.5} parent=1 // pred_check
      %p29 = pneg %p28
    $region31: #{decoder_layer.5} parent=1 // pred_check_branch
      %31 = sbr.rel (%p29) target = $region33
    $region32: #{decoder_layer.5} parent=1 // pred_region
      %vm32 = vcmask 261120
      %33 = vst.msk [vmem:[#allocation2] sm:$0xff] %vm32, 0.0
      %34 = vst.msk [vmem:[#allocation2 + $0x8] sm:$0xff] %vm32, 0.0
    $region33: #{decoder_layer.5} parent=1 // pred_fallthru
      _
    %v35 = vld [vmem:[%s0] sm:$0xff]
    %v36 = vld [vmem:[%s0 + $0x8] sm:$0xff]
    %v37 = vpack.c.bf16 %v36, %v35
    %v38 = vld [vmem:[%s1] sm:$0xf]
    %v39 = vld [vmem:[%s1 + $0x4] sm:$0xf]
    %v40 = vld [vmem:[%s1 + $0x8] sm:$0xf]
    %v41 = vld [vmem:[%s1 + $0xc] sm:$0xf]
    %v42 = vld [vmem:[%s2] sm:$0x1]
    %v44 = vlaneseq
    %v45 = vshrl.u32 %v44, 7
    %v46 = vsub.s32 0, %v45
    %v47 = vrot.slane %v42, %v46
    %v53 = vunpack.c.l.b16 %v38
    %v54 = vunpack.c.l.b16 %v39
    %v55 = vunpack.c.l.b16 %v40
    %v56 = vunpack.c.l.b16 %v41
    %v57 = vpack.c.b16 %v54, %v53
    %v58 = vpack.c.b16 %v56, %v55
    %vm61 = vcmask 261120
    %v63 = vsel %vm61, %v37, 0
    %65 = vmatprep.subr.bf16.mxu0 0
    %66 = vmatpush1.bf16.msra.mxu0 %v57
    %67 = vmatprep.subr.bf16.mxu0 0
    %68 = vmatpush1.bf16.msra.mxu0 %v58
    %69 = vmatprep.subr.bf16.mxu0 0
    %70 = vmatpush1.bf16.msra.mxu0 0
    %71 = vmatprep.subr.bf16.mxu0 0
    %72 = vmatpush1.bf16.msra.mxu0 0
    %73 = vmatprep.subr.bf16.mxu0 0
    %74 = vmatpush1.bf16.msra.mxu0 0
    %75 = vmatprep.subr.bf16.mxu0 0
    %76 = vmatpush1.bf16.msra.mxu0 0
    %77 = vmatprep.subr.bf16.mxu0 0
    %78 = vmatpush1.bf16.msra.mxu0 0
    %79 = vmatprep.subr.bf16.mxu0 0
    %80 = vmatpush1.bf16.msra.mxu0 0
    %81 = vmatprep.subr.bf16.mxu0 0
    %82 = vmatpush1.bf16.msra.mxu0 0
    %83 = vmatprep.subr.bf16.mxu0 0
    %84 = vmatpush1.bf16.msra.mxu0 0
    %85 = vmatprep.subr.bf16.mxu0 0
    %86 = vmatpush1.bf16.msra.mxu0 0
    %87 = vmatprep.subr.bf16.mxu0 0
    %88 = vmatpush1.bf16.msra.mxu0 0
    %89 = vmatprep.subr.bf16.mxu0 0
    %90 = vmatpush1.bf16.msra.mxu0 0
    %91 = vmatprep.subr.bf16.mxu0 0
    %92 = vmatpush1.bf16.msra.mxu0 0
    %93 = vmatprep.subr.bf16.mxu0 0
    %94 = vmatpush1.bf16.msra.mxu0 0
    %95 = vmatprep.subr.bf16.mxu0 0
    %96 = vmatpush1.bf16.msra.mxu0 0
    %97 = vmatprep.mubr.bf16.mxu0 0
    %98 = vmatmul.mubr.bf16.gmra.mrb[0].mxu0 %v63
    %v99 = vpop.f32.mrb[0].mxu0
    %v100 = vadd.f32 %v47, %v99
    %v101 = vpop.f32.mrb[0].mxu0
    %v102 = vpop.f32.mrb[0].mxu0
    %v103 = vadd.f32 %v47, %v102
    %v104 = vpop.f32.mrb[0].mxu0
    %105 = vdwg.mxu0
    %v106 = vmax.f32 %v100, 0.0
    %v107 = vmax.f32 %v103, 0.0
    %v108 = vld [vmem:[#allocation2] sm:$0xff]
    %v109 = vld [vmem:[#allocation2 + $0x8] sm:$0xff]
    %v110 = vpack.c.bf16 %v107, %v106
    %v111 = vld [vmem:[%s3] sm:$0xf]
    %v112 = vld [vmem:[%s3 + $0x4] sm:$0xf]
    %v113 = vld [vmem:[%s3 + $0x8] sm:$0xf]
    %v114 = vld [vmem:[%s3 + $0xc] sm:$0xf]
    %v115 = vld [vmem:[%s3 + $0x10] sm:$0xf]
    %v116 = vld [vmem:[%s3 + $0x14] sm:$0xf]
    %v117 = vld [vmem:[%s3 + $0x18] sm:$0xf]
    %v118 = vld [vmem:[%s3 + $0x1c] sm:$0xf]
    %v127 = vunpack.c.l.b16 %v111
    %v128 = vunpack.c.l.b16 %v112
    %v129 = vunpack.c.l.b16 %v113
    %v130 = vunpack.c.l.b16 %v114
    %v131 = vunpack.c.l.b16 %v115
    %v132 = vunpack.c.l.b16 %v116
    %v133 = vunpack.c.l.b16 %v117
    %v134 = vunpack.c.l.b16 %v118
    %v135 = vpack.c.b16 %v128, %v127
    %v136 = vpack.c.b16 %v130, %v129
    %v137 = vpack.c.b16 %v132, %v131
    %v138 = vpack.c.b16 %v134, %v133
    %vm143 = vcmask 523264
    %v145 = vsel %vm143, %v110, 0
    %147 = vmatprep.subr.bf16.mxu0 0
    %148 = vmatpush1.bf16.msra.mxu0 %v135
    %149 = vmatprep.subr.bf16.mxu0 0
    %150 = vmatpush1.bf16.msra.mxu0 %v136
    %151 = vmatprep.subr.bf16.mxu0 0
    %152 = vmatpush1.bf16.msra.mxu0 %v137
    %153 = vmatprep.subr.bf16.mxu0 0
    %154 = vmatpush1.bf16.msra.mxu0 %v138
    %155 = vmatprep.subr.bf16.mxu0 0
    %156 = vmatpush1.bf16.msra.mxu0 0
    %157 = vmatprep.subr.bf16.mxu0 0
    %158 = vmatpush1.bf16.msra.mxu0 0
    %159 = vmatprep.subr.bf16.mxu0 0
    %160 = vmatpush1.bf16.msra.mxu0 0
    %161 = vmatprep.subr.bf16.mxu0 0
    %162 = vmatpush1.bf16.msra.mxu0 0
    %163 = vmatprep.subr.bf16.mxu0 0
    %164 = vmatpush1.bf16.msra.mxu0 0
    %165 = vmatprep.subr.bf16.mxu0 0
    %166 = vmatpush1.bf16.msra.mxu0 0
    %167 = vmatprep.subr.bf16.mxu0 0
    %168 = vmatpush1.bf16.msra.mxu0 0
    %169 = vmatprep.subr.bf16.mxu0 0
    %170 = vmatpush1.bf16.msra.mxu0 0
    %171 = vmatprep.subr.bf16.mxu0 0
    %172 = vmatpush1.bf16.msra.mxu0 0
    %173 = vmatprep.subr.bf16.mxu0 0
    %174 = vmatpush1.bf16.msra.mxu0 0
    %175 = vmatprep.subr.bf16.mxu0 0
    %176 = vmatpush1.bf16.msra.mxu0 0
    %177 = vmatprep.subr.bf16.mxu0 0
    %178 = vmatpush1.bf16.msra.mxu0 0
    %179 = vmatprep.mubr.bf16.mxu0 0
    %180 = vmatmul.mubr.bf16.gmra.mrb[0].mxu0 %v145
    %v181 = vpop.f32.mrb[0].mxu0
    %v182 = vadd.f32 0.0, %v181
    %v183 = vpop.f32.mrb[0].mxu0
    %v184 = vpop.f32.mrb[0].mxu0
    %v185 = vadd.f32 0.0, %v184
    %v186 = vpop.f32.mrb[0].mxu0
    %187 = vdwg.mxu0
    %v188 = vadd.f32 %v108, %v182
    %v189 = vadd.f32 %v109, %v185
    %190 = vst.msk [vmem:[#allocation2] sm:$0xff] %vm61, %v188
    %191 = vst.msk [vmem:[#allocation2 + $0x8] sm:$0xff] %vm61, %v189
    // Predicated region
    $region34: #{decoder_layer.5} parent=1 // pred_check
      %p192 = pneg %p28
    $region35: #{decoder_layer.5} parent=1 // pred_check_branch
      %194 = sbr.rel (%p192) target = $region37
    $region36: #{decoder_layer.5} parent=1 // pred_region
      %v195 = vld [vmem:[#allocation2] sm:$0xff]
      %v196 = vld [vmem:[#allocation2 + $0x8] sm:$0xff]
      %v197 = vadd.f32 %v35, %v195
      %v198 = vadd.f32 %v36, %v196
      %v199 = vld [vmem:[%s4] sm:$0x1]
      %v201 = vlaneseq
      %v202 = vshrl.u32 %v201, 7
      %v203 = vsub.s32 0, %v202
      %v204 = vrot.slane %v199, %v203
      %v206 = vadd.f32 %v197, %v204
      %v207 = vadd.f32 %v198, %v204
      %v208 = vsel %vm61, %v206, 0.0
      %209 = vadd.xlane.f32.xlu0 %v208
      %v210 = vpop.xlane.xlu0 %209
      %v211 = vsel %vm61, %v207, 0.0
      %212 = vadd.xlane.f32.xlu0 %v211
      %v213 = vpop.xlane.xlu0 %212
      %v214 = vrcp.pop 32.0
      %v215 = vmul.f32 %v210, %v214
      %v216 = vmul.f32 %v213, %v214
      %v217 = vsub.f32 %v206, %v215
      %v218 = vsub.f32 %v207, %v216
      %v219 = vmul.f32 %v217, %v217
      %v220 = vmul.f32 %v218, %v218
      %v221 = vsel %vm61, %v219, 0.0
      %222 = vadd.xlane.f32.xlu0 %v221
      %v223 = vpop.xlane.xlu0 %222
      %v224 = vsel %vm61, %v220, 0.0
      %225 = vadd.xlane.f32.xlu0 %v224
      %v226 = vpop.xlane.xlu0 %225
      %v227 = vmul.f32 %v223, %v214
      %v228 = vmul.f32 %v226, %v214
      %v229 = vadd.f32 %v227, 1e-05
      %v230 = vadd.f32 %v228, 1e-05
      %v231 = vrsqrt.pop %v229
      %v232 = vrsqrt.pop %v230
      %v233 = vmul.f32 %v217, %v231
      %v234 = vmul.f32 %v218, %v232
      %v235 = vld [vmem:[%s5] sm:$0x1]
      %v237 = vlaneseq
      %v238 = vshrl.u32 %v237, 7
      %v239 = vsub.s32 0, %v238
      %v240 = vrot.slane %v235, %v239
      %v242 = vmul.f32 %v233, %v240
      %v243 = vmul.f32 %v234, %v240
      %v244 = vld [vmem:[%s6] sm:$0x1]
      %v246 = vlaneseq
      %v247 = vshrl.u32 %v246, 7
      %v248 = vsub.s32 0, %v247
      %v249 = vrot.slane %v244, %v248
      %v251 = vadd.f32 %v242, %v249
      %v252 = vadd.f32 %v243, %v249
      %253 = vst.msk [vmem:[#allocation3] sm:$0xff] %vm61, %v251
      %254 = vst.msk [vmem:[#allocation3 + $0x8] sm:$0xff] %vm61, %v252
    $region37: #{decoder_layer.5} parent=1 // pred_fallthru
      _
    // Predicated region
    $region38: #{decoder_layer.5} parent=1 // pred_check
      _
    $region39: #{decoder_layer.5} parent=1 // pred_check_branch
      %256 = sbr.rel (0) target = $region41
    $region40: #{decoder_layer.5} parent=1 // pred_region
      %s258 = ssub.s32 256, 256
      %259 = vsyncadd [#allocation4], %s258
      %s260 = sshll.u32 [#allocation3], 4
      %s261 = int_to_ptr.vmem [resolvable:$true] %s260
      %266 = dma.vmem_to_hbm [thread:$0]  %s261, 256, %s7, [#allocation4], 128, 128, 8
    $region41: #{decoder_layer.5} parent=1 // pred_fallthru
      _
    // Predicated region
    $region42: #{decoder_layer.5} parent=1 // pred_check
      _
    $region43: #{decoder_layer.5} parent=1 // pred_check_branch
      %268 = sbr.rel (0) target = $region45
    $region44: #{decoder_layer.5} parent=1 // pred_region
      %269 = dma.done [#allocation4], 256
    $region45: #{decoder_layer.5} parent=1 // pred_fallthru
      _
    %270 = vsyncpa [#allocation4], 1

// kernel: decoder_layer.3
$region0: #{decoder_layer.3}
  #allocation0 [shape = 'u32[]', space=smem, size = 0x4, offset = 0x4, fixed_abs, tag = 'smem constant byte address 0x4 - core index']
  #allocation1 [shape = 'u32[144,128]{1,0:T(1,128)}', space=vmem, size = 0x12000, scoped, tag = 'internal scratch']
  %s0 = inlined_call_operand.vmem [shape: f32[2,8,32], index: 0, kind: input, shape index: {}, may-alias: {0,1}]
  %s1 = inlined_call_operand.vmem [shape: f32[2,8,32], index: 1, kind: input, shape index: {}, may-alias: {0,1}]
  %s2 = inlined_call_operand.vmem [shape: f32[2,1,8,8], index: 2, kind: input, shape index: {}]
  %s3 = inlined_call_operand.vmem [shape: bf16[32,32], index: 3, kind: input, shape index: {}]
  %s4 = inlined_call_operand.vmem [shape: f32[1,32], index: 4, kind: input, shape index: {}]
  %s5 = inlined_call_operand.vmem [shape: bf16[32,64], index: 5, kind: input, shape index: {}]
  %s6 = inlined_call_operand.vmem [shape: f32[1,64], index: 6, kind: input, shape index: {}]
  %s7 = inlined_call_operand.vmem [shape: bf16[32,32], index: 7, kind: input, shape index: {}]
  %s8 = inlined_call_operand.vmem [shape: f32[1,32], index: 8, kind: input, shape index: {}]
  %s9 = inlined_call_operand.vmem [shape: f32[1,32], index: 9, kind: input, shape index: {}]
  %s10 = inlined_call_operand.vmem [shape: f32[1,32], index: 10, kind: input, shape index: {}]
  %s11 = inlined_call_operand.vmem [shape: f32[2,8,32], index: 11, kind: output, shape index: {}]
  %s12 = sld [smem:[#allocation0]]
  $region77: #{decoder_layer.3} parent=0
    _
  %s14 = ssub.s32 1, %s12
  %s15 = scalar_select 0, %s14, %s12
  loop: start=0, step=1, limit=4
  $region2: #{decoder_layer.3} parent=0 // loop_pre_header
    _
  $region3: #{decoder_layer.3} parent=0 // loop_header
    %s17 = sphi 0, %s21
    %p18 = scmp.ge.s32.totalorder %s17, 4
    %s24 = sphi 0, %s36
    %s25 = sphi 0, %s32
    %s26 = sphi 0, %s24
    %s27 = sphi 0, %s25
    %s28 = sphi 0, %s26
    %s29 = sphi 0, %s27
    %s41 = sphi 0, %s43
    %s44 = sphi 0, %s41
    %s45 = sphi 0, %s44
    %s61 = sphi 0, %s45
    %s67 = sphi 0, %s69
    %s70 = sphi 0, %s67
    %s71 = sphi 0, %s70
    %s87 = sphi 0, %s71
    %s95 = sphi 0, %s97
    %s98 = sphi 0, %s95
    %s99 = sphi 0, %s98
    %s115 = sphi 0, %s99
    %s119 = sphi 0, %s119
    %s121 = sphi 0, %s119
    %s122 = sphi 0, %s121
    %s136 = sphi 0, %s122
    %s140 = sphi 0, %s140
    %s142 = sphi 0, %s140
    %s143 = sphi 0, %s142
    %s157 = sphi 0, %s143
    %s161 = sphi 0, %s161
    %s163 = sphi 0, %s161
    %s164 = sphi 0, %s163
    %s178 = sphi 0, %s164
    %s182 = sphi 0, %s182
    %s184 = sphi 0, %s182
    %s185 = sphi 0, %s184
    %s199 = sphi 0, %s185
    %s203 = sphi 0, %s203
    %s205 = sphi 0, %s203
    %s206 = sphi 0, %s205
    %s220 = sphi 0, %s206
    %s224 = sphi 0, %s224
    %s226 = sphi 0, %s224
    %s227 = sphi 0, %s226
    %s241 = sphi 0, %s227
    %s245 = sphi 0, %s245
    %s247 = sphi 0, %s245
    %s248 = sphi 0, %s247
    %s262 = sphi 0, %s248
    %s266 = sphi 0, %s266
    %s268 = sphi 0, %s266
    %s269 = sphi 0, %s268
    %s283 = sphi 0, %s269
    %s291 = sphi 0, %s293
    %s294 = sphi 0, %s291
    %s295 = sphi 0, %s294
    %s311 = sphi 0, %s295
  $region4: #{decoder_layer.3} parent=0 // loop_header_branch
    %20 = sbr.rel (%p18) target = $region8
  $region5: #{decoder_layer.3} parent=0 // loop_body
    %s22 = ssub.s32 %s17, 1
    %s23 = ssub.s32 %s17, 2
    %s30 = sadd.s32 1, %s25
    %p31 = scmp.ge.s32.totalorder %s30, 1
    %s32 = scalar_select %p31, 0, %s30
    %s33 = sadd.s32 1, %s24
    %s34 = scalar_select %p31, %s33, %s24
    %p35 = scmp.ge.s32.totalorder %s34, 2
    %s36 = scalar_select %p35, 0, %s34
    %s37 = ssub.s32 %s24, %s36
    %s38 = ssub.s32 %s25, %s32
    %s39 = sor.u32 %s37, %s38
    %p40 = scmp.eq.s32.totalorder %s39, 0
    %s42 = sadd.s32 %s41, 1
    %s43 = scalar_select %p40, %s41, %s42
    %p46 = pneg %p40
    %p47 = scmp.eq.s32.totalorder %s17, 1
    %p48 = por %p46, %p47
    %p49 = scmp.ne.s32.totalorder %s41, %s44
    %p50 = scmp.eq.s32.totalorder %s17, 0
    %p51 = por %p49, %p50
    %p52 = scmp.ne.s32.totalorder %s41, %s44
    %p53 = scmp.eq.s32.totalorder %s22, 1
    %p54 = por %p52, %p53
    %p55 = scmp.ne.s32.totalorder %s44, %s45
    %p56 = scmp.eq.s32.totalorder %s22, 0
    %p57 = por %p55, %p56
    %p58 = scmp.ne.s32.totalorder %s44, %s45
    %p59 = scmp.eq.s32.totalorder %s23, 1
    %p60 = por %p58, %p59
    %p62 = scmp.ne.s32.totalorder %s45, %s61
    %p63 = scmp.eq.s32.totalorder %s23, 0
    %p64 = por %p62, %p63
    %s65 = ssub.s32 %s24, %s36
    %p66 = scmp.eq.s32.totalorder %s65, 0
    %s68 = sadd.s32 %s67, 1
    %s69 = scalar_select %p66, %s67, %s68
    %p72 = pneg %p66
    %p73 = scmp.eq.s32.totalorder %s17, 1
    %p74 = por %p72, %p73
    %p75 = scmp.ne.s32.totalorder %s67, %s70
    %p76 = scmp.eq.s32.totalorder %s17, 0
    %p77 = por %p75, %p76
    %p78 = scmp.ne.s32.totalorder %s67, %s70
    %p79 = scmp.eq.s32.totalorder %s22, 1
    %p80 = por %p78, %p79
    %p81 = scmp.ne.s32.totalorder %s70, %s71
    %p82 = scmp.eq.s32.totalorder %s22, 0
    %p83 = por %p81, %p82
    %p84 = scmp.ne.s32.totalorder %s70, %s71
    %p85 = scmp.eq.s32.totalorder %s23, 1
    %p86 = por %p84, %p85
    %p88 = scmp.ne.s32.totalorder %s71, %s87
    %p89 = scmp.eq.s32.totalorder %s23, 0
    %p90 = por %p88, %p89
    %s91 = ssub.s32 %s24, %s36
    %s92 = ssub.s32 %s25, %s32
    %s93 = sor.u32 %s91, %s92
    %p94 = scmp.eq.s32.totalorder %s93, 0
    %s96 = sadd.s32 %s95, 1
    %s97 = scalar_select %p94, %s95, %s96
    %p100 = pneg %p94
    %p101 = scmp.eq.s32.totalorder %s17, 1
    %p102 = por %p100, %p101
    %p103 = scmp.ne.s32.totalorder %s95, %s98
    %p104 = scmp.eq.s32.totalorder %s17, 0
    %p105 = por %p103, %p104
    %p106 = scmp.ne.s32.totalorder %s95, %s98
    %p107 = scmp.eq.s32.totalorder %s22, 1
    %p108 = por %p106, %p107
    %p109 = scmp.ne.s32.totalorder %s98, %s99
    %p110 = scmp.eq.s32.totalorder %s22, 0
    %p111 = por %p109, %p110
    %p112 = scmp.ne.s32.totalorder %s98, %s99
    %p113 = scmp.eq.s32.totalorder %s23, 1
    %p114 = por %p112, %p113
    %p116 = scmp.ne.s32.totalorder %s99, %s115
    %p117 = scmp.eq.s32.totalorder %s23, 0
    %p118 = por %p116, %p117
    %s120 = sadd.s32 %s119, 1
    %p123 = scmp.eq.s32.totalorder %s17, 1
    %p124 = scmp.ne.s32.totalorder %s119, %s121
    %p125 = scmp.eq.s32.totalorder %s17, 0
    %p126 = por %p124, %p125
    %p127 = scmp.ne.s32.totalorder %s119, %s121
    %p128 = scmp.eq.s32.totalorder %s22, 1
    %p129 = por %p127, %p128
    %p130 = scmp.ne.s32.totalorder %s121, %s122
    %p131 = scmp.eq.s32.totalorder %s22, 0
    %p132 = por %p130, %p131
    %p133 = scmp.ne.s32.totalorder %s121, %s122
    %p134 = scmp.eq.s32.totalorder %s23, 1
    %p135 = por %p133, %p134
    %p137 = scmp.ne.s32.totalorder %s122, %s136
    %p138 = scmp.eq.s32.totalorder %s23, 0
    %p139 = por %p137, %p138
    %s141 = sadd.s32 %s140, 1
    %p144 = scmp.eq.s32.totalorder %s17, 1
    %p145 = scmp.ne.s32.totalorder %s140, %s142
    %p146 = scmp.eq.s32.totalorder %s17, 0
    %p147 = por %p145, %p146
    %p148 = scmp.ne.s32.totalorder %s140, %s142
    %p149 = scmp.eq.s32.totalorder %s22, 1
    %p150 = por %p148, %p149
    %p151 = scmp.ne.s32.totalorder %s142, %s143
    %p152 = scmp.eq.s32.totalorder %s22, 0
    %p153 = por %p151, %p152
    %p154 = scmp.ne.s32.totalorder %s142, %s143
    %p155 = scmp.eq.s32.totalorder %s23, 1
    %p156 = por %p154, %p155
    %p158 = scmp.ne.s32.totalorder %s143, %s157
    %p159 = scmp.eq.s32.totalorder %s23, 0
    %p160 = por %p158, %p159
    %s162 = sadd.s32 %s161, 1
    %p165 = scmp.eq.s32.totalorder %s17, 1
    %p166 = scmp.ne.s32.totalorder %s161, %s163
    %p167 = scmp.eq.s32.totalorder %s17, 0
    %p168 = por %p166, %p167
    %p169 = scmp.ne.s32.totalorder %s161, %s163
    %p170 = scmp.eq.s32.totalorder %s22, 1
    %p171 = por %p169, %p170
    %p172 = scmp.ne.s32.totalorder %s163, %s164
    %p173 = scmp.eq.s32.totalorder %s22, 0
    %p174 = por %p172, %p173
    %p175 = scmp.ne.s32.totalorder %s163, %s164
    %p176 = scmp.eq.s32.totalorder %s23, 1
    %p177 = por %p175, %p176
    %p179 = scmp.ne.s32.totalorder %s164, %s178
    %p180 = scmp.eq.s32.totalorder %s23, 0
    %p181 = por %p179, %p180
    %s183 = sadd.s32 %s182, 1
    %p186 = scmp.eq.s32.totalorder %s17, 1
    %p187 = scmp.ne.s32.totalorder %s182, %s184
    %p188 = scmp.eq.s32.totalorder %s17, 0
    %p189 = por %p187, %p188
    %p190 = scmp.ne.s32.totalorder %s182, %s184
    %p191 = scmp.eq.s32.totalorder %s22, 1
    %p192 = por %p190, %p191
    %p193 = scmp.ne.s32.totalorder %s184, %s185
    %p194 = scmp.eq.s32.totalorder %s22, 0
    %p195 = por %p193, %p194
    %p196 = scmp.ne.s32.totalorder %s184, %s185
    %p197 = scmp.eq.s32.totalorder %s23, 1
    %p198 = por %p196, %p197
    %p200 = scmp.ne.s32.totalorder %s185, %s199
    %p201 = scmp.eq.s32.totalorder %s23, 0
    %p202 = por %p200, %p201
    %s204 = sadd.s32 %s203, 1
    %p207 = scmp.eq.s32.totalorder %s17, 1
    %p208 = scmp.ne.s32.totalorder %s203, %s205
    %p209 = scmp.eq.s32.totalorder %s17, 0
    %p210 = por %p208, %p209
    %p211 = scmp.ne.s32.totalorder %s203, %s205
    %p212 = scmp.eq.s32.totalorder %s22, 1
    %p213 = por %p211, %p212
    %p214 = scmp.ne.s32.totalorder %s205, %s206
    %p215 = scmp.eq.s32.totalorder %s22, 0
    %p216 = por %p214, %p215
    %p217 = scmp.ne.s32.totalorder %s205, %s206
    %p218 = scmp.eq.s32.totalorder %s23, 1
    %p219 = por %p217, %p218
    %p221 = scmp.ne.s32.totalorder %s206, %s220
    %p222 = scmp.eq.s32.totalorder %s23, 0
    %p223 = por %p221, %p222
    %s225 = sadd.s32 %s224, 1
    %p228 = scmp.eq.s32.totalorder %s17, 1
    %p229 = scmp.ne.s32.totalorder %s224, %s226
    %p230 = scmp.eq.s32.totalorder %s17, 0
    %p231 = por %p229, %p230
    %p232 = scmp.ne.s32.totalorder %s224, %s226
    %p233 = scmp.eq.s32.totalorder %s22, 1
    %p234 = por %p232, %p233
    %p235 = scmp.ne.s32.totalorder %s226, %s227
    %p236 = scmp.eq.s32.totalorder %s22, 0
    %p237 = por %p235, %p236
    %p238 = scmp.ne.s32.totalorder %s226, %s227
    %p239 = scmp.eq.s32.totalorder %s23, 1
    %p240 = por %p238, %p239
    %p242 = scmp.ne.s32.totalorder %s227, %s241
    %p243 = scmp.eq.s32.totalorder %s23, 0
    %p244 = por %p242, %p243
    %s246 = sadd.s32 %s245, 1
    %p249 = scmp.eq.s32.totalorder %s17, 1
    %p250 = scmp.ne.s32.totalorder %s245, %s247
    %p251 = scmp.eq.s32.totalorder %s17, 0
    %p252 = por %p250, %p251
    %p253 = scmp.ne.s32.totalorder %s245, %s247
    %p254 = scmp.eq.s32.totalorder %s22, 1
    %p255 = por %p253, %p254
    %p256 = scmp.ne.s32.totalorder %s247, %s248
    %p257 = scmp.eq.s32.totalorder %s22, 0
    %p258 = por %p256, %p257
    %p259 = scmp.ne.s32.totalorder %s247, %s248
    %p260 = scmp.eq.s32.totalorder %s23, 1
    %p261 = por %p259, %p260
    %p263 = scmp.ne.s32.totalorder %s248, %s262
    %p264 = scmp.eq.s32.totalorder %s23, 0
    %p265 = por %p263, %p264
    %s267 = sadd.s32 %s266, 1
    %p270 = scmp.eq.s32.totalorder %s17, 1
    %p271 = scmp.ne.s32.totalorder %s266, %s268
    %p272 = scmp.eq.s32.totalorder %s17, 0
    %p273 = por %p271, %p272
    %p274 = scmp.ne.s32.totalorder %s266, %s268
    %p275 = scmp.eq.s32.totalorder %s22, 1
    %p276 = por %p274, %p275
    %p277 = scmp.ne.s32.totalorder %s268, %s269
    %p278 = scmp.eq.s32.totalorder %s22, 0
    %p279 = por %p277, %p278
    %p280 = scmp.ne.s32.totalorder %s268, %s269
    %p281 = scmp.eq.s32.totalorder %s23, 1
    %p282 = por %p280, %p281
    %p284 = scmp.ne.s32.totalorder %s269, %s283
    %p285 = scmp.eq.s32.totalorder %s23, 0
    %p286 = por %p284, %p285
    %s287 = ssub.s32 %s24, %s36
    %s288 = ssub.s32 %s25, %s32
    %s289 = sor.u32 %s287, %s288
    %p290 = scmp.eq.s32.totalorder %s289, 0
    %s292 = sadd.s32 %s291, 1
    %s293 = scalar_select %p290, %s291, %s292
    %p296 = pneg %p290
    %p297 = scmp.eq.s32.totalorder %s17, 1
    %p298 = por %p296, %p297
    %p299 = scmp.ne.s32.totalorder %s291, %s294
    %p300 = scmp.eq.s32.totalorder %s17, 0
    %p301 = por %p299, %p300
    %p302 = scmp.ne.s32.totalorder %s291, %s294
    %p303 = scmp.eq.s32.totalorder %s22, 1
    %p304 = por %p302, %p303
    %p305 = scmp.ne.s32.totalorder %s294, %s295
    %p306 = scmp.eq.s32.totalorder %s22, 0
    %p307 = por %p305, %p306
    %p308 = scmp.ne.s32.totalorder %s294, %s295
    %p309 = scmp.eq.s32.totalorder %s23, 1
    %p310 = por %p308, %p309
    %p312 = scmp.ne.s32.totalorder %s295, %s311
    %p313 = scmp.eq.s32.totalorder %s23, 0
    %p314 = por %p312, %p313
    %p315 = scmp.le.s32.totalorder 1, %s17
    %p316 = scmp.lt.s32.totalorder %s17, 3
    %p317 = pnand %p315, %p316
    %p318 = pneg %p317
    // Predicated region
    $region9: #{decoder_layer.3} parent=5 // pred_check
      _
    $region10: #{decoder_layer.3} parent=5 // pred_check_branch
      %320 = sbr.rel (%p317) target = $region12
    $region11: #{decoder_layer.3} parent=5 // pred_region
      %s321 = ssub.s32 %s17, 1
      // Predicated region
      $region13: #{decoder_layer.3} parent=11 // pred_check
        %p322 = pneg %p132
      $region14: #{decoder_layer.3} parent=11 // pred_check_branch
        %324 = sbr.rel (%p322) target = $region16
      $region15: #{decoder_layer.3} parent=11 // pred_region
        _
      $region16: #{decoder_layer.3} parent=11 // pred_fallthru
        _
      // Predicated region
      $region17: #{decoder_layer.3} parent=11 // pred_check
        %p325 = pneg %p153
      $region18: #{decoder_layer.3} parent=11 // pred_check_branch
        %327 = sbr.rel (%p325) target = $region20
      $region19: #{decoder_layer.3} parent=11 // pred_region
        _
      $region20: #{decoder_layer.3} parent=11 // pred_fallthru
        _
      // Predicated region
      $region21: #{decoder_layer.3} parent=11 // pred_check
        %p328 = pneg %p174
      $region22: #{decoder_layer.3} parent=11 // pred_check_branch
        %330 = sbr.rel (%p328) target = $region24
      $region23: #{decoder_layer.3} parent=11 // pred_region
        _
      $region24: #{decoder_layer.3} parent=11 // pred_fallthru
        _
      // Predicated region
      $region25: #{decoder_layer.3} parent=11 // pred_check
        %p331 = pneg %p195
      $region26: #{decoder_layer.3} parent=11 // pred_check_branch
        %333 = sbr.rel (%p331) target = $region28
      $region27: #{decoder_layer.3} parent=11 // pred_region
        _
      $region28: #{decoder_layer.3} parent=11 // pred_fallthru
        _
      // Predicated region
      $region29: #{decoder_layer.3} parent=11 // pred_check
        %p334 = pneg %p216
      $region30: #{decoder_layer.3} parent=11 // pred_check_branch
        %336 = sbr.rel (%p334) target = $region32
      $region31: #{decoder_layer.3} parent=11 // pred_region
        _
      $region32: #{decoder_layer.3} parent=11 // pred_fallthru
        _
      // Predicated region
      $region33: #{decoder_layer.3} parent=11 // pred_check
        %p337 = pneg %p237
      $region34: #{decoder_layer.3} parent=11 // pred_check_branch
        %339 = sbr.rel (%p337) target = $region36
      $region35: #{decoder_layer.3} parent=11 // pred_region
        _
      $region36: #{decoder_layer.3} parent=11 // pred_fallthru
        _
      // Predicated region
      $region37: #{decoder_layer.3} parent=11 // pred_check
        %p340 = pneg %p258
      $region38: #{decoder_layer.3} parent=11 // pred_check_branch
        %342 = sbr.rel (%p340) target = $region40
      $region39: #{decoder_layer.3} parent=11 // pred_region
        _
      $region40: #{decoder_layer.3} parent=11 // pred_fallthru
        _
      // Predicated region
      $region41: #{decoder_layer.3} parent=11 // pred_check
        %p343 = pneg %p279
      $region42: #{decoder_layer.3} parent=11 // pred_check_branch
        %345 = sbr.rel (%p343) target = $region44
      $region43: #{decoder_layer.3} parent=11 // pred_region
        _
      $region44: #{decoder_layer.3} parent=11 // pred_fallthru
        _
    $region12: #{decoder_layer.3} parent=5 // pred_fallthru
      _
    %p346 = scmp.lt.s32.totalorder %s17, 2
    // Predicated region
    $region45: #{decoder_layer.3} parent=5 // pred_check
      %p347 = pneg %p346
    $region46: #{decoder_layer.3} parent=5 // pred_check_branch
      %349 = sbr.rel (%p347) target = $region48
    $region47: #{decoder_layer.3} parent=5 // pred_region
      // Predicated region
      $region49: #{decoder_layer.3} parent=47 // pred_check
        %p350 = pneg %p51
      $region50: #{decoder_layer.3} parent=47 // pred_check_branch
        %352 = sbr.rel (%p350) target = $region52
      $region51: #{decoder_layer.3} parent=47 // pred_region
        %p353 = scmp.lt.s32.totalorder %s24, 1
        %s354 = scalar_select %p353, %s24, 1
        %p355 = scmp.lt.s32.totalorder %s25, 0
        %s356 = scalar_select %p355, %s25, 0
        %s357 = sadd.s32 %s356, %s354
        %s358 = smul.addr %s357, 8
        %s359 = scalar_lea.vmem %s0, %s358
      $region52: #{decoder_layer.3} parent=47 // pred_fallthru
        _
      // Predicated region
      $region53: #{decoder_layer.3} parent=47 // pred_check
        %p360 = pneg %p77
      $region54: #{decoder_layer.3} parent=47 // pred_check_branch
        %362 = sbr.rel (%p360) target = $region56
      $region55: #{decoder_layer.3} parent=47 // pred_region
        %p363 = scmp.lt.s32.totalorder %s24, 1
        %s364 = scalar_select %p363, %s24, 1
        %s365 = smul.addr %s364, 8
        %s366 = scalar_lea.vmem %s1, %s365
      $region56: #{decoder_layer.3} parent=47 // pred_fallthru
        _
      // Predicated region
      $region57: #{decoder_layer.3} parent=47 // pred_check
        %p367 = pneg %p105
      $region58: #{decoder_layer.3} parent=47 // pred_check_branch
        %369 = sbr.rel (%p367) target = $region60
      $region59: #{decoder_layer.3} parent=47 // pred_region
        %p370 = scmp.lt.s32.totalorder %s24, 1
        %s371 = scalar_select %p370, %s24, 1
        %p372 = scmp.lt.s32.totalorder %s25, 0
        %s373 = scalar_select %p372, %s25, 0
        %s374 = sadd.s32 %s373, %s371
        %s375 = smul.addr %s374, 8
        %s376 = scalar_lea.vmem %s2, %s375
      $region60: #{decoder_layer.3} parent=47 // pred_fallthru
        _
    $region48: #{decoder_layer.3} parent=5 // pred_fallthru
      _
    %p377 = scmp.le.s32.totalorder 1, %s17
    %p378 = scmp.lt.s32.totalorder %s17, 3
    %p379 = pnand %p377, %p378
    %p380 = pneg %p379
    // Predicated region
    $region61: #{decoder_layer.3} parent=5 // pred_check
      _
    $region62: #{decoder_layer.3} parent=5 // pred_check_branch
      %382 = sbr.rel (%p379) target = $region64
    $region63: #{decoder_layer.3} parent=5 // pred_region
      %s383 = ssub.s32 %s17, 1
      %p384 = scmp.lt.s32.totalorder %s26, 1
      %s385 = scalar_select %p384, %s26, 1
      %p386 = scmp.lt.s32.totalorder %s27, 0
      %s387 = scalar_select %p386, %s27, 0
      %s388 = sadd.s32 %s387, %s385
      %s389 = smul.addr %s388, 8
      %s390 = scalar_lea.vmem %s0, %s389
      %p391 = pneg %p57
      %p392 = pneg %p54
      %p393 = scmp.lt.s32.totalorder %s26, 1
      %s394 = scalar_select %p393, %s26, 1
      %s395 = smul.addr %s394, 8
      %s396 = scalar_lea.vmem %s1, %s395
      %p397 = pneg %p83
      %p398 = pneg %p80
      %p399 = scmp.lt.s32.totalorder %s26, 1
      %s400 = scalar_select %p399, %s26, 1
      %p401 = scmp.lt.s32.totalorder %s27, 0
      %s402 = scalar_select %p401, %s27, 0
      %s403 = sadd.s32 %s402, %s400
      %s404 = smul.addr %s403, 8
      %s405 = scalar_lea.vmem %s2, %s404
      %p406 = pneg %p111
      %p407 = pneg %p108
      %p408 = pneg %p132
      %p409 = pneg %p129
      %p410 = pneg %p153
      %p411 = pneg %p150
      %p412 = pneg %p174
      %p413 = pneg %p171
      %p414 = pneg %p195
      %p415 = pneg %p192
      %p416 = pneg %p216
      %p417 = pneg %p213
      %p418 = pneg %p237
      %p419 = pneg %p234
      %p420 = pneg %p258
      %p421 = pneg %p255
      %p422 = pneg %p279
      %p423 = pneg %p276
      %p424 = pneg %p307
      %p425 = pneg %p304
      %p426 = scmp.lt.s32.totalorder %s26, 1
      %s427 = scalar_select %p426, %s26, 1
      %p428 = scmp.lt.s32.totalorder %s27, 0
      %s429 = scalar_select %p428, %s27, 0
      %s430 = sadd.s32 %s429, %s427
      %s431 = smul.addr %s430, 8
      %s432 = scalar_lea.vmem %s11, %s431
      %p433 = scmp.lt.s32.totalorder %s26, 1
      %s434 = scalar_select %p433, %s26, 1
      %p435 = scmp.lt.s32.totalorder %s27, 0
      %s436 = scalar_select %p435, %s27, 0
      %s437 = sadd.s32 %s436, %s434
      %s438 = smul.addr %s437, 8
      %s439 = scalar_lea.vmem %s0, %s438
      %p440 = scmp.lt.s32.totalorder %s26, 1
      %s441 = scalar_select %p440, %s26, 1
      %s442 = smul.addr %s441, 8
      %s443 = scalar_lea.vmem %s1, %s442
      %p444 = scmp.lt.s32.totalorder %s26, 1
      %s445 = scalar_select %p444, %s26, 1
      %p446 = scmp.lt.s32.totalorder %s27, 0
      %s447 = scalar_select %p446, %s27, 0
      %s448 = sadd.s32 %s447, %s445
      %s449 = smul.addr %s448, 8
      %s450 = scalar_lea.vmem %s2, %s449
      %p451 = scmp.lt.s32.totalorder %s26, 1
      %s452 = scalar_select %p451, %s26, 1
      %p453 = scmp.lt.s32.totalorder %s27, 0
      %s454 = scalar_select %p453, %s27, 0
      %s455 = sadd.s32 %s454, %s452
      %s456 = smul.addr %s455, 8
      %s457 = scalar_lea.vmem %s11, %s456
      %v459 = vld [vmem:[%s439] sm:$0xff]
      %v460 = vld [vmem:[%s443] sm:$0xff]
      %v461 = vpack.c.bf16 %v459, %v459
      %v462 = vld [vmem:[%s3] sm:$0xf]
      %v463 = vld [vmem:[%s3 + $0x4] sm:$0xf]
      %v464 = vld [vmem:[%s3 + $0x8] sm:$0xf]
      %v465 = vld [vmem:[%s3 + $0xc] sm:$0xf]
      %v466 = vld [vmem:[%s4] sm:$0x1]
      %v468 = vlaneseq
      %v469 = vshrl.u32 %v468, 7
      %v470 = vsub.s32 0, %v469
      %v471 = vrot.slane %v466, %v470
      %v477 = vunpack.c.l.b16 %v462
      %v478 = vunpack.c.l.b16 %v463
      %v479 = vunpack.c.l.b16 %v464
      %v480 = vunpack.c.l.b16 %v465
      %v481 = vpack.c.b16 %v478, %v477
      %v482 = vpack.c.b16 %v480, %v479
      %vm485 = vcmask 261120
      %v487 = vsel %vm485, %v461, 0
      %489 = vmatprep.subr.bf16.mxu0 0
      %490 = vmatpush1.bf16.msra.mxu0 %v481
      %491 = vmatprep.subr.bf16.mxu0 0
      %492 = vmatpush1.bf16.msra.mxu0 %v482
      %493 = vmatprep.subr.bf16.mxu0 0
      %494 = vmatpush1.bf16.msra.mxu0 0
      %495 = vmatprep.subr.bf16.mxu0 0
      %496 = vmatpush1.bf16.msra.mxu0 0
      %497 = vmatprep.subr.bf16.mxu0 0
      %498 = vmatpush1.bf16.msra.mxu0 0
      %499 = vmatprep.subr.bf16.mxu0 0
      %500 = vmatpush1.bf16.msra.mxu0 0
      %501 = vmatprep.subr.bf16.mxu0 0
      %502 = vmatpush1.bf16.msra.mxu0 0
      %503 = vmatprep.subr.bf16.mxu0 0
      %504 = vmatpush1.bf16.msra.mxu0 0
      %505 = vmatprep.subr.bf16.mxu0 0
      %506 = vmatpush1.bf16.msra.mxu0 0
      %507 = vmatprep.subr.bf16.mxu0 0
      %508 = vmatpush1.bf16.msra.mxu0 0
      %509 = vmatprep.subr.bf16.mxu0 0
      %510 = vmatpush1.bf16.msra.mxu0 0
      %511 = vmatprep.subr.bf16.mxu0 0
      %512 = vmatpush1.bf16.msra.mxu0 0
      %513 = vmatprep.subr.bf16.mxu0 0
      %514 = vmatpush1.bf16.msra.mxu0 0
      %515 = vmatprep.subr.bf16.mxu0 0
      %516 = vmatpush1.bf16.msra.mxu0 0
      %517 = vmatprep.subr.bf16.mxu0 0
      %518 = vmatpush1.bf16.msra.mxu0 0
      %519 = vmatprep.subr.bf16.mxu0 0
      %520 = vmatpush1.bf16.msra.mxu0 0
      %521 = vmatprep.mubr.bf16.mxu0 0
      %522 = vmatmul.mubr.bf16.gmra.mrb[0].mxu0 %v487
      %v523 = vpop.f32.mrb[0].mxu0
      %v524 = vadd.f32 %v471, %v523
      %v525 = vpop.f32.mrb[0].mxu0
      %v526 = vpop.f32.mrb[0].mxu0
      %v527 = vpop.f32.mrb[0].mxu0
      %528 = vdwg.mxu0
      %v529 = vpack.c.bf16 %v460, %v460
      %v530 = vld [vmem:[%s5] sm:$0xf]
      %v531 = vld [vmem:[%s5 + $0x4] sm:$0xf]
      %v532 = vld [vmem:[%s5 + $0x8] sm:$0xf]
      %v533 = vld [vmem:[%s5 + $0xc] sm:$0xf]
      %v534 = vld [vmem:[%s6] sm:$0x1]
      %v536 = vlaneseq
      %v537 = vshrl.u32 %v536, 7
      %v538 = vsub.s32 0, %v537
      %v539 = vrot.slane %v534, %v538
      %v545 = vunpack.c.l.b16 %v530
      %v546 = vunpack.c.l.b16 %v531
      %v547 = vunpack.c.l.b16 %v532
      %v548 = vunpack.c.l.b16 %v533
      %v549 = vpack.c.b16 %v546, %v545
      %v550 = vpack.c.b16 %v548, %v547
      %v554 = vsel %vm485, %v529, 0
      %556 = vmatprep.subr.bf16.mxu0 0
      %557 = vmatpush1.bf16.msra.mxu0 %v549
      %558 = vmatprep.subr.bf16.mxu0 0
      %559 = vmatpush1.bf16.msra.mxu0 %v550
      %560 = vmatprep.subr.bf16.mxu0 0
      %561 = vmatpush1.bf16.msra.mxu0 0
      %562 = vmatprep.subr.bf16.mxu0 0
      %563 = vmatpush1.bf16.msra.mxu0 0
      %564 = vmatprep.subr.bf16.mxu0 0
      %565 = vmatpush1.bf16.msra.mxu0 0
      %566 = vmatprep.subr.bf16.mxu0 0
      %567 = vmatpush1.bf16.msra.mxu0 0
      %568 = vmatprep.subr.bf16.mxu0 0
      %569 = vmatpush1.bf16.msra.mxu0 0
      %570 = vmatprep.subr.bf16.mxu0 0
      %571 = vmatpush1.bf16.msra.mxu0 0
      %572 = vmatprep.subr.bf16.mxu0 0
      %573 = vmatpush1.bf16.msra.mxu0 0
      %574 = vmatprep.subr.bf16.mxu0 0
      %575 = vmatpush1.bf16.msra.mxu0 0
      %576 = vmatprep.subr.bf16.mxu0 0
      %577 = vmatpush1.bf16.msra.mxu0 0
      %578 = vmatprep.subr.bf16.mxu0 0
      %579 = vmatpush1.bf16.msra.mxu0 0
      %580 = vmatprep.subr.bf16.mxu0 0
      %581 = vmatpush1.bf16.msra.mxu0 0
      %582 = vmatprep.subr.bf16.mxu0 0
      %583 = vmatpush1.bf16.msra.mxu0 0
      %584 = vmatprep.subr.bf16.mxu0 0
      %585 = vmatpush1.bf16.msra.mxu0 0
      %586 = vmatprep.subr.bf16.mxu0 0
      %587 = vmatpush1.bf16.msra.mxu0 0
      %588 = vmatprep.mubr.bf16.mxu0 0
      %589 = vmatmul.mubr.bf16.gmra.mrb[0].mxu0 %v554
      %v590 = vpop.f32.mrb[0].mxu0
      %v591 = vadd.f32 %v539, %v590
      %v592 = vpop.f32.mrb[0].mxu0
      %v593 = vpop.f32.mrb[0].mxu0
      %v594 = vpop.f32.mrb[0].mxu0
      %595 = vdwg.mxu0
      %v596 = vld [vmem:[%s450] sm:$0xff]
      %vm597 = vcmp.eq.f32.partialorder %v596, 0.0
      %v598 = vpack.c.bf16 %v524, %v524
      %v599 = vpack.c.bf16 %v591, %v591
      %vm600 = vcmask 64512
      %v602 = vsel %vm600, %v598, 0
      %v605 = vsel %vm600, %v599, 0
      %607 = vmatprep.subr.bf16.mxu0 0
      %608 = vmatpush1.bf16.xpose.msra.mxu0 %v605
      %609 = vmatprep.subr.bf16.mxu0 0
      %610 = vmatpush1.bf16.xpose.msra.mxu0 0
      %611 = vmatprep.subr.bf16.mxu0 0
      %612 = vmatpush1.bf16.xpose.msra.mxu0 0
      %613 = vmatprep.subr.bf16.mxu0 0
      %614 = vmatpush1.bf16.xpose.msra.mxu0 0
      %615 = vmatprep.subr.bf16.mxu0 0
      %616 = vmatpush1.bf16.xpose.msra.mxu0 0
      %617 = vmatprep.subr.bf16.mxu0 0
      %618 = vmatpush1.bf16.xpose.msra.mxu0 0
      %619 = vmatprep.subr.bf16.mxu0 0
      %620 = vmatpush1.bf16.xpose.msra.mxu0 0
      %621 = vmatprep.subr.bf16.mxu0 0
      %622 = vmatpush1.bf16.xpose.msra.mxu0 0
      %623 = vmatprep.subr.bf16.mxu0 0
      %624 = vmatpush1.bf16.xpose.msra.mxu0 0
      %625 = vmatprep.subr.bf16.mxu0 0
      %626 = vmatpush1.bf16.xpose.msra.mxu0 0
      %627 = vmatprep.subr.bf16.mxu0 0
      %628 = vmatpush1.bf16.xpose.msra.mxu0 0
      %629 = vmatprep.subr.bf16.mxu0 0
      %630 = vmatpush1.bf16.xpose.msra.mxu0 0
      %631 = vmatprep.subr.bf16.mxu0 0
      %632 = vmatpush1.bf16.xpose.msra.mxu0 0
      %633 = vmatprep.subr.bf16.mxu0 0
      %634 = vmatpush1.bf16.xpose.msra.mxu0 0
      %635 = vmatprep.subr.bf16.mxu0 0
      %636 = vmatpush1.bf16.xpose.msra.mxu0 0
      %637 = vmatprep.subr.bf16.mxu0 0
      %638 = vmatpush1.bf16.xpose.msra.mxu0 0
      %639 = vmatprep.mubr.bf16.mxu0 0
      %640 = vmatmul.mubr.bf16.gmra.mrb[0].mxu0 %v602
      %v641 = vpop.f32.mrb[0].mxu0
      %v642 = vadd.f32 0.0, %v641
      %v643 = vpop.f32.mrb[0].mxu0
      %v644 = vpop.f32.mrb[0].mxu0
      %v645 = vpop.f32.mrb[0].mxu0
      %646 = vdwg.mxu0
      %v647 = vsel %vm597, -1e+10, %v642
      %v648 = vsel %vm600, %v647, -inf
      %649 = vmax.xlane.f32.xlu0 %v648
      %v650 = vpop.xlane.xlu0 %649
      %v651 = vsub.f32 %v647, %v650
      %v652 = vmul.f32 %v651, 1.442695
      %v653 = vpow.pop %v652
      %v654 = vsel %vm600, %v653, 0.0
      %655 = vadd.xlane.f32.xlu0 %v654
      %v656 = vpop.xlane.xlu0 %655
      %v657 = vrcp.pop %v656
      %v658 = vmul.f32 %v653, %v657
      %v659 = vpack.c.bf16 %v658, %v658
      %661 = vrot.lane.b32.xlu0 %v599, 96
      %v662 = vpop.permute.xlu0 %661
      %v664 = vsel %vm600, %v659, 0
      %vm666 = vcmask 1043456
      %v668 = vsel %vm666, %v662, 0
      %670 = vmatprep.subr.bf16.mxu0 0
      %671 = vmatpush1.bf16.msra.mxu0 %v668
      %672 = vmatprep.subr.bf16.mxu0 0
      %673 = vmatpush1.bf16.msra.mxu0 0
      %674 = vmatprep.subr.bf16.mxu0 0
      %675 = vmatpush1.bf16.msra.mxu0 0
      %676 = vmatprep.subr.bf16.mxu0 0
      %677 = vmatpush1.bf16.msra.mxu0 0
      %678 = vmatprep.subr.bf16.mxu0 0
      %679 = vmatpush1.bf16.msra.mxu0 0
      %680 = vmatprep.subr.bf16.mxu0 0
      %681 = vmatpush1.bf16.msra.mxu0 0
      %682 = vmatprep.subr.bf16.mxu0 0
      %683 = vmatpush1.bf16.msra.mxu0 0
      %684 = vmatprep.subr.bf16.mxu0 0
      %685 = vmatpush1.bf16.msra.mxu0 0
      %686 = vmatprep.subr.bf16.mxu0 0
      %687 = vmatpush1.bf16.msra.mxu0 0
      %688 = vmatprep.subr.bf16.mxu0 0
      %689 = vmatpush1.bf16.msra.mxu0 0
      %690 = vmatprep.subr.bf16.mxu0 0
      %691 = vmatpush1.bf16.msra.mxu0 0
      %692 = vmatprep.subr.bf16.mxu0 0
      %693 = vmatpush1.bf16.msra.mxu0 0
      %694 = vmatprep.subr.bf16.mxu0 0
      %695 = vmatpush1.bf16.msra.mxu0 0
      %696 = vmatprep.subr.bf16.mxu0 0
      %697 = vmatpush1.bf16.msra.mxu0 0
      %698 = vmatprep.subr.bf16.mxu0 0
      %699 = vmatpush1.bf16.msra.mxu0 0
      %700 = vmatprep.subr.bf16.mxu0 0
      %701 = vmatpush1.bf16.msra.mxu0 0
      %702 = vmatprep.mubr.bf16.mxu0 0
      %703 = vmatmul.mubr.bf16.gmra.mrb[0].mxu0 %v664
      %v704 = vpop.f32.mrb[0].mxu0
      %v705 = vadd.f32 0.0, %v704
      %v706 = vpop.f32.mrb[0].mxu0
      %v707 = vpop.f32.mrb[0].mxu0
      %v708 = vpop.f32.mrb[0].mxu0
      %709 = vdwg.mxu0
      %711 = vrot.lane.b32.xlu0 %v598, 120
      %v712 = vpop.permute.xlu0 %711
      %713 = vrot.lane.b32.xlu0 %v599, 120
      %v714 = vpop.permute.xlu0 %713
      %v716 = vsel %vm600, %v712, 0
      %v719 = vsel %vm600, %v714, 0
      %721 = vmatprep.subr.bf16.mxu0 0
      %722 = vmatpush1.bf16.xpose.msra.mxu0 %v719
      %723 = vmatprep.subr.bf16.mxu0 0
      %724 = vmatpush1.bf16.xpose.msra.mxu0 0
      %725 = vmatprep.subr.bf16.mxu0 0
      %726 = vmatpush1.bf16.xpose.msra.mxu0 0
      %727 = vmatprep.subr.bf16.mxu0 0
      %728 = vmatpush1.bf16.xpose.msra.mxu0 0
      %729 = vmatprep.subr.bf16.mxu0 0
      %730 = vmatpush1.bf16.xpose.msra.mxu0 0
      %731 = vmatprep.subr.bf16.mxu0 0
      %732 = vmatpush1.bf16.xpose.msra.mxu0 0
      %733 = vmatprep.subr.bf16.mxu0 0
      %734 = vmatpush1.bf16.xpose.msra.mxu0 0
      %735 = vmatprep.subr.bf16.mxu0 0
      %736 = vmatpush1.bf16.xpose.msra.mxu0 0
      %737 = vmatprep.subr.bf16.mxu0 0
      %738 = vmatpush1.bf16.xpose.msra.mxu0 0
      %739 = vmatprep.subr.bf16.mxu0 0
      %740 = vmatpush1.bf16.xpose.msra.mxu0 0
      %741 = vmatprep.subr.bf16.mxu0 0
      %742 = vmatpush1.bf16.xpose.msra.mxu0 0
      %743 = vmatprep.subr.bf16.mxu0 0
      %744 = vmatpush1.bf16.xpose.msra.mxu0 0
      %745 = vmatprep.subr.bf16.mxu0 0
      %746 = vmatpush1.bf16.xpose.msra.mxu0 0
      %747 = vmatprep.subr.bf16.mxu0 0
      %748 = vmatpush1.bf16.xpose.msra.mxu0 0
      %749 = vmatprep.subr.bf16.mxu0 0
      %750 = vmatpush1.bf16.xpose.msra.mxu0 0
      %751 = vmatprep.subr.bf16.mxu0 0
      %752 = vmatpush1.bf16.xpose.msra.mxu0 0
      %753 = vmatprep.mubr.bf16.mxu0 0
      %754 = vmatmul.mubr.bf16.gmra.mrb[0].mxu0 %v716
      %v755 = vpop.f32.mrb[0].mxu0
      %v756 = vadd.f32 0.0, %v755
      %v757 = vpop.f32.mrb[0].mxu0
      %v758 = vpop.f32.mrb[0].mxu0
      %v759 = vpop.f32.mrb[0].mxu0
      %760 = vdwg.mxu0
      %v761 = vsel %vm597, -1e+10, %v756
      %v762 = vsel %vm600, %v761, -inf
      %763 = vmax.xlane.f32.xlu0 %v762
      %v764 = vpop.xlane.xlu0 %763
      %v765 = vsub.f32 %v761, %v764
      %v766 = vmul.f32 %v765, 1.442695
      %v767 = vpow.pop %v766
      %v768 = vsel %vm600, %v767, 0.0
      %769 = vadd.xlane.f32.xlu0 %v768
      %v770 = vpop.xlane.xlu0 %769
      %v771 = vrcp.pop %v770
      %v772 = vmul.f32 %v767, %v771
      %v773 = vpack.c.bf16 %v772, %v772
      %774 = vrot.lane.b32.xlu0 %v599, 88
      %v775 = vpop.permute.xlu0 %774
      %v777 = vsel %vm600, %v773, 0
      %v780 = vsel %vm666, %v775, 0
      %782 = vmatprep.subr.bf16.mxu0 0
      %783 = vmatpush1.bf16.msra.mxu0 %v780
      %784 = vmatprep.subr.bf16.mxu0 0
      %785 = vmatpush1.bf16.msra.mxu0 0
      %786 = vmatprep.subr.bf16.mxu0 0
      %787 = vmatpush1.bf16.msra.mxu0 0
      %788 = vmatprep.subr.bf16.mxu0 0
      %789 = vmatpush1.bf16.msra.mxu0 0
      %790 = vmatprep.subr.bf16.mxu0 0
      %791 = vmatpush1.bf16.msra.mxu0 0
      %792 = vmatprep.subr.bf16.mxu0 0
      %793 = vmatpush1.bf16.msra.mxu0 0
      %794 = vmatprep.subr.bf16.mxu0 0
      %795 = vmatpush1.bf16.msra.mxu0 0
      %796 = vmatprep.subr.bf16.mxu0 0
      %797 = vmatpush1.bf16.msra.mxu0 0
      %798 = vmatprep.subr.bf16.mxu0 0
      %799 = vmatpush1.bf16.msra.mxu0 0
      %800 = vmatprep.subr.bf16.mxu0 0
      %801 = vmatpush1.bf16.msra.mxu0 0
      %802 = vmatprep.subr.bf16.mxu0 0
      %803 = vmatpush1.bf16.msra.mxu0 0
      %804 = vmatprep.subr.bf16.mxu0 0
      %805 = vmatpush1.bf16.msra.mxu0 0
      %806 = vmatprep.subr.bf16.mxu0 0
      %807 = vmatpush1.bf16.msra.mxu0 0
      %808 = vmatprep.subr.bf16.mxu0 0
      %809 = vmatpush1.bf16.msra.mxu0 0
      %810 = vmatprep.subr.bf16.mxu0 0
      %811 = vmatpush1.bf16.msra.mxu0 0
      %812 = vmatprep.subr.bf16.mxu0 0
      %813 = vmatpush1.bf16.msra.mxu0 0
      %814 = vmatprep.mubr.bf16.mxu0 0
      %815 = vmatmul.mubr.bf16.gmra.mrb[0].mxu0 %v777
      %v816 = vpop.f32.mrb[0].mxu0
      %v817 = vadd.f32 0.0, %v816
      %v818 = vpop.f32.mrb[0].mxu0
      %v819 = vpop.f32.mrb[0].mxu0
      %v820 = vpop.f32.mrb[0].mxu0
      %821 = vdwg.mxu0
      %822 = vrot.lane.b32.xlu0 %v598, 112
      %v823 = vpop.permute.xlu0 %822
      %824 = vrot.lane.b32.xlu0 %v599, 112
      %v825 = vpop.permute.xlu0 %824
      %v827 = vsel %vm600, %v823, 0
      %v830 = vsel %vm600, %v825, 0
      %832 = vmatprep.subr.bf16.mxu0 0
      %833 = vmatpush1.bf16.xpose.msra.mxu0 %v830
      %834 = vmatprep.subr.bf16.mxu0 0
      %835 = vmatpush1.bf16.xpose.msra.mxu0 0
      %836 = vmatprep.subr.bf16.mxu0 0
      %837 = vmatpush1.bf16.xpose.msra.mxu0 0
      %838 = vmatprep.subr.bf16.mxu0 0
      %839 = vmatpush1.bf16.xpose.msra.mxu0 0
      %840 = vmatprep.subr.bf16.mxu0 0
      %841 = vmatpush1.bf16.xpose.msra.mxu0 0
      %842 = vmatprep.subr.bf16.mxu0 0
      %843 = vmatpush1.bf16.xpose.msra.mxu0 0
      %844 = vmatprep.subr.bf16.mxu0 0
      %845 = vmatpush1.bf16.xpose.msra.mxu0 0
      %846 = vmatprep.subr.bf16.mxu0 0
      %847 = vmatpush1.bf16.xpose.msra.mxu0 0
      %848 = vmatprep.subr.bf16.mxu0 0
      %849 = vmatpush1.bf16.xpose.msra.mxu0 0
      %850 = vmatprep.subr.bf16.mxu0 0
      %851 = vmatpush1.bf16.xpose.msra.mxu0 0
      %852 = vmatprep.subr.bf16.mxu0 0
      %853 = vmatpush1.bf16.xpose.msra.mxu0 0
      %854 = vmatprep.subr.bf16.mxu0 0
      %855 = vmatpush1.bf16.xpose.msra.mxu0 0
      %856 = vmatprep.subr.bf16.mxu0 0
      %857 = vmatpush1.bf16.xpose.msra.mxu0 0
      %858 = vmatprep.subr.bf16.mxu0 0
      %859 = vmatpush1.bf16.xpose.msra.mxu0 0
      %860 = vmatprep.subr.bf16.mxu0 0
      %861 = vmatpush1.bf16.xpose.msra.mxu0 0
      %862 = vmatprep.subr.bf16.mxu0 0
      %863 = vmatpush1.bf16.xpose.msra.mxu0 0
      %864 = vmatprep.mubr.bf16.mxu0 0
      %865 = vmatmul.mubr.bf16.gmra.mrb[0].mxu0 %v827
      %v866 = vpop.f32.mrb[0].mxu0
      %v867 = vadd.f32 0.0, %v866
      %v868 = vpop.f32.mrb[0].mxu0
      %v869 = vpop.f32.mrb[0].mxu0
      %v870 = vpop.f32.mrb[0].mxu0
      %871 = vdwg.mxu0
      %v872 = vsel %vm597, -1e+10, %v867
      %v873 = vsel %vm600, %v872, -inf
      %874 = vmax.xlane.f32.xlu0 %v873
      %v875 = vpop.xlane.xlu0 %874
      %v876 = vsub.f32 %v872, %v875
      %v877 = vmul.f32 %v876, 1.442695
      %v878 = vpow.pop %v877
      %v879 = vsel %vm600, %v878, 0.0
      %880 = vadd.xlane.f32.xlu0 %v879
      %v881 = vpop.xlane.xlu0 %880
      %v882 = vrcp.pop %v881
      %v883 = vmul.f32 %v878, %v882
      %v884 = vpack.c.bf16 %v883, %v883
      %885 = vrot.lane.b32.xlu0 %v599, 80
      %v886 = vpop.permute.xlu0 %885
      %v888 = vsel %vm600, %v884, 0
      %v891 = vsel %vm666, %v886, 0
      %893 = vmatprep.subr.bf16.mxu0 0
      %894 = vmatpush1.bf16.msra.mxu0 %v891
      %895 = vmatprep.subr.bf16.mxu0 0
      %896 = vmatpush1.bf16.msra.mxu0 0
      %897 = vmatprep.subr.bf16.mxu0 0
      %898 = vmatpush1.bf16.msra.mxu0 0
      %899 = vmatprep.subr.bf16.mxu0 0
      %900 = vmatpush1.bf16.msra.mxu0 0
      %901 = vmatprep.subr.bf16.mxu0 0
      %902 = vmatpush1.bf16.msra.mxu0 0
      %903 = vmatprep.subr.bf16.mxu0 0
      %904 = vmatpush1.bf16.msra.mxu0 0
      %905 = vmatprep.subr.bf16.mxu0 0
      %906 = vmatpush1.bf16.msra.mxu0 0
      %907 = vmatprep.subr.bf16.mxu0 0
      %908 = vmatpush1.bf16.msra.mxu0 0
      %909 = vmatprep.subr.bf16.mxu0 0
      %910 = vmatpush1.bf16.msra.mxu0 0
      %911 = vmatprep.subr.bf16.mxu0 0
      %912 = vmatpush1.bf16.msra.mxu0 0
      %913 = vmatprep.subr.bf16.mxu0 0
      %914 = vmatpush1.bf16.msra.mxu0 0
      %915 = vmatprep.subr.bf16.mxu0 0
      %916 = vmatpush1.bf16.msra.mxu0 0
      %917 = vmatprep.subr.bf16.mxu0 0
      %918 = vmatpush1.bf16.msra.mxu0 0
      %919 = vmatprep.subr.bf16.mxu0 0
      %920 = vmatpush1.bf16.msra.mxu0 0
      %921 = vmatprep.subr.bf16.mxu0 0
      %922 = vmatpush1.bf16.msra.mxu0 0
      %923 = vmatprep.subr.bf16.mxu0 0
      %924 = vmatpush1.bf16.msra.mxu0 0
      %925 = vmatprep.mubr.bf16.mxu0 0
      %926 = vmatmul.mubr.bf16.gmra.mrb[0].mxu0 %v888
      %v927 = vpop.f32.mrb[0].mxu0
      %v928 = vadd.f32 0.0, %v927
      %v929 = vpop.f32.mrb[0].mxu0
      %v930 = vpop.f32.mrb[0].mxu0
      %v931 = vpop.f32.mrb[0].mxu0
      %932 = vdwg.mxu0
      %933 = vrot.lane.b32.xlu0 %v598, 104
      %v934 = vpop.permute.xlu0 %933
      %935 = vrot.lane.b32.xlu0 %v599, 104
      %v936 = vpop.permute.xlu0 %935
      %v938 = vsel %vm600, %v934, 0
      %v941 = vsel %vm600, %v936, 0
      %943 = vmatprep.subr.bf16.mxu0 0
      %944 = vmatpush1.bf16.xpose.msra.mxu0 %v941
      %945 = vmatprep.subr.bf16.mxu0 0
      %946 = vmatpush1.bf16.xpose.msra.mxu0 0
      %947 = vmatprep.subr.bf16.mxu0 0
      %948 = vmatpush1.bf16.xpose.msra.mxu0 0
      %949 = vmatprep.subr.bf16.mxu0 0
      %950 = vmatpush1.bf16.xpose.msra.mxu0 0
      %951 = vmatprep.subr.bf16.mxu0 0
      %952 = vmatpush1.bf16.xpose.msra.mxu0 0
      %953 = vmatprep.subr.bf16.mxu0 0
      %954 = vmatpush1.bf16.xpose.msra.mxu0 0
      %955 = vmatprep.subr.bf16.mxu0 0
      %956 = vmatpush1.bf16.xpose.msra.mxu0 0
      %957 = vmatprep.subr.bf16.mxu0 0
      %958 = vmatpush1.bf16.xpose.msra.mxu0 0
      %959 = vmatprep.subr.bf16.mxu0 0
      %960 = vmatpush1.bf16.xpose.msra.mxu0 0
      %961 = vmatprep.subr.bf16.mxu0 0
      %962 = vmatpush1.bf16.xpose.msra.mxu0 0
      %963 = vmatprep.subr.bf16.mxu0 0
      %964 = vmatpush1.bf16.xpose.msra.mxu0 0
      %965 = vmatprep.subr.bf16.mxu0 0
      %966 = vmatpush1.bf16.xpose.msra.mxu0 0
      %967 = vmatprep.subr.bf16.mxu0 0
      %968 = vmatpush1.bf16.xpose.msra.mxu0 0
      %969 = vmatprep.subr.bf16.mxu0 0
      %970 = vmatpush1.bf16.xpose.msra.mxu0 0
      %971 = vmatprep.subr.bf16.mxu0 0
      %972 = vmatpush1.bf16.xpose.msra.mxu0 0
      %973 = vmatprep.subr.bf16.mxu0 0
      %974 = vmatpush1.bf16.xpose.msra.mxu0 0
      %975 = vmatprep.mubr.bf16.mxu0 0
      %976 = vmatmul.mubr.bf16.gmra.mrb[0].mxu0 %v938
      %v977 = vpop.f32.mrb[0].mxu0
      %v978 = vadd.f32 0.0, %v977
      %v979 = vpop.f32.mrb[0].mxu0
      %v980 = vpop.f32.mrb[0].mxu0
      %v981 = vpop.f32.mrb[0].mxu0
      %982 = vdwg.mxu0
      %v983 = vsel %vm597, -1e+10, %v978
      %v984 = vsel %vm600, %v983, -inf
      %985 = vmax.xlane.f32.xlu0 %v984
      %v986 = vpop.xlane.xlu0 %985
      %v987 = vsub.f32 %v983, %v986
      %v988 = vmul.f32 %v987, 1.442695
      %v989 = vpow.pop %v988
      %v990 = vsel %vm600, %v989, 0.0
      %991 = vadd.xlane.f32.xlu0 %v990
      %v992 = vpop.xlane.xlu0 %991
      %v993 = vrcp.pop %v992
      %v994 = vmul.f32 %v989, %v993
      %v995 = vpack.c.bf16 %v994, %v994
      %996 = vrot.lane.b32.xlu0 %v599, 72
      %v997 = vpop.permute.xlu0 %996
      %v999 = vsel %vm600, %v995, 0
      %v1002 = vsel %vm666, %v997, 0
      %1004 = vmatprep.subr.bf16.mxu0 0
      %1005 = vmatpush1.bf16.msra.mxu0 %v1002
      %1006 = vmatprep.subr.bf16.mxu0 0
      %1007 = vmatpush1.bf16.msra.mxu0 0
      %1008 = vmatprep.subr.bf16.mxu0 0
      %1009 = vmatpush1.bf16.msra.mxu0 0
      %1010 = vmatprep.subr.bf16.mxu0 0
      %1011 = vmatpush1.bf16.msra.mxu0 0
      %1012 = vmatprep.subr.bf16.mxu0 0
      %1013 = vmatpush1.bf16.msra.mxu0 0
      %1014 = vmatprep.subr.bf16.mxu0 0
      %1015 = vmatpush1.bf16.msra.mxu0 0
      %1016 = vmatprep.subr.bf16.mxu0 0
      %1017 = vmatpush1.bf16.msra.mxu0 0
      %1018 = vmatprep.subr.bf16.mxu0 0
      %1019 = vmatpush1.bf16.msra.mxu0 0
      %1020 = vmatprep.subr.bf16.mxu0 0
      %1021 = vmatpush1.bf16.msra.mxu0 0
      %1022 = vmatprep.subr.bf16.mxu0 0
      %1023 = vmatpush1.bf16.msra.mxu0 0
      %1024 = vmatprep.subr.bf16.mxu0 0
      %1025 = vmatpush1.bf16.msra.mxu0 0
      %1026 = vmatprep.subr.bf16.mxu0 0
      %1027 = vmatpush1.bf16.msra.mxu0 0
      %1028 = vmatprep.subr.bf16.mxu0 0
      %1029 = vmatpush1.bf16.msra.mxu0 0
      %1030 = vmatprep.subr.bf16.mxu0 0
      %1031 = vmatpush1.bf16.msra.mxu0 0
      %1032 = vmatprep.subr.bf16.mxu0 0
      %1033 = vmatpush1.bf16.msra.mxu0 0
      %1034 = vmatprep.subr.bf16.mxu0 0
      %1035 = vmatpush1.bf16.msra.mxu0 0
      %1036 = vmatprep.mubr.bf16.mxu0 0
      %1037 = vmatmul.mubr.bf16.gmra.mrb[0].mxu0 %v999
      %v1038 = vpop.f32.mrb[0].mxu0
      %v1039 = vadd.f32 0.0, %v1038
      %v1040 = vpop.f32.mrb[0].mxu0
      %v1041 = vpop.f32.mrb[0].mxu0
      %v1042 = vpop.f32.mrb[0].mxu0
      %1043 = vdwg.mxu0
      %1045 = vrot.lane.b32.xlu0 %v817, 8
      %v1046 = vpop.permute.xlu0 %1045
      %1049 = vrot.lane.b32.xlu0 %v928, 16
      %v1050 = vpop.permute.xlu0 %1049
      %1053 = vrot.lane.b32.xlu0 %v1039, 24
      %v1054 = vpop.permute.xlu0 %1053
      %v1056 = vsel %vm600, %v705, %v1046
      %vm1057 = vcmask 130048
      %v1058 = vsel %vm1057, %v1056, %v1050
      %vm1059 = vcmask 195584
      %v1060 = vsel %vm1059, %v1058, %v1054
      %v1061 = vpack.c.bf16 %v1060, %v1060
      %v1062 = vld [vmem:[%s7] sm:$0xf]
      %v1063 = vld [vmem:[%s7 + $0x4] sm:$0xf]
      %v1064 = vld [vmem:[%s7 + $0x8] sm:$0xf]
      %v1065 = vld [vmem:[%s7 + $0xc] sm:$0xf]
      %v1066 = vld [vmem:[%s8] sm:$0x1]
      %v1068 = vlaneseq
      %v1069 = vshrl.u32 %v1068, 7
      %v1070 = vsub.s32 0, %v1069
      %v1071 = vrot.slane %v1066, %v1070
      %v1077 = vunpack.c.l.b16 %v1062
      %v1078 = vunpack.c.l.b16 %v1063
      %v1079 = vunpack.c.l.b16 %v1064
      %v1080 = vunpack.c.l.b16 %v1065
      %v1081 = vpack.c.b16 %v1078, %v1077
      %v1082 = vpack.c.b16 %v1080, %v1079
      %v1086 = vsel %vm485, %v1061, 0
      %1088 = vmatprep.subr.bf16.mxu0 0
      %1089 = vmatpush1.bf16.msra.mxu0 %v1081
      %1090 = vmatprep.subr.bf16.mxu0 0
      %1091 = vmatpush1.bf16.msra.mxu0 %v1082
      %1092 = vmatprep.subr.bf16.mxu0 0
      %1093 = vmatpush1.bf16.msra.mxu0 0
      %1094 = vmatprep.subr.bf16.mxu0 0
      %1095 = vmatpush1.bf16.msra.mxu0 0
      %1096 = vmatprep.subr.bf16.mxu0 0
      %1097 = vmatpush1.bf16.msra.mxu0 0
      %1098 = vmatprep.subr.bf16.mxu0 0
      %1099 = vmatpush1.bf16.msra.mxu0 0
      %1100 = vmatprep.subr.bf16.mxu0 0
      %1101 = vmatpush1.bf16.msra.mxu0 0
      %1102 = vmatprep.subr.bf16.mxu0 0
      %1103 = vmatpush1.bf16.msra.mxu0 0
      %1104 = vmatprep.subr.bf16.mxu0 0
      %1105 = vmatpush1.bf16.msra.mxu0 0
      %1106 = vmatprep.subr.bf16.mxu0 0
      %1107 = vmatpush1.bf16.msra.mxu0 0
      %1108 = vmatprep.subr.bf16.mxu0 0
      %1109 = vmatpush1.bf16.msra.mxu0 0
      %1110 = vmatprep.subr.bf16.mxu0 0
      %1111 = vmatpush1.bf16.msra.mxu0 0
      %1112 = vmatprep.subr.bf16.mxu0 0
      %1113 = vmatpush1.bf16.msra.mxu0 0
      %1114 = vmatprep.subr.bf16.mxu0 0
      %1115 = vmatpush1.bf16.msra.mxu0 0
      %1116 = vmatprep.subr.bf16.mxu0 0
      %1117 = vmatpush1.bf16.msra.mxu0 0
      %1118 = vmatprep.subr.bf16.mxu0 0
      %1119 = vmatpush1.bf16.msra.mxu0 0
      %1120 = vmatprep.mubr.bf16.mxu0 0
      %1121 = vmatmul.mubr.bf16.gmra.mrb[0].mxu0 %v1086
      %v1122 = vpop.f32.mrb[0].mxu0
      %v1123 = vadd.f32 %v1071, %v1122
      %v1124 = vpop.f32.mrb[0].mxu0
      %v1125 = vpop.f32.mrb[0].mxu0
      %v1126 = vpop.f32.mrb[0].mxu0
      %1127 = vdwg.mxu0
      %v1128 = vadd.f32 %v459, %v1123
      %v1129 = vsel %vm485, %v1128, 0.0
      %1130 = vadd.xlane.f32.xlu0 %v1129
      %v1131 = vpop.xlane.xlu0 %1130
      %v1132 = vrcp.pop 32.0
      %v1133 = vmul.f32 %v1131, %v1132
      %v1134 = vsub.f32 %v1128, %v1133
      %v1135 = vmul.f32 %v1134, %v1134
      %v1136 = vsel %vm485, %v1135, 0.0
      %1137 = vadd.xlane.f32.xlu0 %v1136
      %v1138 = vpop.xlane.xlu0 %1137
      %v1139 = vmul.f32 %v1138, %v1132
      %v1140 = vadd.f32 %v1139, 1e-05
      %v1141 = vrsqrt.pop %v1140
      %v1142 = vmul.f32 %v1134, %v1141
      %v1143 = vld [vmem:[%s9] sm:$0x1]
      %v1145 = vlaneseq
      %v1146 = vshrl.u32 %v1145, 7
      %v1147 = vsub.s32 0, %v1146
      %v1148 = vrot.slane %v1143, %v1147
      %v1150 = vmul.f32 %v1142, %v1148
      %v1151 = vld [vmem:[%s10] sm:$0x1]
      %v1153 = vlaneseq
      %v1154 = vshrl.u32 %v1153, 7
      %v1155 = vsub.s32 0, %v1154
      %v1156 = vrot.slane %v1151, %v1155
      %v1158 = vadd.f32 %v1150, %v1156
      %1159 = vst.msk [vmem:[%s457] sm:$0xff] %vm485, %v1158
      %p1160 = scmp.lt.s32.totalorder %s26, 1
      %s1161 = scalar_select %p1160, %s26, 1
      %p1162 = scmp.lt.s32.totalorder %s27, 0
      %s1163 = scalar_select %p1162, %s27, 0
      %s1164 = sadd.s32 %s1163, %s1161
      %s1165 = smul.addr %s1164, 8
      %s1166 = scalar_lea.vmem %s11, %s1165
      // Predicated region
      $region65: #{decoder_layer.3} parent=63 // pred_check
        %p1167 = pneg %p304
      $region66: #{decoder_layer.3} parent=63 // pred_check_branch
        %1169 = sbr.rel (%p1167) target = $region68
      $region67: #{decoder_layer.3} parent=63 // pred_region
        _
      $region68: #{decoder_layer.3} parent=63 // pred_fallthru
        _
    $region64: #{decoder_layer.3} parent=5 // pred_fallthru
      _
    %p1170 = scmp.le.s32.totalorder 2, %s17
    // Predicated region
    $region69: #{decoder_layer.3} parent=5 // pred_check
      %p1171 = pneg %p1170
    $region70: #{decoder_layer.3} parent=5 // pred_check_branch
      %1173 = sbr.rel (%p1171) target = $region72
    $region71: #{decoder_layer.3} parent=5 // pred_region
      %s1174 = ssub.s32 %s17, 2
      // Predicated region
      $region73: #{decoder_layer.3} parent=71 // pred_check
        %p1175 = pneg %p310
      $region74: #{decoder_layer.3} parent=71 // pred_check_branch
        %1177 = sbr.rel (%p1175) target = $region76
      $region75: #{decoder_layer.3} parent=71 // pred_region
        %p1178 = scmp.lt.s32.totalorder %s28, 1
        %s1179 = scalar_select %p1178, %s28, 1
        %p1180 = scmp.lt.s32.totalorder %s29, 0
        %s1181 = scalar_select %p1180, %s29, 0
        %s1182 = sadd.s32 %s1181, %s1179
        %s1183 = smul.addr %s1182, 8
        %s1184 = scalar_lea.vmem %s11, %s1183
      $region76: #{decoder_layer.3} parent=71 // pred_fallthru
        _
    $region72: #{decoder_layer.3} parent=5 // pred_fallthru
      _
  $region6: #{decoder_layer.3} parent=0 // loop_footer
    %s21 = sadd.s32 1, %s17
  $region7: #{decoder_layer.3} parent=0 // loop_footer_branch
    %16 = sbr.rel target = $region3
  $region8: #{decoder_layer.3} parent=0 // loop_exit
    _

// kernel: decoder_layer.4
$region0: #{decoder_layer.4}
  #allocation0 [shape = 'u32[]', space=smem, size = 0x4, offset = 0x4, fixed_abs, tag = 'smem constant byte address 0x4 - core index']
  #allocation1 [shape = 'u32[144,128]{1,0:T(1,128)}', space=vmem, size = 0x12000, scoped, tag = 'internal scratch']
  %s0 = inlined_call_operand.vmem [shape: f32[2,8,32], index: 0, kind: input, shape index: {}]
  %s1 = inlined_call_operand.vmem [shape: f32[2,8,32], index: 1, kind: input, shape index: {}]
  %s2 = inlined_call_operand.vmem [shape: f32[2,1,1,8], index: 2, kind: input, shape index: {}]
  %s3 = inlined_call_operand.vmem [shape: bf16[32,32], index: 3, kind: input, shape index: {}]
  %s4 = inlined_call_operand.vmem [shape: f32[1,32], index: 4, kind: input, shape index: {}]
  %s5 = inlined_call_operand.vmem [shape: bf16[32,64], index: 5, kind: input, shape index: {}]
  %s6 = inlined_call_operand.vmem [shape: f32[1,64], index: 6, kind: input, shape index: {}]
  %s7 = inlined_call_operand.vmem [shape: bf16[32,32], index: 7, kind: input, shape index: {}]
  %s8 = inlined_call_operand.vmem [shape: f32[1,32], index: 8, kind: input, shape index: {}]
  %s9 = inlined_call_operand.vmem [shape: f32[1,32], index: 9, kind: input, shape index: {}]
  %s10 = inlined_call_operand.vmem [shape: f32[1,32], index: 10, kind: input, shape index: {}]
  %s11 = inlined_call_operand.vmem [shape: f32[2,8,32], index: 11, kind: output, shape index: {0}]
  %s12 = inlined_call_operand.hbm [shape: f32[2,4,8,8], index: 12, kind: output, shape index: {1}]
  %13 = xla_tuple %s11, %s12
  %s14 = sld [smem:[#allocation0]]
  $region85: #{decoder_layer.4} parent=0
    _
  %s16 = ssub.s32 1, %s14
  %s17 = scalar_select 0, %s16, %s14
  $region1: #{decoder_layer.4} parent=0
    #allocation2 [shape = 'u8[32768]{0}', space=vmem, size = 0x8000, scoped, tag = 'output window, operand 1']
    #allocation3 [shape = 's32[2]{0}', space=sflag, size = 0x8, scoped, tag = 'scoped memory for decoder_layer.4']
    %18 = vsyncpa [#allocation3], 0
    %s19 = scalar_lea.sflag [#allocation3], 1
    %20 = vsyncpa %s19, 0
    loop: start=0, step=1, limit=4
    $region2: #{decoder_layer.4} parent=1 // loop_pre_header
      _
    $region3: #{decoder_layer.4} parent=1 // loop_header
      %s22 = sphi 0, %s26
      %p23 = scmp.ge.s32.totalorder %s22, 4
      %s29 = sphi 0, %s41
      %s30 = sphi 0, %s37
      %s31 = sphi 0, %s29
      %s32 = sphi 0, %s30
      %s33 = sphi 0, %s31
      %s34 = sphi 0, %s32
      %s46 = sphi 0, %s48
      %s49 = sphi 0, %s46
      %s50 = sphi 0, %s49
      %s66 = sphi 0, %s50
      %s72 = sphi 0, %s74
      %s75 = sphi 0, %s72
      %s76 = sphi 0, %s75
      %s92 = sphi 0, %s76
      %s98 = sphi 0, %s100
      %s101 = sphi 0, %s98
      %s102 = sphi 0, %s101
      %s118 = sphi 0, %s102
      %s122 = sphi 0, %s122
      %s124 = sphi 0, %s122
      %s125 = sphi 0, %s124
      %s139 = sphi 0, %s125
      %s143 = sphi 0, %s143
      %s145 = sphi 0, %s143
      %s146 = sphi 0, %s145
      %s160 = sphi 0, %s146
      %s164 = sphi 0, %s164
      %s166 = sphi 0, %s164
      %s167 = sphi 0, %s166
      %s181 = sphi 0, %s167
      %s185 = sphi 0, %s185
      %s187 = sphi 0, %s185
      %s188 = sphi 0, %s187
      %s202 = sphi 0, %s188
      %s206 = sphi 0, %s206
      %s208 = sphi 0, %s206
      %s209 = sphi 0, %s208
      %s223 = sphi 0, %s209
      %s227 = sphi 0, %s227
      %s229 = sphi 0, %s227
      %s230 = sphi 0, %s229
      %s244 = sphi 0, %s230
      %s248 = sphi 0, %s248
      %s250 = sphi 0, %s248
      %s251 = sphi 0, %s250
      %s265 = sphi 0, %s251
      %s269 = sphi 0, %s269
      %s271 = sphi 0, %s269
      %s272 = sphi 0, %s271
      %s286 = sphi 0, %s272
      %s294 = sphi 0, %s296
      %s297 = sphi 0, %s294
      %s298 = sphi 0, %s297
      %s314 = sphi 0, %s298
      %s322 = sphi 0, %s324
      %s325 = sphi 0, %s322
      %s326 = sphi 0, %s325
      %s342 = sphi 0, %s326
    $region4: #{decoder_layer.4} parent=1 // loop_header_branch
      %25 = sbr.rel (%p23) target = $region8
    $region5: #{decoder_layer.4} parent=1 // loop_body
      %s27 = ssub.s32 %s22, 1
      %s28 = ssub.s32 %s22, 2
      %s35 = sadd.s32 1, %s30
      %p36 = scmp.ge.s32.totalorder %s35, 1
      %s37 = scalar_select %p36, 0, %s35
      %s38 = sadd.s32 1, %s29
      %s39 = scalar_select %p36, %s38, %s29
      %p40 = scmp.ge.s32.totalorder %s39, 2
      %s41 = scalar_select %p40, 0, %s39
      %s42 = ssub.s32 %s29, %s41
      %s43 = ssub.s32 %s30, %s37
      %s44 = sor.u32 %s42, %s43
      %p45 = scmp.eq.s32.totalorder %s44, 0
      %s47 = sadd.s32 %s46, 1
      %s48 = scalar_select %p45, %s46, %s47
      %p51 = pneg %p45
      %p52 = scmp.eq.s32.totalorder %s22, 1
      %p53 = por %p51, %p52
      %p54 = scmp.ne.s32.totalorder %s46, %s49
      %p55 = scmp.eq.s32.totalorder %s22, 0
      %p56 = por %p54, %p55
      %p57 = scmp.ne.s32.totalorder %s46, %s49
      %p58 = scmp.eq.s32.totalorder %s27, 1
      %p59 = por %p57, %p58
      %p60 = scmp.ne.s32.totalorder %s49, %s50
      %p61 = scmp.eq.s32.totalorder %s27, 0
      %p62 = por %p60, %p61
      %p63 = scmp.ne.s32.totalorder %s49, %s50
      %p64 = scmp.eq.s32.totalorder %s28, 1
      %p65 = por %p63, %p64
      %p67 = scmp.ne.s32.totalorder %s50, %s66
      %p68 = scmp.eq.s32.totalorder %s28, 0
      %p69 = por %p67, %p68
      %s70 = ssub.s32 %s29, %s41
      %p71 = scmp.eq.s32.totalorder %s70, 0
      %s73 = sadd.s32 %s72, 1
      %s74 = scalar_select %p71, %s72, %s73
      %p77 = pneg %p71
      %p78 = scmp.eq.s32.totalorder %s22, 1
      %p79 = por %p77, %p78
      %p80 = scmp.ne.s32.totalorder %s72, %s75
      %p81 = scmp.eq.s32.totalorder %s22, 0
      %p82 = por %p80, %p81
      %p83 = scmp.ne.s32.totalorder %s72, %s75
      %p84 = scmp.eq.s32.totalorder %s27, 1
      %p85 = por %p83, %p84
      %p86 = scmp.ne.s32.totalorder %s75, %s76
      %p87 = scmp.eq.s32.totalorder %s27, 0
      %p88 = por %p86, %p87
      %p89 = scmp.ne.s32.totalorder %s75, %s76
      %p90 = scmp.eq.s32.totalorder %s28, 1
      %p91 = por %p89, %p90
      %p93 = scmp.ne.s32.totalorder %s76, %s92
      %p94 = scmp.eq.s32.totalorder %s28, 0
      %p95 = por %p93, %p94
      %s96 = ssub.s32 %s29, %s41
      %p97 = scmp.eq.s32.totalorder %s96, 0
      %s99 = sadd.s32 %s98, 1
      %s100 = scalar_select %p97, %s98, %s99
      %p103 = pneg %p97
      %p104 = scmp.eq.s32.totalorder %s22, 1
      %p105 = por %p103, %p104
      %p106 = scmp.ne.s32.totalorder %s98, %s101
      %p107 = scmp.eq.s32.totalorder %s22, 0
      %p108 = por %p106, %p107
      %p109 = scmp.ne.s32.totalorder %s98, %s101
      %p110 = scmp.eq.s32.totalorder %s27, 1
      %p111 = por %p109, %p110
      %p112 = scmp.ne.s32.totalorder %s101, %s102
      %p113 = scmp.eq.s32.totalorder %s27, 0
      %p114 = por %p112, %p113
      %p115 = scmp.ne.s32.totalorder %s101, %s102
      %p116 = scmp.eq.s32.totalorder %s28, 1
      %p117 = por %p115, %p116
      %p119 = scmp.ne.s32.totalorder %s102, %s118
      %p120 = scmp.eq.s32.totalorder %s28, 0
      %p121 = por %p119, %p120
      %s123 = sadd.s32 %s122, 1
      %p126 = scmp.eq.s32.totalorder %s22, 1
      %p127 = scmp.ne.s32.totalorder %s122, %s124
      %p128 = scmp.eq.s32.totalorder %s22, 0
      %p129 = por %p127, %p128
      %p130 = scmp.ne.s32.totalorder %s122, %s124
      %p131 = scmp.eq.s32.totalorder %s27, 1
      %p132 = por %p130, %p131
      %p133 = scmp.ne.s32.totalorder %s124, %s125
      %p134 = scmp.eq.s32.totalorder %s27, 0
      %p135 = por %p133, %p134
      %p136 = scmp.ne.s32.totalorder %s124, %s125
      %p137 = scmp.eq.s32.totalorder %s28, 1
      %p138 = por %p136, %p137
      %p140 = scmp.ne.s32.totalorder %s125, %s139
      %p141 = scmp.eq.s32.totalorder %s28, 0
      %p142 = por %p140, %p141
      %s144 = sadd.s32 %s143, 1
      %p147 = scmp.eq.s32.totalorder %s22, 1
      %p148 = scmp.ne.s32.totalorder %s143, %s145
      %p149 = scmp.eq.s32.totalorder %s22, 0
      %p150 = por %p148, %p149
      %p151 = scmp.ne.s32.totalorder %s143, %s145
      %p152 = scmp.eq.s32.totalorder %s27, 1
      %p153 = por %p151, %p152
      %p154 = scmp.ne.s32.totalorder %s145, %s146
      %p155 = scmp.eq.s32.totalorder %s27, 0
      %p156 = por %p154, %p155
      %p157 = scmp.ne.s32.totalorder %s145, %s146
      %p158 = scmp.eq.s32.totalorder %s28, 1
      %p159 = por %p157, %p158
      %p161 = scmp.ne.s32.totalorder %s146, %s160
      %p162 = scmp.eq.s32.totalorder %s28, 0
      %p163 = por %p161, %p162
      %s165 = sadd.s32 %s164, 1
      %p168 = scmp.eq.s32.totalorder %s22, 1
      %p169 = scmp.ne.s32.totalorder %s164, %s166
      %p170 = scmp.eq.s32.totalorder %s22, 0
      %p171 = por %p169, %p170
      %p172 = scmp.ne.s32.totalorder %s164, %s166
      %p173 = scmp.eq.s32.totalorder %s27, 1
      %p174 = por %p172, %p173
      %p175 = scmp.ne.s32.totalorder %s166, %s167
      %p176 = scmp.eq.s32.totalorder %s27, 0
      %p177 = por %p175, %p176
      %p178 = scmp.ne.s32.totalorder %s166, %s167
      %p179 = scmp.eq.s32.totalorder %s28, 1
      %p180 = por %p178, %p179
      %p182 = scmp.ne.s32.totalorder %s167, %s181
      %p183 = scmp.eq.s32.totalorder %s28, 0
      %p184 = por %p182, %p183
      %s186 = sadd.s32 %s185, 1
      %p189 = scmp.eq.s32.totalorder %s22, 1
      %p190 = scmp.ne.s32.totalorder %s185, %s187
      %p191 = scmp.eq.s32.totalorder %s22, 0
      %p192 = por %p190, %p191
      %p193 = scmp.ne.s32.totalorder %s185, %s187
      %p194 = scmp.eq.s32.totalorder %s27, 1
      %p195 = por %p193, %p194
      %p196 = scmp.ne.s32.totalorder %s187, %s188
      %p197 = scmp.eq.s32.totalorder %s27, 0
      %p198 = por %p196, %p197
      %p199 = scmp.ne.s32.totalorder %s187, %s188
      %p200 = scmp.eq.s32.totalorder %s28, 1
      %p201 = por %p199, %p200
      %p203 = scmp.ne.s32.totalorder %s188, %s202
      %p204 = scmp.eq.s32.totalorder %s28, 0
      %p205 = por %p203, %p204
      %s207 = sadd.s32 %s206, 1
      %p210 = scmp.eq.s32.totalorder %s22, 1
      %p211 = scmp.ne.s32.totalorder %s206, %s208
      %p212 = scmp.eq.s32.totalorder %s22, 0
      %p213 = por %p211, %p212
      %p214 = scmp.ne.s32.totalorder %s206, %s208
      %p215 = scmp.eq.s32.totalorder %s27, 1
      %p216 = por %p214, %p215
      %p217 = scmp.ne.s32.totalorder %s208, %s209
      %p218 = scmp.eq.s32.totalorder %s27, 0
      %p219 = por %p217, %p218
      %p220 = scmp.ne.s32.totalorder %s208, %s209
      %p221 = scmp.eq.s32.totalorder %s28, 1
      %p222 = por %p220, %p221
      %p224 = scmp.ne.s32.totalorder %s209, %s223
      %p225 = scmp.eq.s32.totalorder %s28, 0
      %p226 = por %p224, %p225
      %s228 = sadd.s32 %s227, 1
      %p231 = scmp.eq.s32.totalorder %s22, 1
      %p232 = scmp.ne.s32.totalorder %s227, %s229
      %p233 = scmp.eq.s32.totalorder %s22, 0
      %p234 = por %p232, %p233
      %p235 = scmp.ne.s32.totalorder %s227, %s229
      %p236 = scmp.eq.s32.totalorder %s27, 1
      %p237 = por %p235, %p236
      %p238 = scmp.ne.s32.totalorder %s229, %s230
      %p239 = scmp.eq.s32.totalorder %s27, 0
      %p240 = por %p238, %p239
      %p241 = scmp.ne.s32.totalorder %s229, %s230
      %p242 = scmp.eq.s32.totalorder %s28, 1
      %p243 = por %p241, %p242
      %p245 = scmp.ne.s32.totalorder %s230, %s244
      %p246 = scmp.eq.s32.totalorder %s28, 0
      %p247 = por %p245, %p246
      %s249 = sadd.s32 %s248, 1
      %p252 = scmp.eq.s32.totalorder %s22, 1
      %p253 = scmp.ne.s32.totalorder %s248, %s250
      %p254 = scmp.eq.s32.totalorder %s22, 0
      %p255 = por %p253, %p254
      %p256 = scmp.ne.s32.totalorder %s248, %s250
      %p257 = scmp.eq.s32.totalorder %s27, 1
      %p258 = por %p256, %p257
      %p259 = scmp.ne.s32.totalorder %s250, %s251
      %p260 = scmp.eq.s32.totalorder %s27, 0
      %p261 = por %p259, %p260
      %p262 = scmp.ne.s32.totalorder %s250, %s251
      %p263 = scmp.eq.s32.totalorder %s28, 1
      %p264 = por %p262, %p263
      %p266 = scmp.ne.s32.totalorder %s251, %s265
      %p267 = scmp.eq.s32.totalorder %s28, 0
      %p268 = por %p266, %p267
      %s270 = sadd.s32 %s269, 1
      %p273 = scmp.eq.s32.totalorder %s22, 1
      %p274 = scmp.ne.s32.totalorder %s269, %s271
      %p275 = scmp.eq.s32.totalorder %s22, 0
      %p276 = por %p274, %p275
      %p277 = scmp.ne.s32.totalorder %s269, %s271
      %p278 = scmp.eq.s32.totalorder %s27, 1
      %p279 = por %p277, %p278
      %p280 = scmp.ne.s32.totalorder %s271, %s272
      %p281 = scmp.eq.s32.totalorder %s27, 0
      %p282 = por %p280, %p281
      %p283 = scmp.ne.s32.totalorder %s271, %s272
      %p284 = scmp.eq.s32.totalorder %s28, 1
      %p285 = por %p283, %p284
      %p287 = scmp.ne.s32.totalorder %s272, %s286
      %p288 = scmp.eq.s32.totalorder %s28, 0
      %p289 = por %p287, %p288
      %s290 = ssub.s32 %s29, %s41
      %s291 = ssub.s32 %s30, %s37
      %s292 = sor.u32 %s290, %s291
      %p293 = scmp.eq.s32.totalorder %s292, 0
      %s295 = sadd.s32 %s294, 1
      %s296 = scalar_select %p293, %s294, %s295
      %p299 = pneg %p293
      %p300 = scmp.eq.s32.totalorder %s22, 1
      %p301 = por %p299, %p300
      %p302 = scmp.ne.s32.totalorder %s294, %s297
      %p303 = scmp.eq.s32.totalorder %s22, 0
      %p304 = por %p302, %p303
      %p305 = scmp.ne.s32.totalorder %s294, %s297
      %p306 = scmp.eq.s32.totalorder %s27, 1
      %p307 = por %p305, %p306
      %p308 = scmp.ne.s32.totalorder %s297, %s298
      %p309 = scmp.eq.s32.totalorder %s27, 0
      %p310 = por %p308, %p309
      %p311 = scmp.ne.s32.totalorder %s297, %s298
      %p312 = scmp.eq.s32.totalorder %s28, 1
      %p313 = por %p311, %p312
      %p315 = scmp.ne.s32.totalorder %s298, %s314
      %p316 = scmp.eq.s32.totalorder %s28, 0
      %p317 = por %p315, %p316
      %s318 = ssub.s32 %s29, %s41
      %s319 = ssub.s32 %s30, %s37
      %s320 = sor.u32 %s318, %s319
      %p321 = scmp.eq.s32.totalorder %s320, 0
      %s323 = sadd.s32 %s322, 1
      %s324 = scalar_select %p321, %s322, %s323
      %p327 = pneg %p321
      %p328 = scmp.eq.s32.totalorder %s22, 1
      %p329 = por %p327, %p328
      %p330 = scmp.ne.s32.totalorder %s322, %s325
      %p331 = scmp.eq.s32.totalorder %s22, 0
      %p332 = por %p330, %p331
      %p333 = scmp.ne.s32.totalorder %s322, %s325
      %p334 = scmp.eq.s32.totalorder %s27, 1
      %p335 = por %p333, %p334
      %p336 = scmp.ne.s32.totalorder %s325, %s326
      %p337 = scmp.eq.s32.totalorder %s27, 0
      %p338 = por %p336, %p337
      %p339 = scmp.ne.s32.totalorder %s325, %s326
      %p340 = scmp.eq.s32.totalorder %s28, 1
      %p341 = por %p339, %p340
      %p343 = scmp.ne.s32.totalorder %s326, %s342
      %p344 = scmp.eq.s32.totalorder %s28, 0
      %p345 = por %p343, %p344
      %p346 = scmp.le.s32.totalorder 1, %s22
      %p347 = scmp.lt.s32.totalorder %s22, 3
      %p348 = pnand %p346, %p347
      %p349 = pneg %p348
      // Predicated region
      $region9: #{decoder_layer.4} parent=5 // pred_check
        _
      $region10: #{decoder_layer.4} parent=5 // pred_check_branch
        %351 = sbr.rel (%p348) target = $region12
      $region11: #{decoder_layer.4} parent=5 // pred_region
        %s352 = ssub.s32 %s22, 1
        // Predicated region
        $region13: #{decoder_layer.4} parent=11 // pred_check
          %p353 = pneg %p135
        $region14: #{decoder_layer.4} parent=11 // pred_check_branch
          %355 = sbr.rel (%p353) target = $region16
        $region15: #{decoder_layer.4} parent=11 // pred_region
          _
        $region16: #{decoder_layer.4} parent=11 // pred_fallthru
          _
        // Predicated region
        $region17: #{decoder_layer.4} parent=11 // pred_check
          %p356 = pneg %p156
        $region18: #{decoder_layer.4} parent=11 // pred_check_branch
          %358 = sbr.rel (%p356) target = $region20
        $region19: #{decoder_layer.4} parent=11 // pred_region
          _
        $region20: #{decoder_layer.4} parent=11 // pred_fallthru
          _
        // Predicated region
        $region21: #{decoder_layer.4} parent=11 // pred_check
          %p359 = pneg %p177
        $region22: #{decoder_layer.4} parent=11 // pred_check_branch
          %361 = sbr.rel (%p359) target = $region24
        $region23: #{decoder_layer.4} parent=11 // pred_region
          _
        $region24: #{decoder_layer.4} parent=11 // pred_fallthru
          _
        // Predicated region
        $region25: #{decoder_layer.4} parent=11 // pred_check
          %p362 = pneg %p198
        $region26: #{decoder_layer.4} parent=11 // pred_check_branch
          %364 = sbr.rel (%p362) target = $region28
        $region27: #{decoder_layer.4} parent=11 // pred_region
          _
        $region28: #{decoder_layer.4} parent=11 // pred_fallthru
          _
        // Predicated region
        $region29: #{decoder_layer.4} parent=11 // pred_check
          %p365 = pneg %p219
        $region30: #{decoder_layer.4} parent=11 // pred_check_branch
          %367 = sbr.rel (%p365) target = $region32
        $region31: #{decoder_layer.4} parent=11 // pred_region
          _
        $region32: #{decoder_layer.4} parent=11 // pred_fallthru
          _
        // Predicated region
        $region33: #{decoder_layer.4} parent=11 // pred_check
          %p368 = pneg %p240
        $region34: #{decoder_layer.4} parent=11 // pred_check_branch
          %370 = sbr.rel (%p368) target = $region36
        $region35: #{decoder_layer.4} parent=11 // pred_region
          _
        $region36: #{decoder_layer.4} parent=11 // pred_fallthru
          _
        // Predicated region
        $region37: #{decoder_layer.4} parent=11 // pred_check
          %p371 = pneg %p261
        $region38: #{decoder_layer.4} parent=11 // pred_check_branch
          %373 = sbr.rel (%p371) target = $region40
        $region39: #{decoder_layer.4} parent=11 // pred_region
          _
        $region40: #{decoder_layer.4} parent=11 // pred_fallthru
          _
        // Predicated region
        $region41: #{decoder_layer.4} parent=11 // pred_check
          %p374 = pneg %p282
        $region42: #{decoder_layer.4} parent=11 // pred_check_branch
          %376 = sbr.rel (%p374) target = $region44
        $region43: #{decoder_layer.4} parent=11 // pred_region
          _
        $region44: #{decoder_layer.4} parent=11 // pred_fallthru
          _
      $region12: #{decoder_layer.4} parent=5 // pred_fallthru
        _
      %p377 = scmp.lt.s32.totalorder %s22, 2
      // Predicated region
      $region45: #{decoder_layer.4} parent=5 // pred_check
        %p378 = pneg %p377
      $region46: #{decoder_layer.4} parent=5 // pred_check_branch
        %380 = sbr.rel (%p378) target = $region48
      $region47: #{decoder_layer.4} parent=5 // pred_region
        // Predicated region
        $region49: #{decoder_layer.4} parent=47 // pred_check
          %p381 = pneg %p56
        $region50: #{decoder_layer.4} parent=47 // pred_check_branch
          %383 = sbr.rel (%p381) target = $region52
        $region51: #{decoder_layer.4} parent=47 // pred_region
          %p384 = scmp.lt.s32.totalorder %s29, 1
          %s385 = scalar_select %p384, %s29, 1
          %p386 = scmp.lt.s32.totalorder %s30, 0
          %s387 = scalar_select %p386, %s30, 0
          %s388 = sadd.s32 %s387, %s385
          %s389 = smul.addr %s388, 8
          %s390 = scalar_lea.vmem %s0, %s389
        $region52: #{decoder_layer.4} parent=47 // pred_fallthru
          _
        // Predicated region
        $region53: #{decoder_layer.4} parent=47 // pred_check
          %p391 = pneg %p82
        $region54: #{decoder_layer.4} parent=47 // pred_check_branch
          %393 = sbr.rel (%p391) target = $region56
        $region55: #{decoder_layer.4} parent=47 // pred_region
          %p394 = scmp.lt.s32.totalorder %s29, 1
          %s395 = scalar_select %p394, %s29, 1
          %s396 = smul.addr %s395, 8
          %s397 = scalar_lea.vmem %s1, %s396
        $region56: #{decoder_layer.4} parent=47 // pred_fallthru
          _
        // Predicated region
        $region57: #{decoder_layer.4} parent=47 // pred_check
          %p398 = pneg %p108
        $region58: #{decoder_layer.4} parent=47 // pred_check_branch
          %400 = sbr.rel (%p398) target = $region60
        $region59: #{decoder_layer.4} parent=47 // pred_region
          %p401 = scmp.lt.s32.totalorder %s29, 1
          %s402 = scalar_select %p401, %s29, 1
          %s403 = scalar_lea.vmem %s2, %s402
        $region60: #{decoder_layer.4} parent=47 // pred_fallthru
          _
      $region48: #{decoder_layer.4} parent=5 // pred_fallthru
        _
      %p404 = scmp.le.s32.totalorder 1, %s22
      %p405 = scmp.lt.s32.totalorder %s22, 3
      %p406 = pnand %p404, %p405
      %p407 = pneg %p406
      // Predicated region
      $region61: #{decoder_layer.4} parent=5 // pred_check
        _
      $region62: #{decoder_layer.4} parent=5 // pred_check_branch
        %409 = sbr.rel (%p406) target = $region64
      $region63: #{decoder_layer.4} parent=5 // pred_region
        %s410 = ssub.s32 %s22, 1
        %p411 = scmp.lt.s32.totalorder %s31, 1
        %s412 = scalar_select %p411, %s31, 1
        %p413 = scmp.lt.s32.totalorder %s32, 0
        %s414 = scalar_select %p413, %s32, 0
        %s415 = sadd.s32 %s414, %s412
        %s416 = smul.addr %s415, 8
        %s417 = scalar_lea.vmem %s0, %s416
        %p418 = pneg %p62
        %p419 = pneg %p59
        %p420 = scmp.lt.s32.totalorder %s31, 1
        %s421 = scalar_select %p420, %s31, 1
        %s422 = smul.addr %s421, 8
        %s423 = scalar_lea.vmem %s1, %s422
        %p424 = pneg %p88
        %p425 = pneg %p85
        %p426 = scmp.lt.s32.totalorder %s31, 1
        %s427 = scalar_select %p426, %s31, 1
        %s428 = scalar_lea.vmem %s2, %s427
        %p429 = pneg %p114
        %p430 = pneg %p111
        %p431 = pneg %p135
        %p432 = pneg %p132
        %p433 = pneg %p156
        %p434 = pneg %p153
        %p435 = pneg %p177
        %p436 = pneg %p174
        %p437 = pneg %p198
        %p438 = pneg %p195
        %p439 = pneg %p219
        %p440 = pneg %p216
        %p441 = pneg %p240
        %p442 = pneg %p237
        %p443 = pneg %p261
        %p444 = pneg %p258
        %p445 = pneg %p282
        %p446 = pneg %p279
        %p447 = pneg %p310
        %p448 = pneg %p307
        %p449 = scmp.lt.s32.totalorder %s31, 1
        %s450 = scalar_select %p449, %s31, 1
        %p451 = scmp.lt.s32.totalorder %s32, 0
        %s452 = scalar_select %p451, %s32, 0
        %s453 = sadd.s32 %s452, %s450
        %s454 = smul.addr %s453, 8
        %s455 = scalar_lea.vmem %s11, %s454
        %p456 = pneg %p338
        %p457 = pneg %p335
        %s458 = sand.u32 %s325, 1
        %s459 = scalar_lea.sflag [#allocation3], %s458
        %s460 = sand.u32 %s325, 1
        %s461 = smul.addr %s460, 32
        %s462 = scalar_lea.vmem [#allocation2], %s461
        %p463 = scmp.lt.s32.totalorder %s31, 1
        %s464 = scalar_select %p463, %s31, 1
        %p465 = scmp.lt.s32.totalorder %s32, 0
        %s466 = scalar_select %p465, %s32, 0
        %s467 = sadd.s32 %s466, %s464
        %s468 = smul.addr %s467, 8
        %s469 = scalar_lea.vmem %s0, %s468
        %p470 = scmp.lt.s32.totalorder %s31, 1
        %s471 = scalar_select %p470, %s31, 1
        %s472 = smul.addr %s471, 8
        %s473 = scalar_lea.vmem %s1, %s472
        %p474 = scmp.lt.s32.totalorder %s31, 1
        %s475 = scalar_select %p474, %s31, 1
        %s476 = scalar_lea.vmem %s2, %s475
        %p477 = scmp.lt.s32.totalorder %s31, 1
        %s478 = scalar_select %p477, %s31, 1
        %p479 = scmp.lt.s32.totalorder %s32, 0
        %s480 = scalar_select %p479, %s32, 0
        %s481 = sadd.s32 %s480, %s478
        %s482 = smul.addr %s481, 8
        %s483 = scalar_lea.vmem %s11, %s482
        %v485 = vld [vmem:[%s469] sm:$0xff]
        %v486 = vld [vmem:[%s473] sm:$0xff]
        %v487 = vpack.c.bf16 %v485, %v485
        %v488 = vld [vmem:[%s3] sm:$0xf]
        %v489 = vld [vmem:[%s3 + $0x4] sm:$0xf]
        %v490 = vld [vmem:[%s3 + $0x8] sm:$0xf]
        %v491 = vld [vmem:[%s3 + $0xc] sm:$0xf]
        %v492 = vld [vmem:[%s4] sm:$0x1]
        %v494 = vlaneseq
        %v495 = vshrl.u32 %v494, 7
        %v496 = vsub.s32 0, %v495
        %v497 = vrot.slane %v492, %v496
        %v503 = vunpack.c.l.b16 %v488
        %v504 = vunpack.c.l.b16 %v489
        %v505 = vunpack.c.l.b16 %v490
        %v506 = vunpack.c.l.b16 %v491
        %v507 = vpack.c.b16 %v504, %v503
        %v508 = vpack.c.b16 %v506, %v505
        %vm511 = vcmask 261120
        %v513 = vsel %vm511, %v487, 0
        %515 = vmatprep.subr.bf16.mxu0 0
        %516 = vmatpush1.bf16.msra.mxu0 %v507
        %517 = vmatprep.subr.bf16.mxu0 0
        %518 = vmatpush1.bf16.msra.mxu0 %v508
        %519 = vmatprep.subr.bf16.mxu0 0
        %520 = vmatpush1.bf16.msra.mxu0 0
        %521 = vmatprep.subr.bf16.mxu0 0
        %522 = vmatpush1.bf16.msra.mxu0 0
        %523 = vmatprep.subr.bf16.mxu0 0
        %524 = vmatpush1.bf16.msra.mxu0 0
        %525 = vmatprep.subr.bf16.mxu0 0
        %526 = vmatpush1.bf16.msra.mxu0 0
        %527 = vmatprep.subr.bf16.mxu0 0
        %528 = vmatpush1.bf16.msra.mxu0 0
        %529 = vmatprep.subr.bf16.mxu0 0
        %530 = vmatpush1.bf16.msra.mxu0 0
        %531 = vmatprep.subr.bf16.mxu0 0
        %532 = vmatpush1.bf16.msra.mxu0 0
        %533 = vmatprep.subr.bf16.mxu0 0
        %534 = vmatpush1.bf16.msra.mxu0 0
        %535 = vmatprep.subr.bf16.mxu0 0
        %536 = vmatpush1.bf16.msra.mxu0 0
        %537 = vmatprep.subr.bf16.mxu0 0
        %538 = vmatpush1.bf16.msra.mxu0 0
        %539 = vmatprep.subr.bf16.mxu0 0
        %540 = vmatpush1.bf16.msra.mxu0 0
        %541 = vmatprep.subr.bf16.mxu0 0
        %542 = vmatpush1.bf16.msra.mxu0 0
        %543 = vmatprep.subr.bf16.mxu0 0
        %544 = vmatpush1.bf16.msra.mxu0 0
        %545 = vmatprep.subr.bf16.mxu0 0
        %546 = vmatpush1.bf16.msra.mxu0 0
        %547 = vmatprep.mubr.bf16.mxu0 0
        %548 = vmatmul.mubr.bf16.gmra.mrb[0].mxu0 %v513
        %v549 = vpop.f32.mrb[0].mxu0
        %v550 = vadd.f32 %v497, %v549
        %v551 = vpop.f32.mrb[0].mxu0
        %v552 = vpop.f32.mrb[0].mxu0
        %v553 = vpop.f32.mrb[0].mxu0
        %554 = vdwg.mxu0
        %v555 = vpack.c.bf16 %v486, %v486
        %v556 = vld [vmem:[%s5] sm:$0xf]
        %v557 = vld [vmem:[%s5 + $0x4] sm:$0xf]
        %v558 = vld [vmem:[%s5 + $0x8] sm:$0xf]
        %v559 = vld [vmem:[%s5 + $0xc] sm:$0xf]
        %v560 = vld [vmem:[%s6] sm:$0x1]
        %v562 = vlaneseq
        %v563 = vshrl.u32 %v562, 7
        %v564 = vsub.s32 0, %v563
        %v565 = vrot.slane %v560, %v564
        %v571 = vunpack.c.l.b16 %v556
        %v572 = vunpack.c.l.b16 %v557
        %v573 = vunpack.c.l.b16 %v558
        %v574 = vunpack.c.l.b16 %v559
        %v575 = vpack.c.b16 %v572, %v571
        %v576 = vpack.c.b16 %v574, %v573
        %v580 = vsel %vm511, %v555, 0
        %582 = vmatprep.subr.bf16.mxu0 0
        %583 = vmatpush1.bf16.msra.mxu0 %v575
        %584 = vmatprep.subr.bf16.mxu0 0
        %585 = vmatpush1.bf16.msra.mxu0 %v576
        %586 = vmatprep.subr.bf16.mxu0 0
        %587 = vmatpush1.bf16.msra.mxu0 0
        %588 = vmatprep.subr.bf16.mxu0 0
        %589 = vmatpush1.bf16.msra.mxu0 0
        %590 = vmatprep.subr.bf16.mxu0 0
        %591 = vmatpush1.bf16.msra.mxu0 0
        %592 = vmatprep.subr.bf16.mxu0 0
        %593 = vmatpush1.bf16.msra.mxu0 0
        %594 = vmatprep.subr.bf16.mxu0 0
        %595 = vmatpush1.bf16.msra.mxu0 0
        %596 = vmatprep.subr.bf16.mxu0 0
        %597 = vmatpush1.bf16.msra.mxu0 0
        %598 = vmatprep.subr.bf16.mxu0 0
        %599 = vmatpush1.bf16.msra.mxu0 0
        %600 = vmatprep.subr.bf16.mxu0 0
        %601 = vmatpush1.bf16.msra.mxu0 0
        %602 = vmatprep.subr.bf16.mxu0 0
        %603 = vmatpush1.bf16.msra.mxu0 0
        %604 = vmatprep.subr.bf16.mxu0 0
        %605 = vmatpush1.bf16.msra.mxu0 0
        %606 = vmatprep.subr.bf16.mxu0 0
        %607 = vmatpush1.bf16.msra.mxu0 0
        %608 = vmatprep.subr.bf16.mxu0 0
        %609 = vmatpush1.bf16.msra.mxu0 0
        %610 = vmatprep.subr.bf16.mxu0 0
        %611 = vmatpush1.bf16.msra.mxu0 0
        %612 = vmatprep.subr.bf16.mxu0 0
        %613 = vmatpush1.bf16.msra.mxu0 0
        %614 = vmatprep.mubr.bf16.mxu0 0
        %615 = vmatmul.mubr.bf16.gmra.mrb[0].mxu0 %v580
        %v616 = vpop.f32.mrb[0].mxu0
        %v617 = vadd.f32 %v565, %v616
        %v618 = vpop.f32.mrb[0].mxu0
        %v619 = vpop.f32.mrb[0].mxu0
        %v620 = vpop.f32.mrb[0].mxu0
        %621 = vdwg.mxu0
        %v622 = vld [vmem:[%s476] sm:$0x1]
        %vm623 = vcmp.eq.f32.partialorder %v622, 0.0
        %v624 = vsel %vm623, 1, 0
        %v625 = vlaneseq
        %v626 = vshrl.u32 %v625, 7
        %v627 = vsub.s32 0, %v626
        %v628 = vrot.slane %v624, %v627
        %vm629 = vcmp.eq.s32.totalorder %v628, 1
        %v630 = vpack.c.bf16 %v550, %v550
        %v631 = vpack.c.bf16 %v617, %v617
        %vm632 = vcmask 64512
        %v634 = vsel %vm632, %v630, 0
        %v637 = vsel %vm632, %v631, 0
        %639 = vmatprep.subr.bf16.mxu0 0
        %640 = vmatpush1.bf16.xpose.msra.mxu0 %v637
        %641 = vmatprep.subr.bf16.mxu0 0
        %642 = vmatpush1.bf16.xpose.msra.mxu0 0
        %643 = vmatprep.subr.bf16.mxu0 0
        %644 = vmatpush1.bf16.xpose.msra.mxu0 0
        %645 = vmatprep.subr.bf16.mxu0 0
        %646 = vmatpush1.bf16.xpose.msra.mxu0 0
        %647 = vmatprep.subr.bf16.mxu0 0
        %648 = vmatpush1.bf16.xpose.msra.mxu0 0
        %649 = vmatprep.subr.bf16.mxu0 0
        %650 = vmatpush1.bf16.xpose.msra.mxu0 0
        %651 = vmatprep.subr.bf16.mxu0 0
        %652 = vmatpush1.bf16.xpose.msra.mxu0 0
        %653 = vmatprep.subr.bf16.mxu0 0
        %654 = vmatpush1.bf16.xpose.msra.mxu0 0
        %655 = vmatprep.subr.bf16.mxu0 0
        %656 = vmatpush1.bf16.xpose.msra.mxu0 0
        %657 = vmatprep.subr.bf16.mxu0 0
        %658 = vmatpush1.bf16.xpose.msra.mxu0 0
        %659 = vmatprep.subr.bf16.mxu0 0
        %660 = vmatpush1.bf16.xpose.msra.mxu0 0
        %661 = vmatprep.subr.bf16.mxu0 0
        %662 = vmatpush1.bf16.xpose.msra.mxu0 0
        %663 = vmatprep.subr.bf16.mxu0 0
        %664 = vmatpush1.bf16.xpose.msra.mxu0 0
        %665 = vmatprep.subr.bf16.mxu0 0
        %666 = vmatpush1.bf16.xpose.msra.mxu0 0
        %667 = vmatprep.subr.bf16.mxu0 0
        %668 = vmatpush1.bf16.xpose.msra.mxu0 0
        %669 = vmatprep.subr.bf16.mxu0 0
        %670 = vmatpush1.bf16.xpose.msra.mxu0 0
        %671 = vmatprep.mubr.bf16.mxu0 0
        %672 = vmatmul.mubr.bf16.gmra.mrb[0].mxu0 %v634
        %v673 = vpop.f32.mrb[0].mxu0
        %v674 = vadd.f32 0.0, %v673
        %v675 = vpop.f32.mrb[0].mxu0
        %v676 = vpop.f32.mrb[0].mxu0
        %v677 = vpop.f32.mrb[0].mxu0
        %678 = vdwg.mxu0
        %v679 = vsel %vm629, -1e+10, %v674
        %v680 = vsel %vm632, %v679, -inf
        %681 = vmax.xlane.f32.xlu0 %v680
        %v682 = vpop.xlane.xlu0 %681
        %v683 = vsub.f32 %v679, %v682
        %v684 = vmul.f32 %v683, 1.442695
        %v685 = vpow.pop %v684
        %v686 = vsel %vm632, %v685, 0.0
        %687 = vadd.xlane.f32.xlu0 %v686
        %v688 = vpop.xlane.xlu0 %687
        %v689 = vrcp.pop %v688
        %v690 = vmul.f32 %v685, %v689
        %691 = vst.msk [vmem:[%s462] sm:$0xff] %vm632, %v690
        %v692 = vpack.c.bf16 %v690, %v690
        %694 = vrot.lane.b32.xlu0 %v631, 96
        %v695 = vpop.permute.xlu0 %694
        %v697 = vsel %vm632, %v692, 0
        %vm699 = vcmask 1043456
        %v701 = vsel %vm699, %v695, 0
        %703 = vmatprep.subr.bf16.mxu0 0
        %704 = vmatpush1.bf16.msra.mxu0 %v701
        %705 = vmatprep.subr.bf16.mxu0 0
        %706 = vmatpush1.bf16.msra.mxu0 0
        %707 = vmatprep.subr.bf16.mxu0 0
        %708 = vmatpush1.bf16.msra.mxu0 0
        %709 = vmatprep.subr.bf16.mxu0 0
        %710 = vmatpush1.bf16.msra.mxu0 0
        %711 = vmatprep.subr.bf16.mxu0 0
        %712 = vmatpush1.bf16.msra.mxu0 0
        %713 = vmatprep.subr.bf16.mxu0 0
        %714 = vmatpush1.bf16.msra.mxu0 0
        %715 = vmatprep.subr.bf16.mxu0 0
        %716 = vmatpush1.bf16.msra.mxu0 0
        %717 = vmatprep.subr.bf16.mxu0 0
        %718 = vmatpush1.bf16.msra.mxu0 0
        %719 = vmatprep.subr.bf16.mxu0 0
        %720 = vmatpush1.bf16.msra.mxu0 0
        %721 = vmatprep.subr.bf16.mxu0 0
        %722 = vmatpush1.bf16.msra.mxu0 0
        %723 = vmatprep.subr.bf16.mxu0 0
        %724 = vmatpush1.bf16.msra.mxu0 0
        %725 = vmatprep.subr.bf16.mxu0 0
        %726 = vmatpush1.bf16.msra.mxu0 0
        %727 = vmatprep.subr.bf16.mxu0 0
        %728 = vmatpush1.bf16.msra.mxu0 0
        %729 = vmatprep.subr.bf16.mxu0 0
        %730 = vmatpush1.bf16.msra.mxu0 0
        %731 = vmatprep.subr.bf16.mxu0 0
        %732 = vmatpush1.bf16.msra.mxu0 0
        %733 = vmatprep.subr.bf16.mxu0 0
        %734 = vmatpush1.bf16.msra.mxu0 0
        %735 = vmatprep.mubr.bf16.mxu0 0
        %736 = vmatmul.mubr.bf16.gmra.mrb[0].mxu0 %v697
        %v737 = vpop.f32.mrb[0].mxu0
        %v738 = vadd.f32 0.0, %v737
        %v739 = vpop.f32.mrb[0].mxu0
        %v740 = vpop.f32.mrb[0].mxu0
        %v741 = vpop.f32.mrb[0].mxu0
        %742 = vdwg.mxu0
        %744 = vrot.lane.b32.xlu0 %v630, 120
        %v745 = vpop.permute.xlu0 %744
        %746 = vrot.lane.b32.xlu0 %v631, 120
        %v747 = vpop.permute.xlu0 %746
        %v749 = vsel %vm632, %v745, 0
        %v752 = vsel %vm632, %v747, 0
        %754 = vmatprep.subr.bf16.mxu0 0
        %755 = vmatpush1.bf16.xpose.msra.mxu0 %v752
        %756 = vmatprep.subr.bf16.mxu0 0
        %757 = vmatpush1.bf16.xpose.msra.mxu0 0
        %758 = vmatprep.subr.bf16.mxu0 0
        %759 = vmatpush1.bf16.xpose.msra.mxu0 0
        %760 = vmatprep.subr.bf16.mxu0 0
        %761 = vmatpush1.bf16.xpose.msra.mxu0 0
        %762 = vmatprep.subr.bf16.mxu0 0
        %763 = vmatpush1.bf16.xpose.msra.mxu0 0
        %764 = vmatprep.subr.bf16.mxu0 0
        %765 = vmatpush1.bf16.xpose.msra.mxu0 0
        %766 = vmatprep.subr.bf16.mxu0 0
        %767 = vmatpush1.bf16.xpose.msra.mxu0 0
        %768 = vmatprep.subr.bf16.mxu0 0
        %769 = vmatpush1.bf16.xpose.msra.mxu0 0
        %770 = vmatprep.subr.bf16.mxu0 0
        %771 = vmatpush1.bf16.xpose.msra.mxu0 0
        %772 = vmatprep.subr.bf16.mxu0 0
        %773 = vmatpush1.bf16.xpose.msra.mxu0 0
        %774 = vmatprep.subr.bf16.mxu0 0
        %775 = vmatpush1.bf16.xpose.msra.mxu0 0
        %776 = vmatprep.subr.bf16.mxu0 0
        %777 = vmatpush1.bf16.xpose.msra.mxu0 0
        %778 = vmatprep.subr.bf16.mxu0 0
        %779 = vmatpush1.bf16.xpose.msra.mxu0 0
        %780 = vmatprep.subr.bf16.mxu0 0
        %781 = vmatpush1.bf16.xpose.msra.mxu0 0
        %782 = vmatprep.subr.bf16.mxu0 0
        %783 = vmatpush1.bf16.xpose.msra.mxu0 0
        %784 = vmatprep.subr.bf16.mxu0 0
        %785 = vmatpush1.bf16.xpose.msra.mxu0 0
        %786 = vmatprep.mubr.bf16.mxu0 0
        %787 = vmatmul.mubr.bf16.gmra.mrb[0].mxu0 %v749
        %v788 = vpop.f32.mrb[0].mxu0
        %v789 = vadd.f32 0.0, %v788
        %v790 = vpop.f32.mrb[0].mxu0
        %v791 = vpop.f32.mrb[0].mxu0
        %v792 = vpop.f32.mrb[0].mxu0
        %793 = vdwg.mxu0
        %v794 = vsel %vm629, -1e+10, %v789
        %v795 = vsel %vm632, %v794, -inf
        %796 = vmax.xlane.f32.xlu0 %v795
        %v797 = vpop.xlane.xlu0 %796
        %v798 = vsub.f32 %v794, %v797
        %v799 = vmul.f32 %v798, 1.442695
        %v800 = vpow.pop %v799
        %v801 = vsel %vm632, %v800, 0.0
        %802 = vadd.xlane.f32.xlu0 %v801
        %v803 = vpop.xlane.xlu0 %802
        %v804 = vrcp.pop %v803
        %v805 = vmul.f32 %v800, %v804
        %s806 = scalar_lea.vmem %s462, 8 [#allocation2]
        %807 = vst.msk [vmem:[%s806] sm:$0xff] %vm632, %v805
        %v808 = vpack.c.bf16 %v805, %v805
        %809 = vrot.lane.b32.xlu0 %v631, 88
        %v810 = vpop.permute.xlu0 %809
        %v812 = vsel %vm632, %v808, 0
        %v815 = vsel %vm699, %v810, 0
        %817 = vmatprep.subr.bf16.mxu0 0
        %818 = vmatpush1.bf16.msra.mxu0 %v815
        %819 = vmatprep.subr.bf16.mxu0 0
        %820 = vmatpush1.bf16.msra.mxu0 0
        %821 = vmatprep.subr.bf16.mxu0 0
        %822 = vmatpush1.bf16.msra.mxu0 0
        %823 = vmatprep.subr.bf16.mxu0 0
        %824 = vmatpush1.bf16.msra.mxu0 0
        %825 = vmatprep.subr.bf16.mxu0 0
        %826 = vmatpush1.bf16.msra.mxu0 0
        %827 = vmatprep.subr.bf16.mxu0 0
        %828 = vmatpush1.bf16.msra.mxu0 0
        %829 = vmatprep.subr.bf16.mxu0 0
        %830 = vmatpush1.bf16.msra.mxu0 0
        %831 = vmatprep.subr.bf16.mxu0 0
        %832 = vmatpush1.bf16.msra.mxu0 0
        %833 = vmatprep.subr.bf16.mxu0 0
        %834 = vmatpush1.bf16.msra.mxu0 0
        %835 = vmatprep.subr.bf16.mxu0 0
        %836 = vmatpush1.bf16.msra.mxu0 0
        %837 = vmatprep.subr.bf16.mxu0 0
        %838 = vmatpush1.bf16.msra.mxu0 0
        %839 = vmatprep.subr.bf16.mxu0 0
        %840 = vmatpush1.bf16.msra.mxu0 0
        %841 = vmatprep.subr.bf16.mxu0 0
        %842 = vmatpush1.bf16.msra.mxu0 0
        %843 = vmatprep.subr.bf16.mxu0 0
        %844 = vmatpush1.bf16.msra.mxu0 0
        %845 = vmatprep.subr.bf16.mxu0 0
        %846 = vmatpush1.bf16.msra.mxu0 0
        %847 = vmatprep.subr.bf16.mxu0 0
        %848 = vmatpush1.bf16.msra.mxu0 0
        %849 = vmatprep.mubr.bf16.mxu0 0
        %850 = vmatmul.mubr.bf16.gmra.mrb[0].mxu0 %v812
        %v851 = vpop.f32.mrb[0].mxu0
        %v852 = vadd.f32 0.0, %v851
        %v853 = vpop.f32.mrb[0].mxu0
        %v854 = vpop.f32.mrb[0].mxu0
        %v855 = vpop.f32.mrb[0].mxu0
        %856 = vdwg.mxu0
        %857 = vrot.lane.b32.xlu0 %v630, 112
        %v858 = vpop.permute.xlu0 %857
        %859 = vrot.lane.b32.xlu0 %v631, 112
        %v860 = vpop.permute.xlu0 %859
        %v862 = vsel %vm632, %v858, 0
        %v865 = vsel %vm632, %v860, 0
        %867 = vmatprep.subr.bf16.mxu0 0
        %868 = vmatpush1.bf16.xpose.msra.mxu0 %v865
        %869 = vmatprep.subr.bf16.mxu0 0
        %870 = vmatpush1.bf16.xpose.msra.mxu0 0
        %871 = vmatprep.subr.bf16.mxu0 0
        %872 = vmatpush1.bf16.xpose.msra.mxu0 0
        %873 = vmatprep.subr.bf16.mxu0 0
        %874 = vmatpush1.bf16.xpose.msra.mxu0 0
        %875 = vmatprep.subr.bf16.mxu0 0
        %876 = vmatpush1.bf16.xpose.msra.mxu0 0
        %877 = vmatprep.subr.bf16.mxu0 0
        %878 = vmatpush1.bf16.xpose.msra.mxu0 0
        %879 = vmatprep.subr.bf16.mxu0 0
        %880 = vmatpush1.bf16.xpose.msra.mxu0 0
        %881 = vmatprep.subr.bf16.mxu0 0
        %882 = vmatpush1.bf16.xpose.msra.mxu0 0
        %883 = vmatprep.subr.bf16.mxu0 0
        %884 = vmatpush1.bf16.xpose.msra.mxu0 0
        %885 = vmatprep.subr.bf16.mxu0 0
        %886 = vmatpush1.bf16.xpose.msra.mxu0 0
        %887 = vmatprep.subr.bf16.mxu0 0
        %888 = vmatpush1.bf16.xpose.msra.mxu0 0
        %889 = vmatprep.subr.bf16.mxu0 0
        %890 = vmatpush1.bf16.xpose.msra.mxu0 0
        %891 = vmatprep.subr.bf16.mxu0 0
        %892 = vmatpush1.bf16.xpose.msra.mxu0 0
        %893 = vmatprep.subr.bf16.mxu0 0
        %894 = vmatpush1.bf16.xpose.msra.mxu0 0
        %895 = vmatprep.subr.bf16.mxu0 0
        %896 = vmatpush1.bf16.xpose.msra.mxu0 0
        %897 = vmatprep.subr.bf16.mxu0 0
        %898 = vmatpush1.bf16.xpose.msra.mxu0 0
        %899 = vmatprep.mubr.bf16.mxu0 0
        %900 = vmatmul.mubr.bf16.gmra.mrb[0].mxu0 %v862
        %v901 = vpop.f32.mrb[0].mxu0
        %v902 = vadd.f32 0.0, %v901
        %v903 = vpop.f32.mrb[0].mxu0
        %v904 = vpop.f32.mrb[0].mxu0
        %v905 = vpop.f32.mrb[0].mxu0
        %906 = vdwg.mxu0
        %v907 = vsel %vm629, -1e+10, %v902
        %v908 = vsel %vm632, %v907, -inf
        %909 = vmax.xlane.f32.xlu0 %v908
        %v910 = vpop.xlane.xlu0 %909
        %v911 = vsub.f32 %v907, %v910
        %v912 = vmul.f32 %v911, 1.442695
        %v913 = vpow.pop %v912
        %v914 = vsel %vm632, %v913, 0.0
        %915 = vadd.xlane.f32.xlu0 %v914
        %v916 = vpop.xlane.xlu0 %915
        %v917 = vrcp.pop %v916
        %v918 = vmul.f32 %v913, %v917
        %s919 = scalar_lea.vmem %s462, 16 [#allocation2]
        %920 = vst.msk [vmem:[%s919] sm:$0xff] %vm632, %v918
        %v921 = vpack.c.bf16 %v918, %v918
        %922 = vrot.lane.b32.xlu0 %v631, 80
        %v923 = vpop.permute.xlu0 %922
        %v925 = vsel %vm632, %v921, 0
        %v928 = vsel %vm699, %v923, 0
        %930 = vmatprep.subr.bf16.mxu0 0
        %931 = vmatpush1.bf16.msra.mxu0 %v928
        %932 = vmatprep.subr.bf16.mxu0 0
        %933 = vmatpush1.bf16.msra.mxu0 0
        %934 = vmatprep.subr.bf16.mxu0 0
        %935 = vmatpush1.bf16.msra.mxu0 0
        %936 = vmatprep.subr.bf16.mxu0 0
        %937 = vmatpush1.bf16.msra.mxu0 0
        %938 = vmatprep.subr.bf16.mxu0 0
        %939 = vmatpush1.bf16.msra.mxu0 0
        %940 = vmatprep.subr.bf16.mxu0 0
        %941 = vmatpush1.bf16.msra.mxu0 0
        %942 = vmatprep.subr.bf16.mxu0 0
        %943 = vmatpush1.bf16.msra.mxu0 0
        %944 = vmatprep.subr.bf16.mxu0 0
        %945 = vmatpush1.bf16.msra.mxu0 0
        %946 = vmatprep.subr.bf16.mxu0 0
        %947 = vmatpush1.bf16.msra.mxu0 0
        %948 = vmatprep.subr.bf16.mxu0 0
        %949 = vmatpush1.bf16.msra.mxu0 0
        %950 = vmatprep.subr.bf16.mxu0 0
        %951 = vmatpush1.bf16.msra.mxu0 0
        %952 = vmatprep.subr.bf16.mxu0 0
        %953 = vmatpush1.bf16.msra.mxu0 0
        %954 = vmatprep.subr.bf16.mxu0 0
        %955 = vmatpush1.bf16.msra.mxu0 0
        %956 = vmatprep.subr.bf16.mxu0 0
        %957 = vmatpush1.bf16.msra.mxu0 0
        %958 = vmatprep.subr.bf16.mxu0 0
        %959 = vmatpush1.bf16.msra.mxu0 0
        %960 = vmatprep.subr.bf16.mxu0 0
        %961 = vmatpush1.bf16.msra.mxu0 0
        %962 = vmatprep.mubr.bf16.mxu0 0
        %963 = vmatmul.mubr.bf16.gmra.mrb[0].mxu0 %v925
        %v964 = vpop.f32.mrb[0].mxu0
        %v965 = vadd.f32 0.0, %v964
        %v966 = vpop.f32.mrb[0].mxu0
        %v967 = vpop.f32.mrb[0].mxu0
        %v968 = vpop.f32.mrb[0].mxu0
        %969 = vdwg.mxu0
        %970 = vrot.lane.b32.xlu0 %v630, 104
        %v971 = vpop.permute.xlu0 %970
        %972 = vrot.lane.b32.xlu0 %v631, 104
        %v973 = vpop.permute.xlu0 %972
        %v975 = vsel %vm632, %v971, 0
        %v978 = vsel %vm632, %v973, 0
        %980 = vmatprep.subr.bf16.mxu0 0
        %981 = vmatpush1.bf16.xpose.msra.mxu0 %v978
        %982 = vmatprep.subr.bf16.mxu0 0
        %983 = vmatpush1.bf16.xpose.msra.mxu0 0
        %984 = vmatprep.subr.bf16.mxu0 0
        %985 = vmatpush1.bf16.xpose.msra.mxu0 0
        %986 = vmatprep.subr.bf16.mxu0 0
        %987 = vmatpush1.bf16.xpose.msra.mxu0 0
        %988 = vmatprep.subr.bf16.mxu0 0
        %989 = vmatpush1.bf16.xpose.msra.mxu0 0
        %990 = vmatprep.subr.bf16.mxu0 0
        %991 = vmatpush1.bf16.xpose.msra.mxu0 0
        %992 = vmatprep.subr.bf16.mxu0 0
        %993 = vmatpush1.bf16.xpose.msra.mxu0 0
        %994 = vmatprep.subr.bf16.mxu0 0
        %995 = vmatpush1.bf16.xpose.msra.mxu0 0
        %996 = vmatprep.subr.bf16.mxu0 0
        %997 = vmatpush1.bf16.xpose.msra.mxu0 0
        %998 = vmatprep.subr.bf16.mxu0 0
        %999 = vmatpush1.bf16.xpose.msra.mxu0 0
        %1000 = vmatprep.subr.bf16.mxu0 0
        %1001 = vmatpush1.bf16.xpose.msra.mxu0 0
        %1002 = vmatprep.subr.bf16.mxu0 0
        %1003 = vmatpush1.bf16.xpose.msra.mxu0 0
        %1004 = vmatprep.subr.bf16.mxu0 0
        %1005 = vmatpush1.bf16.xpose.msra.mxu0 0
        %1006 = vmatprep.subr.bf16.mxu0 0
        %1007 = vmatpush1.bf16.xpose.msra.mxu0 0
        %1008 = vmatprep.subr.bf16.mxu0 0
        %1009 = vmatpush1.bf16.xpose.msra.mxu0 0
        %1010 = vmatprep.subr.bf16.mxu0 0
        %1011 = vmatpush1.bf16.xpose.msra.mxu0 0
        %1012 = vmatprep.mubr.bf16.mxu0 0
        %1013 = vmatmul.mubr.bf16.gmra.mrb[0].mxu0 %v975
        %v1014 = vpop.f32.mrb[0].mxu0
        %v1015 = vadd.f32 0.0, %v1014
        %v1016 = vpop.f32.mrb[0].mxu0
        %v1017 = vpop.f32.mrb[0].mxu0
        %v1018 = vpop.f32.mrb[0].mxu0
        %1019 = vdwg.mxu0
        %v1020 = vsel %vm629, -1e+10, %v1015
        %v1021 = vsel %vm632, %v1020, -inf
        %1022 = vmax.xlane.f32.xlu0 %v1021
        %v1023 = vpop.xlane.xlu0 %1022
        %v1024 = vsub.f32 %v1020, %v1023
        %v1025 = vmul.f32 %v1024, 1.442695
        %v1026 = vpow.pop %v1025
        %v1027 = vsel %vm632, %v1026, 0.0
        %1028 = vadd.xlane.f32.xlu0 %v1027
        %v1029 = vpop.xlane.xlu0 %1028
        %v1030 = vrcp.pop %v1029
        %v1031 = vmul.f32 %v1026, %v1030
        %s1032 = scalar_lea.vmem %s462, 24 [#allocation2]
        %1033 = vst.msk [vmem:[%s1032] sm:$0xff] %vm632, %v1031
        %v1034 = vpack.c.bf16 %v1031, %v1031
        %1035 = vrot.lane.b32.xlu0 %v631, 72
        %v1036 = vpop.permute.xlu0 %1035
        %v1038 = vsel %vm632, %v1034, 0
        %v1041 = vsel %vm699, %v1036, 0
        %1043 = vmatprep.subr.bf16.mxu0 0
        %1044 = vmatpush1.bf16.msra.mxu0 %v1041
        %1045 = vmatprep.subr.bf16.mxu0 0
        %1046 = vmatpush1.bf16.msra.mxu0 0
        %1047 = vmatprep.subr.bf16.mxu0 0
        %1048 = vmatpush1.bf16.msra.mxu0 0
        %1049 = vmatprep.subr.bf16.mxu0 0
        %1050 = vmatpush1.bf16.msra.mxu0 0
        %1051 = vmatprep.subr.bf16.mxu0 0
        %1052 = vmatpush1.bf16.msra.mxu0 0
        %1053 = vmatprep.subr.bf16.mxu0 0
        %1054 = vmatpush1.bf16.msra.mxu0 0
        %1055 = vmatprep.subr.bf16.mxu0 0
        %1056 = vmatpush1.bf16.msra.mxu0 0
        %1057 = vmatprep.subr.bf16.mxu0 0
        %1058 = vmatpush1.bf16.msra.mxu0 0
        %1059 = vmatprep.subr.bf16.mxu0 0
        %1060 = vmatpush1.bf16.msra.mxu0 0
        %1061 = vmatprep.subr.bf16.mxu0 0
        %1062 = vmatpush1.bf16.msra.mxu0 0
        %1063 = vmatprep.subr.bf16.mxu0 0
        %1064 = vmatpush1.bf16.msra.mxu0 0
        %1065 = vmatprep.subr.bf16.mxu0 0
        %1066 = vmatpush1.bf16.msra.mxu0 0
        %1067 = vmatprep.subr.bf16.mxu0 0
        %1068 = vmatpush1.bf16.msra.mxu0 0
        %1069 = vmatprep.subr.bf16.mxu0 0
        %1070 = vmatpush1.bf16.msra.mxu0 0
        %1071 = vmatprep.subr.bf16.mxu0 0
        %1072 = vmatpush1.bf16.msra.mxu0 0
        %1073 = vmatprep.subr.bf16.mxu0 0
        %1074 = vmatpush1.bf16.msra.mxu0 0
        %1075 = vmatprep.mubr.bf16.mxu0 0
        %1076 = vmatmul.mubr.bf16.gmra.mrb[0].mxu0 %v1038
        %v1077 = vpop.f32.mrb[0].mxu0
        %v1078 = vadd.f32 0.0, %v1077
        %v1079 = vpop.f32.mrb[0].mxu0
        %v1080 = vpop.f32.mrb[0].mxu0
        %v1081 = vpop.f32.mrb[0].mxu0
        %1082 = vdwg.mxu0
        %1084 = vrot.lane.b32.xlu0 %v852, 8
        %v1085 = vpop.permute.xlu0 %1084
        %1088 = vrot.lane.b32.xlu0 %v965, 16
        %v1089 = vpop.permute.xlu0 %1088
        %1092 = vrot.lane.b32.xlu0 %v1078, 24
        %v1093 = vpop.permute.xlu0 %1092
        %v1095 = vsel %vm632, %v738, %v1085
        %vm1096 = vcmask 130048
        %v1097 = vsel %vm1096, %v1095, %v1089
        %vm1098 = vcmask 195584
        %v1099 = vsel %vm1098, %v1097, %v1093
        %v1100 = vpack.c.bf16 %v1099, %v1099
        %v1101 = vld [vmem:[%s7] sm:$0xf]
        %v1102 = vld [vmem:[%s7 + $0x4] sm:$0xf]
        %v1103 = vld [vmem:[%s7 + $0x8] sm:$0xf]
        %v1104 = vld [vmem:[%s7 + $0xc] sm:$0xf]
        %v1105 = vld [vmem:[%s8] sm:$0x1]
        %v1107 = vlaneseq
        %v1108 = vshrl.u32 %v1107, 7
        %v1109 = vsub.s32 0, %v1108
        %v1110 = vrot.slane %v1105, %v1109
        %v1116 = vunpack.c.l.b16 %v1101
        %v1117 = vunpack.c.l.b16 %v1102
        %v1118 = vunpack.c.l.b16 %v1103
        %v1119 = vunpack.c.l.b16 %v1104
        %v1120 = vpack.c.b16 %v1117, %v1116
        %v1121 = vpack.c.b16 %v1119, %v1118
        %v1125 = vsel %vm511, %v1100, 0
        %1127 = vmatprep.subr.bf16.mxu0 0
        %1128 = vmatpush1.bf16.msra.mxu0 %v1120
        %1129 = vmatprep.subr.bf16.mxu0 0
        %1130 = vmatpush1.bf16.msra.mxu0 %v1121
        %1131 = vmatprep.subr.bf16.mxu0 0
        %1132 = vmatpush1.bf16.msra.mxu0 0
        %1133 = vmatprep.subr.bf16.mxu0 0
        %1134 = vmatpush1.bf16.msra.mxu0 0
        %1135 = vmatprep.subr.bf16.mxu0 0
        %1136 = vmatpush1.bf16.msra.mxu0 0
        %1137 = vmatprep.subr.bf16.mxu0 0
        %1138 = vmatpush1.bf16.msra.mxu0 0
        %1139 = vmatprep.subr.bf16.mxu0 0
        %1140 = vmatpush1.bf16.msra.mxu0 0
        %1141 = vmatprep.subr.bf16.mxu0 0
        %1142 = vmatpush1.bf16.msra.mxu0 0
        %1143 = vmatprep.subr.bf16.mxu0 0
        %1144 = vmatpush1.bf16.msra.mxu0 0
        %1145 = vmatprep.subr.bf16.mxu0 0
        %1146 = vmatpush1.bf16.msra.mxu0 0
        %1147 = vmatprep.subr.bf16.mxu0 0
        %1148 = vmatpush1.bf16.msra.mxu0 0
        %1149 = vmatprep.subr.bf16.mxu0 0
        %1150 = vmatpush1.bf16.msra.mxu0 0
        %1151 = vmatprep.subr.bf16.mxu0 0
        %1152 = vmatpush1.bf16.msra.mxu0 0
        %1153 = vmatprep.subr.bf16.mxu0 0
        %1154 = vmatpush1.bf16.msra.mxu0 0
        %1155 = vmatprep.subr.bf16.mxu0 0
        %1156 = vmatpush1.bf16.msra.mxu0 0
        %1157 = vmatprep.subr.bf16.mxu0 0
        %1158 = vmatpush1.bf16.msra.mxu0 0
        %1159 = vmatprep.mubr.bf16.mxu0 0
        %1160 = vmatmul.mubr.bf16.gmra.mrb[0].mxu0 %v1125
        %v1161 = vpop.f32.mrb[0].mxu0
        %v1162 = vadd.f32 %v1110, %v1161
        %v1163 = vpop.f32.mrb[0].mxu0
        %v1164 = vpop.f32.mrb[0].mxu0
        %v1165 = vpop.f32.mrb[0].mxu0
        %1166 = vdwg.mxu0
        %v1167 = vadd.f32 %v485, %v1162
        %v1168 = vsel %vm511, %v1167, 0.0
        %1169 = vadd.xlane.f32.xlu0 %v1168
        %v1170 = vpop.xlane.xlu0 %1169
        %v1171 = vrcp.pop 32.0
        %v1172 = vmul.f32 %v1170, %v1171
        %v1173 = vsub.f32 %v1167, %v1172
        %v1174 = vmul.f32 %v1173, %v1173
        %v1175 = vsel %vm511, %v1174, 0.0
        %1176 = vadd.xlane.f32.xlu0 %v1175
        %v1177 = vpop.xlane.xlu0 %1176
        %v1178 = vmul.f32 %v1177, %v1171
        %v1179 = vadd.f32 %v1178, 1e-05
        %v1180 = vrsqrt.pop %v1179
        %v1181 = vmul.f32 %v1173, %v1180
        %v1182 = vld [vmem:[%s9] sm:$0x1]
        %v1184 = vlaneseq
        %v1185 = vshrl.u32 %v1184, 7
        %v1186 = vsub.s32 0, %v1185
        %v1187 = vrot.slane %v1182, %v1186
        %v1189 = vmul.f32 %v1181, %v1187
        %v1190 = vld [vmem:[%s10] sm:$0x1]
        %v1192 = vlaneseq
        %v1193 = vshrl.u32 %v1192, 7
        %v1194 = vsub.s32 0, %v1193
        %v1195 = vrot.slane %v1190, %v1194
        %v1197 = vadd.f32 %v1189, %v1195
        %1198 = vst.msk [vmem:[%s483] sm:$0xff] %vm511, %v1197
        %p1199 = scmp.lt.s32.totalorder %s31, 1
        %s1200 = scalar_select %p1199, %s31, 1
        %p1201 = scmp.lt.s32.totalorder %s32, 0
        %s1202 = scalar_select %p1201, %s32, 0
        %s1203 = sadd.s32 %s1202, %s1200
        %s1204 = smul.addr %s1203, 8
        %s1205 = scalar_lea.vmem %s11, %s1204
        %s1206 = sand.u32 %s325, 1
        %s1207 = scalar_lea.sflag [#allocation3], %s1206
        %s1208 = sand.u32 %s325, 1
        %s1209 = smul.addr %s1208, 32
        %s1210 = scalar_lea.vmem [#allocation2], %s1209
        // Predicated region
        $region65: #{decoder_layer.4} parent=63 // pred_check
          %p1211 = pneg %p307
        $region66: #{decoder_layer.4} parent=63 // pred_check_branch
          %1213 = sbr.rel (%p1211) target = $region68
        $region67: #{decoder_layer.4} parent=63 // pred_region
          _
        $region68: #{decoder_layer.4} parent=63 // pred_fallthru
          _
        // Predicated region
        $region69: #{decoder_layer.4} parent=63 // pred_check
          %p1214 = pneg %p335
        $region70: #{decoder_layer.4} parent=63 // pred_check_branch
          %1216 = sbr.rel (%p1214) target = $region72
        $region71: #{decoder_layer.4} parent=63 // pred_region
          %s1218 = ssub.s32 512, 512
          %1219 = vsyncadd %s1207, %s1218
          %s1220 = smul.addr %s31, 4
          %s1221 = sadd.s32 %s32, %s1220
          %s1222 = smul.addr %s1221, 128
          %s1223 = scalar_lea.hbm %s12, %s1222
          %s1224 = sshll.u32 %s1210, 4
          %s1225 = int_to_ptr.vmem [resolvable:$true] %s1224
          %1230 = dma.vmem_to_hbm [thread:$0]  %s1225, 512, %s1223, %s1207, 128, 128, 8
        $region72: #{decoder_layer.4} parent=63 // pred_fallthru
          _
      $region64: #{decoder_layer.4} parent=5 // pred_fallthru
        _
      %p1231 = scmp.le.s32.totalorder 2, %s22
      // Predicated region
      $region73: #{decoder_layer.4} parent=5 // pred_check
        %p1232 = pneg %p1231
      $region74: #{decoder_layer.4} parent=5 // pred_check_branch
        %1234 = sbr.rel (%p1232) target = $region76
      $region75: #{decoder_layer.4} parent=5 // pred_region
        %s1235 = ssub.s32 %s22, 2
        // Predicated region
        $region77: #{decoder_layer.4} parent=75 // pred_check
          %p1236 = pneg %p313
        $region78: #{decoder_layer.4} parent=75 // pred_check_branch
          %1238 = sbr.rel (%p1236) target = $region80
        $region79: #{decoder_layer.4} parent=75 // pred_region
          %p1239 = scmp.lt.s32.totalorder %s33, 1
          %s1240 = scalar_select %p1239, %s33, 1
          %p1241 = scmp.lt.s32.totalorder %s34, 0
          %s1242 = scalar_select %p1241, %s34, 0
          %s1243 = sadd.s32 %s1242, %s1240
          %s1244 = smul.addr %s1243, 8
          %s1245 = scalar_lea.vmem %s11, %s1244
        $region80: #{decoder_layer.4} parent=75 // pred_fallthru
          _
        // Predicated region
        $region81: #{decoder_layer.4} parent=75 // pred_check
          %p1246 = pneg %p341
        $region82: #{decoder_layer.4} parent=75 // pred_check_branch
          %1248 = sbr.rel (%p1246) target = $region84
        $region83: #{decoder_layer.4} parent=75 // pred_region
          %s1249 = sand.u32 %s326, 1
          %s1250 = scalar_lea.sflag [#allocation3], %s1249
          %s1251 = sand.u32 %s326, 1
          %s1252 = smul.addr %s1251, 32
          %s1253 = scalar_lea.vmem [#allocation2], %s1252
          %1254 = dma.done %s1250, 512
        $region84: #{decoder_layer.4} parent=75 // pred_fallthru
          _
      $region76: #{decoder_layer.4} parent=5 // pred_fallthru
        _
    $region6: #{decoder_layer.4} parent=1 // loop_footer
      %s26 = sadd.s32 1, %s22
    $region7: #{decoder_layer.4} parent=1 // loop_footer_branch
      %21 = sbr.rel target = $region3
    $region8: #{decoder_layer.4} parent=1 // loop_exit
      _
    %1255 = vsyncpa [#allocation3], 1
    %s1256 = scalar_lea.sflag [#allocation3], 1
    %1257 = vsyncpa %s1256, 1

</llo_original>
